<compile_context>
chip_gen: v7x
topology: tpu7x:2x2x1
jax: 0.10.0
libtpu: 0.0.40
codegen_flags: <defaults>
</compile_context>

<pallas_src>
import math

import jax
import jax.numpy as jnp
from jax import lax
from jax.experimental import pallas as pl
from jax.experimental.pallas import tpu as pltpu


def _pool_out(w, k, s=2):
    """PyTorch MaxPool output width with ceil_mode=True, no padding."""
    out = -((w - k) // -s) + 1          # ceil((w - k) / s) + 1
    if (out - 1) * s >= w:              # last window must start inside input
        out -= 1
    return out


def _conv1d_relu(x, w_ref, b_ref):
    """Conv(k=3, pad=1) + ReLU.  x: (T, Cin) -> (T, Cout).

    out[t] = x[t-1] @ w0 + x[t] @ w1 + x[t+1] @ w2 + b  (zero padded),
    implemented as 3 matmuls over row-shifted copies of x.
    """
    T, Cin = x.shape
    zero_row = jnp.zeros((1, Cin), jnp.float32)
    if T > 1:
        x_prev = jnp.concatenate([zero_row, x[:T - 1, :]], axis=0)  # x_prev[t] = x[t-1]
        x_next = jnp.concatenate([x[1:, :], zero_row], axis=0)      # x_next[t] = x[t+1]
    else:
        x_prev = jnp.zeros_like(x)
        x_next = jnp.zeros_like(x)
    out = (jnp.dot(x_prev, w_ref[0], preferred_element_type=jnp.float32)
           + jnp.dot(x, w_ref[1], preferred_element_type=jnp.float32)
           + jnp.dot(x_next, w_ref[2], preferred_element_type=jnp.float32)
           + b_ref[...])
    return jnp.maximum(out, 0.0)


def _maxpool_ceil(x, kern, w_out):
    """MaxPool over rows: kernel=kern, stride=2, ceil_mode=True, with indices.

    x: (W, C) -> (values (w_out, C) f32, indices (w_out, C) int32).  Indices
    are positions along the input width (== torch's flattened H_in*W_in index
    since H_in == 1); first-max-wins tie-breaking matches torch.
    """
    W, C = x.shape
    vals, idxs = [], []
    for o in range(w_out):
        ps = [p for p in range(o * 2, o * 2 + kern) if p < W]   # ceil-mode window
        cur_v = x[ps[0]:ps[0] + 1, :]
        cur_i = jnp.full((1, C), ps[0], dtype=jnp.int32)
        for p in ps[1:]:
            v = x[p:p + 1, :]
            take = v > cur_v
            cur_v = jnp.where(take, v, cur_v)
            cur_i = jnp.where(take, jnp.int32(p), cur_i)
        vals.append(cur_v)
        idxs.append(cur_i)
    if w_out == 1:
        return vals[0], idxs[0]
    return jnp.concatenate(vals, axis=0), jnp.concatenate(idxs, axis=0)


def qzx_kernel(x_ref, w1, b1, w2, b2, w3, b3, w4, b4, wfc, bfc,
               z_ref, i1_ref, i2_ref, i3_ref, i4_ref):
    # One batch element per grid step.
    h = x_ref[0]                                   # (T, C0)

    h = _conv1d_relu(h, w1, b1)
    h, i1 = _maxpool_ceil(h, 2, i1_ref.shape[1])
    i1_ref[0] = i1                                 # single block store per sample

    h = _conv1d_relu(h, w2, b2)
    h, i2 = _maxpool_ceil(h, 3, i2_ref.shape[1])
    i2_ref[0] = i2

    h = _conv1d_relu(h, w3, b3)
    h, i3 = _maxpool_ceil(h, 2, i3_ref.shape[1])
    i3_ref[0] = i3

    h = _conv1d_relu(h, w4, b4)
    h, i4 = _maxpool_ceil(h, 2, i4_ref.shape[1])
    i4_ref[0] = i4

    w4o, c4 = h.shape
    # fc weights are pre-permuted to w-major rows in the wrapper, so the torch
    # `out4.reshape(-1, C*W)` flatten is a plain row-major reshape here
    # (no in-kernel transpose needed).
    flat = h.reshape(1, w4o * c4)
    z = jnp.dot(flat, wfc[...], preferred_element_type=jnp.float32) + bfc[...]

    zd = z.shape[1] // 2
    lane = lax.broadcasted_iota(jnp.int32, z.shape, 1)
    # Stable softplus + 1e-7 for the fc12 half; fc11 half passes through.
    sp = jnp.maximum(z, 0.0) + jnp.log1p(jnp.exp(-jnp.abs(z))) + 1e-07
    z_ref[0] = jnp.where(lane < zd, z, sp)


def init_params(key, n_feature, zd_dim, fc_dim):
    ks = jax.random.split(key, 10)

    def xav_conv(k, cin, cout):
        bound = math.sqrt(6.0 / (cin * 3 + cout * 3))
        return jax.random.uniform(k, (3, cin, cout), jnp.float32, -bound, bound)

    def conv_bias(k, cin, cout):
        bound = 1.0 / math.sqrt(cin * 3)
        return jax.random.uniform(k, (1, cout), jnp.float32, -bound, bound)

    def xav_fc(k, fin, fout):
        bound = math.sqrt(6.0 / (fin + fout))
        return jax.random.uniform(k, (fin, fout), jnp.float32, -bound, bound)

    return dict(
        w1=xav_conv(ks[0], n_feature, 512), b1=conv_bias(ks[1], n_feature, 512),
        w2=xav_conv(ks[2], 512, 512),       b2=conv_bias(ks[3], 512, 512),
        w3=xav_conv(ks[4], 512, 128),       b3=conv_bias(ks[5], 512, 128),
        w4=xav_conv(ks[6], 128, 128),       b4=conv_bias(ks[7], 128, 128),
        wf1=xav_fc(ks[8], fc_dim, zd_dim),  bf1=jnp.zeros((1, zd_dim), jnp.float32),
        wf2=xav_fc(ks[9], fc_dim, zd_dim),  bf2=jnp.zeros((1, zd_dim), jnp.float32),
    )


def _const_idx_2d(b):
    return (0, 0)


def _const_idx_3d(b):
    return (0, 0, 0)


def _batch_idx_3d(b):
    return (b, 0, 0)


def qzx_forward(x, params, zd_dim):
    x = x.astype(jnp.float32)
    T, F_ = x.shape[2], x.shape[3]
    x_img = x.reshape(-1, F_, 1, T)                       # torch .view semantics
    B = x_img.shape[0]
    x_in = jnp.transpose(x_img[:, :, 0, :], (0, 2, 1))    # (B, T, C) kernel layout

    w1o = _pool_out(T, 2)
    w2o = _pool_out(w1o, 3)
    w3o = _pool_out(w2o, 2)
    w4o = _pool_out(w3o, 2)
    c4 = params['w4'].shape[2]
    fc_dim = params['wf1'].shape[0]
    assert fc_dim == c4 * w4o, "args.fc_dim mismatch"

    # Fuse fc11 | fc12 into one (fc_dim, 2*zd) matmul and permute rows from
    # torch's channel-major flatten order (c*W + w) to w-major (w*C + c) so
    # the kernel can use a plain row-major reshape of the last pool output.
    wfc = jnp.concatenate([params['wf1'], params['wf2']], axis=1)
    wfc = wfc.reshape(c4, w4o, 2 * zd_dim).transpose(1, 0, 2).reshape(fc_dim, 2 * zd_dim)
    bfc = jnp.concatenate([params['bf1'], params['bf2']], axis=1)

    weights = (params['w1'], params['b1'], params['w2'], params['b2'],
               params['w3'], params['b3'], params['w4'], params['b4'],
               wfc, bfc)

    in_specs = [pl.BlockSpec((1, T, F_), _batch_idx_3d)]
    for w in weights:
        idx_map = _const_idx_3d if w.ndim == 3 else _const_idx_2d
        in_specs.append(pl.BlockSpec(w.shape, idx_map))    # VMEM-resident weights

    out_shape = (
        jax.ShapeDtypeStruct((B, 1, 2 * zd_dim), jnp.float32),   # loc || scale
        jax.ShapeDtypeStruct((B, w1o, 512), jnp.int32),          # idx1
        jax.ShapeDtypeStruct((B, w2o, 512), jnp.int32),          # idx2
        jax.ShapeDtypeStruct((B, w3o, 128), jnp.int32),          # idx3
        jax.ShapeDtypeStruct((B, w4o, 128), jnp.int32),          # idx4
    )
    out_specs = tuple(
        pl.BlockSpec((1,) + s.shape[1:], _batch_idx_3d) for s in out_shape)

    outs = pl.pallas_call(
        qzx_kernel,
        out_shape=out_shape,
        grid_spec=pltpu.PrefetchScalarGridSpec(
            num_scalar_prefetch=0,
            grid=(B,),
            in_specs=in_specs,
            out_specs=out_specs),
        compiler_params=pltpu.CompilerParams(
            dimension_semantics=("parallel",),
            vmem_limit_bytes=32 * 1024 * 1024),   # fits v7x's 64 MiB physical VMEM
    )(x_in, *weights)

    z, i1, i2, i3, i4 = outs
    zx_loc = z[:, 0, :zd_dim]
    zx_scale = z[:, 0, zd_dim:]

    # Kernel idx layout (B, W_out, C) -> torch (B, C, 1, W_out).
    # TODO(synk): PyTorch returns int64 pool indices; int32 is kept here (no x64).
    def to_torch_idx(i):
        return jnp.transpose(i, (0, 2, 1))[:, :, None, :]

    idxs = [to_torch_idx(i1), to_torch_idx(i2), to_torch_idx(i3), to_torch_idx(i4)]
    sizes = [tuple(x_img.shape), (B, 512, 1, w1o), (B, 512, 1, w2o), (B, 128, 1, w3o)]
    return zx_loc, zx_scale, idxs, sizes


if __name__ == "__main__":
    B, T, n_feature, zd_dim = 2, 16, 4, 32
    key = jax.random.PRNGKey(0)
    kx, kp = jax.random.split(key)

    # forward() expects x with x.shape[2]=time, x.shape[3]=n_feature.
    x = jax.random.normal(kx, (B, 1, T, n_feature), jnp.float32)

    w1o = _pool_out(T, 2)
    w2o = _pool_out(w1o, 3)
    w3o = _pool_out(w2o, 2)
    w4o = _pool_out(w3o, 2)
    fc_dim = 128 * w4o  # args.fc_dim implied by the conv/pool stack

    params = init_params(kp, n_feature, zd_dim, fc_dim)
    zx_loc, zx_scale, idxs, sizes = qzx_forward(x, params, zd_dim)
    jax.block_until_ready((zx_loc, zx_scale, idxs))
    print("KERNEL_OK")
</pallas_src>

<mosaic_0001>
module attributes {stable_mosaic.version = 11 : i64} {
  func.func @qzx_kernel(%arg0: i32, %arg1: memref<1x16x4xf32, #tpu.memory_space<vmem>>, %arg2: memref<3x4x512xf32, #tpu.memory_space<vmem>>, %arg3: memref<1x512xf32, #tpu.memory_space<vmem>>, %arg4: memref<3x512x512xf32, #tpu.memory_space<vmem>>, %arg5: memref<1x512xf32, #tpu.memory_space<vmem>>, %arg6: memref<3x512x128xf32, #tpu.memory_space<vmem>>, %arg7: memref<1x128xf32, #tpu.memory_space<vmem>>, %arg8: memref<3x128x128xf32, #tpu.memory_space<vmem>>, %arg9: memref<1x128xf32, #tpu.memory_space<vmem>>, %arg10: memref<128x64xf32, #tpu.memory_space<vmem>>, %arg11: memref<1x64xf32, #tpu.memory_space<vmem>>, %arg12: memref<1x1x64xf32, #tpu.memory_space<vmem>>, %arg13: memref<1x8x512xi32, #tpu.memory_space<vmem>>, %arg14: memref<1x4x512xi32, #tpu.memory_space<vmem>>, %arg15: memref<1x2x128xi32, #tpu.memory_space<vmem>>, %arg16: memref<1x1x128xi32, #tpu.memory_space<vmem>>) attributes {dimension_semantics = [#tpu.dimension_semantics<parallel>], iteration_bounds = array<i64: 2>, scalar_prefetch = 0 : i64, scratch_operands = 0 : i64, tpu.core_type = #tpu.core_type<tc>, window_params = [{transform_indices = @transform_0, window_bounds = array<i64: 1, 16, 4>}, {pipeline_mode = #tpu.pipeline_mode<synchronous>, transform_indices = @transform_1, window_bounds = array<i64: 3, 4, 512>}, {pipeline_mode = #tpu.pipeline_mode<synchronous>, transform_indices = @transform_2, window_bounds = array<i64: 1, 512>}, {pipeline_mode = #tpu.pipeline_mode<synchronous>, transform_indices = @transform_3, window_bounds = array<i64: 3, 512, 512>}, {pipeline_mode = #tpu.pipeline_mode<synchronous>, transform_indices = @transform_4, window_bounds = array<i64: 1, 512>}, {pipeline_mode = #tpu.pipeline_mode<synchronous>, transform_indices = @transform_5, window_bounds = array<i64: 3, 512, 128>}, {pipeline_mode = #tpu.pipeline_mode<synchronous>, transform_indices = @transform_6, window_bounds = array<i64: 1, 128>}, {pipeline_mode = #tpu.pipeline_mode<synchronous>, transform_indices = @transform_7, window_bounds = array<i64: 3, 128, 128>}, {pipeline_mode = #tpu.pipeline_mode<synchronous>, transform_indices = @transform_8, window_bounds = array<i64: 1, 128>}, {pipeline_mode = #tpu.pipeline_mode<synchronous>, transform_indices = @transform_9, window_bounds = array<i64: 128, 64>}, {pipeline_mode = #tpu.pipeline_mode<synchronous>, transform_indices = @transform_10, window_bounds = array<i64: 1, 64>}, {transform_indices = @transform_11, window_bounds = array<i64: 1, 1, 64>}, {transform_indices = @transform_12, window_bounds = array<i64: 1, 8, 512>}, {transform_indices = @transform_13, window_bounds = array<i64: 1, 4, 512>}, {transform_indices = @transform_14, window_bounds = array<i64: 1, 2, 128>}, {transform_indices = @transform_15, window_bounds = array<i64: 1, 1, 128>}]} {
    %c0 = arith.constant 0 : index
    %c0_0 = arith.constant 0 : index
    %c0_1 = arith.constant 0 : index
    %0 = vector.load %arg1[%c0, %c0_0, %c0_1] : memref<1x16x4xf32, #tpu.memory_space<vmem>>, vector<1x16x4xf32>
    %1 = vector.shape_cast %0 : vector<1x16x4xf32> to vector<16x4xf32>
    %cst = arith.constant 0.000000e+00 : f32
    %2 = vector.broadcast %cst : f32 to vector<1x4xf32>
    %3 = vector.extract_strided_slice %1 {offsets = [0, 0], sizes = [15, 4], strides = [1, 1]} : vector<16x4xf32> to vector<15x4xf32>
    %4 = tpu.concatenate %2, %3 in 0 : vector<1x4xf32>, vector<15x4xf32> -> vector<16x4xf32>
    %5 = vector.extract_strided_slice %1 {offsets = [1, 0], sizes = [15, 4], strides = [1, 1]} : vector<16x4xf32> to vector<15x4xf32>
    %6 = tpu.concatenate %5, %2 in 0 : vector<15x4xf32>, vector<1x4xf32> -> vector<16x4xf32>
    %c0_2 = arith.constant 0 : index
    %c0_3 = arith.constant 0 : index
    %c0_4 = arith.constant 0 : index
    %7 = vector.load %arg2[%c0_2, %c0_3, %c0_4] : memref<3x4x512xf32, #tpu.memory_space<vmem>>, vector<1x4x512xf32>
    %8 = vector.shape_cast %7 : vector<1x4x512xf32> to vector<4x512xf32>
    %cst_5 = arith.constant dense<0.000000e+00> : vector<16x512xf32>
    %9 = tpu.matmul %4, %8, %cst_5 {dimension_numbers = #tpu.dot_dimension_numbers<[1], [0], [0], [1], [0, 0, 1, 1], [], []>} : vector<16x4xf32>, vector<4x512xf32>, vector<16x512xf32> -> vector<16x512xf32>
    %c1 = arith.constant 1 : index
    %c0_6 = arith.constant 0 : index
    %c0_7 = arith.constant 0 : index
    %10 = vector.load %arg2[%c1, %c0_6, %c0_7] : memref<3x4x512xf32, #tpu.memory_space<vmem>>, vector<1x4x512xf32>
    %11 = vector.shape_cast %10 : vector<1x4x512xf32> to vector<4x512xf32>
    %cst_8 = arith.constant dense<0.000000e+00> : vector<16x512xf32>
    %12 = tpu.matmul %1, %11, %cst_8 {dimension_numbers = #tpu.dot_dimension_numbers<[1], [0], [0], [1], [0, 0, 1, 1], [], []>} : vector<16x4xf32>, vector<4x512xf32>, vector<16x512xf32> -> vector<16x512xf32>
    %13 = arith.addf %9, %12 : vector<16x512xf32>
    %c2 = arith.constant 2 : index
    %c0_9 = arith.constant 0 : index
    %c0_10 = arith.constant 0 : index
    %14 = vector.load %arg2[%c2, %c0_9, %c0_10] : memref<3x4x512xf32, #tpu.memory_space<vmem>>, vector<1x4x512xf32>
    %15 = vector.shape_cast %14 : vector<1x4x512xf32> to vector<4x512xf32>
    %cst_11 = arith.constant dense<0.000000e+00> : vector<16x512xf32>
    %16 = tpu.matmul %6, %15, %cst_11 {dimension_numbers = #tpu.dot_dimension_numbers<[1], [0], [0], [1], [0, 0, 1, 1], [], []>} : vector<16x4xf32>, vector<4x512xf32>, vector<16x512xf32> -> vector<16x512xf32>
    %17 = arith.addf %13, %16 : vector<16x512xf32>
    %c0_12 = arith.constant 0 : index
    %c0_13 = arith.constant 0 : index
    %18 = vector.load %arg3[%c0_12, %c0_13] : memref<1x512xf32, #tpu.memory_space<vmem>>, vector<1x512xf32>
    %19 = vector.broadcast %18 : vector<1x512xf32> to vector<16x512xf32>
    %20 = arith.addf %17, %19 : vector<16x512xf32>
    %cst_14 = arith.constant 0.000000e+00 : f32
    %21 = vector.broadcast %cst_14 : f32 to vector<16x512xf32>
    %22 = arith.maximumf %20, %21 : vector<16x512xf32>
    %23 = vector.extract_strided_slice %22 {offsets = [0, 0], sizes = [1, 512], strides = [1, 1]} : vector<16x512xf32> to vector<1x512xf32>
    %c0_i32 = arith.constant 0 : i32
    %24 = vector.broadcast %c0_i32 : i32 to vector<1x512xi32>
    %25 = vector.extract_strided_slice %22 {offsets = [1, 0], sizes = [1, 512], strides = [1, 1]} : vector<16x512xf32> to vector<1x512xf32>
    %26 = arith.cmpf ogt, %25, %23 : vector<1x512xf32>
    %27 = arith.select %26, %25, %23 : vector<1x512xi1>, vector<1x512xf32>
    %c1_i32 = arith.constant 1 : i32
    %28 = vector.broadcast %c1_i32 : i32 to vector<1x512xi32>
    %29 = arith.select %26, %28, %24 : vector<1x512xi1>, vector<1x512xi32>
    %30 = vector.extract_strided_slice %22 {offsets = [2, 0], sizes = [1, 512], strides = [1, 1]} : vector<16x512xf32> to vector<1x512xf32>
    %c2_i32 = arith.constant 2 : i32
    %31 = vector.broadcast %c2_i32 : i32 to vector<1x512xi32>
    %32 = vector.extract_strided_slice %22 {offsets = [3, 0], sizes = [1, 512], strides = [1, 1]} : vector<16x512xf32> to vector<1x512xf32>
    %33 = arith.cmpf ogt, %32, %30 : vector<1x512xf32>
    %34 = arith.select %33, %32, %30 : vector<1x512xi1>, vector<1x512xf32>
    %c3_i32 = arith.constant 3 : i32
    %35 = vector.broadcast %c3_i32 : i32 to vector<1x512xi32>
    %36 = arith.select %33, %35, %31 : vector<1x512xi1>, vector<1x512xi32>
    %37 = vector.extract_strided_slice %22 {offsets = [4, 0], sizes = [1, 512], strides = [1, 1]} : vector<16x512xf32> to vector<1x512xf32>
    %c4_i32 = arith.constant 4 : i32
    %38 = vector.broadcast %c4_i32 : i32 to vector<1x512xi32>
    %39 = vector.extract_strided_slice %22 {offsets = [5, 0], sizes = [1, 512], strides = [1, 1]} : vector<16x512xf32> to vector<1x512xf32>
    %40 = arith.cmpf ogt, %39, %37 : vector<1x512xf32>
    %41 = arith.select %40, %39, %37 : vector<1x512xi1>, vector<1x512xf32>
    %c5_i32 = arith.constant 5 : i32
    %42 = vector.broadcast %c5_i32 : i32 to vector<1x512xi32>
    %43 = arith.select %40, %42, %38 : vector<1x512xi1>, vector<1x512xi32>
    %44 = vector.extract_strided_slice %22 {offsets = [6, 0], sizes = [1, 512], strides = [1, 1]} : vector<16x512xf32> to vector<1x512xf32>
    %c6_i32 = arith.constant 6 : i32
    %45 = vector.broadcast %c6_i32 : i32 to vector<1x512xi32>
    %46 = vector.extract_strided_slice %22 {offsets = [7, 0], sizes = [1, 512], strides = [1, 1]} : vector<16x512xf32> to vector<1x512xf32>
    %47 = arith.cmpf ogt, %46, %44 : vector<1x512xf32>
    %48 = arith.select %47, %46, %44 : vector<1x512xi1>, vector<1x512xf32>
    %c7_i32 = arith.constant 7 : i32
    %49 = vector.broadcast %c7_i32 : i32 to vector<1x512xi32>
    %50 = arith.select %47, %49, %45 : vector<1x512xi1>, vector<1x512xi32>
    %51 = vector.extract_strided_slice %22 {offsets = [8, 0], sizes = [1, 512], strides = [1, 1]} : vector<16x512xf32> to vector<1x512xf32>
    %c8_i32 = arith.constant 8 : i32
    %52 = vector.broadcast %c8_i32 : i32 to vector<1x512xi32>
    %53 = vector.extract_strided_slice %22 {offsets = [9, 0], sizes = [1, 512], strides = [1, 1]} : vector<16x512xf32> to vector<1x512xf32>
    %54 = arith.cmpf ogt, %53, %51 : vector<1x512xf32>
    %55 = arith.select %54, %53, %51 : vector<1x512xi1>, vector<1x512xf32>
    %c9_i32 = arith.constant 9 : i32
    %56 = vector.broadcast %c9_i32 : i32 to vector<1x512xi32>
    %57 = arith.select %54, %56, %52 : vector<1x512xi1>, vector<1x512xi32>
    %58 = vector.extract_strided_slice %22 {offsets = [10, 0], sizes = [1, 512], strides = [1, 1]} : vector<16x512xf32> to vector<1x512xf32>
    %c10_i32 = arith.constant 10 : i32
    %59 = vector.broadcast %c10_i32 : i32 to vector<1x512xi32>
    %60 = vector.extract_strided_slice %22 {offsets = [11, 0], sizes = [1, 512], strides = [1, 1]} : vector<16x512xf32> to vector<1x512xf32>
    %61 = arith.cmpf ogt, %60, %58 : vector<1x512xf32>
    %62 = arith.select %61, %60, %58 : vector<1x512xi1>, vector<1x512xf32>
    %c11_i32 = arith.constant 11 : i32
    %63 = vector.broadcast %c11_i32 : i32 to vector<1x512xi32>
    %64 = arith.select %61, %63, %59 : vector<1x512xi1>, vector<1x512xi32>
    %65 = vector.extract_strided_slice %22 {offsets = [12, 0], sizes = [1, 512], strides = [1, 1]} : vector<16x512xf32> to vector<1x512xf32>
    %c12_i32 = arith.constant 12 : i32
    %66 = vector.broadcast %c12_i32 : i32 to vector<1x512xi32>
    %67 = vector.extract_strided_slice %22 {offsets = [13, 0], sizes = [1, 512], strides = [1, 1]} : vector<16x512xf32> to vector<1x512xf32>
    %68 = arith.cmpf ogt, %67, %65 : vector<1x512xf32>
    %69 = arith.select %68, %67, %65 : vector<1x512xi1>, vector<1x512xf32>
    %c13_i32 = arith.constant 13 : i32
    %70 = vector.broadcast %c13_i32 : i32 to vector<1x512xi32>
    %71 = arith.select %68, %70, %66 : vector<1x512xi1>, vector<1x512xi32>
    %72 = vector.extract_strided_slice %22 {offsets = [14, 0], sizes = [1, 512], strides = [1, 1]} : vector<16x512xf32> to vector<1x512xf32>
    %c14_i32 = arith.constant 14 : i32
    %73 = vector.broadcast %c14_i32 : i32 to vector<1x512xi32>
    %74 = vector.extract_strided_slice %22 {offsets = [15, 0], sizes = [1, 512], strides = [1, 1]} : vector<16x512xf32> to vector<1x512xf32>
    %75 = arith.cmpf ogt, %74, %72 : vector<1x512xf32>
    %76 = arith.select %75, %74, %72 : vector<1x512xi1>, vector<1x512xf32>
    %c15_i32 = arith.constant 15 : i32
    %77 = vector.broadcast %c15_i32 : i32 to vector<1x512xi32>
    %78 = arith.select %75, %77, %73 : vector<1x512xi1>, vector<1x512xi32>
    %79 = tpu.concatenate %27, %34, %41, %48, %55, %62, %69, %76 in 0 : vector<1x512xf32>, vector<1x512xf32>, vector<1x512xf32>, vector<1x512xf32>, vector<1x512xf32>, vector<1x512xf32>, vector<1x512xf32>, vector<1x512xf32> -> vector<8x512xf32>
    %80 = tpu.concatenate %29, %36, %43, %50, %57, %64, %71, %78 in 0 : vector<1x512xi32>, vector<1x512xi32>, vector<1x512xi32>, vector<1x512xi32>, vector<1x512xi32>, vector<1x512xi32>, vector<1x512xi32>, vector<1x512xi32> -> vector<8x512xi32>
    %c0_15 = arith.constant 0 : index
    %c0_16 = arith.constant 0 : index
    %c0_17 = arith.constant 0 : index
    %81 = vector.load %arg13[%c0_15, %c0_16, %c0_17] : memref<1x8x512xi32, #tpu.memory_space<vmem>>, vector<1x8x512xi32>
    %82 = vector.shape_cast %81 : vector<1x8x512xi32> to vector<8x512xi32>
    %83 = vector.shape_cast %80 : vector<8x512xi32> to vector<1x8x512xi32>
    tpu.vector_store %arg13[%c0_15, %c0_16, %c0_17], %83 {strides = array<i32>} : memref<1x8x512xi32, #tpu.memory_space<vmem>>, vector<1x8x512xi32>,
    %cst_18 = arith.constant 0.000000e+00 : f32
    %84 = vector.broadcast %cst_18 : f32 to vector<1x512xf32>
    %85 = vector.extract_strided_slice %79 {offsets = [0, 0], sizes = [7, 512], strides = [1, 1]} : vector<8x512xf32> to vector<7x512xf32>
    %86 = tpu.concatenate %84, %85 in 0 : vector<1x512xf32>, vector<7x512xf32> -> vector<8x512xf32>
    %87 = vector.extract_strided_slice %79 {offsets = [1, 0], sizes = [7, 512], strides = [1, 1]} : vector<8x512xf32> to vector<7x512xf32>
    %88 = tpu.concatenate %87, %84 in 0 : vector<7x512xf32>, vector<1x512xf32> -> vector<8x512xf32>
    %c0_19 = arith.constant 0 : index
    %c0_20 = arith.constant 0 : index
    %c0_21 = arith.constant 0 : index
    %89 = vector.load %arg4[%c0_19, %c0_20, %c0_21] : memref<3x512x512xf32, #tpu.memory_space<vmem>>, vector<1x512x512xf32>
    %90 = vector.shape_cast %89 : vector<1x512x512xf32> to vector<512x512xf32>
    %cst_22 = arith.constant dense<0.000000e+00> : vector<8x512xf32>
    %91 = tpu.matmul %86, %90, %cst_22 {dimension_numbers = #tpu.dot_dimension_numbers<[1], [0], [0], [1], [0, 0, 1, 1], [], []>} : vector<8x512xf32>, vector<512x512xf32>, vector<8x512xf32> -> vector<8x512xf32>
    %c1_23 = arith.constant 1 : index
    %c0_24 = arith.constant 0 : index
    %c0_25 = arith.constant 0 : index
    %92 = vector.load %arg4[%c1_23, %c0_24, %c0_25] : memref<3x512x512xf32, #tpu.memory_space<vmem>>, vector<1x512x512xf32>
    %93 = vector.shape_cast %92 : vector<1x512x512xf32> to vector<512x512xf32>
    %cst_26 = arith.constant dense<0.000000e+00> : vector<8x512xf32>
    %94 = tpu.matmul %79, %93, %cst_26 {dimension_numbers = #tpu.dot_dimension_numbers<[1], [0], [0], [1], [0, 0, 1, 1], [], []>} : vector<8x512xf32>, vector<512x512xf32>, vector<8x512xf32> -> vector<8x512xf32>
    %95 = arith.addf %91, %94 : vector<8x512xf32>
    %c2_27 = arith.constant 2 : index
    %c0_28 = arith.constant 0 : index
    %c0_29 = arith.constant 0 : index
    %96 = vector.load %arg4[%c2_27, %c0_28, %c0_29] : memref<3x512x512xf32, #tpu.memory_space<vmem>>, vector<1x512x512xf32>
    %97 = vector.shape_cast %96 : vector<1x512x512xf32> to vector<512x512xf32>
    %cst_30 = arith.constant dense<0.000000e+00> : vector<8x512xf32>
    %98 = tpu.matmul %88, %97, %cst_30 {dimension_numbers = #tpu.dot_dimension_numbers<[1], [0], [0], [1], [0, 0, 1, 1], [], []>} : vector<8x512xf32>, vector<512x512xf32>, vector<8x512xf32> -> vector<8x512xf32>
    %99 = arith.addf %95, %98 : vector<8x512xf32>
    %c0_31 = arith.constant 0 : index
    %c0_32 = arith.constant 0 : index
    %100 = vector.load %arg5[%c0_31, %c0_32] : memref<1x512xf32, #tpu.memory_space<vmem>>, vector<1x512xf32>
    %101 = vector.broadcast %100 : vector<1x512xf32> to vector<8x512xf32>
    %102 = arith.addf %99, %101 : vector<8x512xf32>
    %cst_33 = arith.constant 0.000000e+00 : f32
    %103 = vector.broadcast %cst_33 : f32 to vector<8x512xf32>
    %104 = arith.maximumf %102, %103 : vector<8x512xf32>
    %105 = vector.extract_strided_slice %104 {offsets = [0, 0], sizes = [1, 512], strides = [1, 1]} : vector<8x512xf32> to vector<1x512xf32>
    %c0_i32_34 = arith.constant 0 : i32
    %106 = vector.broadcast %c0_i32_34 : i32 to vector<1x512xi32>
    %107 = vector.extract_strided_slice %104 {offsets = [1, 0], sizes = [1, 512], strides = [1, 1]} : vector<8x512xf32> to vector<1x512xf32>
    %108 = arith.cmpf ogt, %107, %105 : vector<1x512xf32>
    %109 = arith.select %108, %107, %105 : vector<1x512xi1>, vector<1x512xf32>
    %c1_i32_35 = arith.constant 1 : i32
    %110 = vector.broadcast %c1_i32_35 : i32 to vector<1x512xi32>
    %111 = arith.select %108, %110, %106 : vector<1x512xi1>, vector<1x512xi32>
    %112 = vector.extract_strided_slice %104 {offsets = [2, 0], sizes = [1, 512], strides = [1, 1]} : vector<8x512xf32> to vector<1x512xf32>
    %113 = arith.cmpf ogt, %112, %109 : vector<1x512xf32>
    %114 = arith.select %113, %112, %109 : vector<1x512xi1>, vector<1x512xf32>
    %c2_i32_36 = arith.constant 2 : i32
    %115 = vector.broadcast %c2_i32_36 : i32 to vector<1x512xi32>
    %116 = arith.select %113, %115, %111 : vector<1x512xi1>, vector<1x512xi32>
    %117 = vector.extract_strided_slice %104 {offsets = [2, 0], sizes = [1, 512], strides = [1, 1]} : vector<8x512xf32> to vector<1x512xf32>
    %c2_i32_37 = arith.constant 2 : i32
    %118 = vector.broadcast %c2_i32_37 : i32 to vector<1x512xi32>
    %119 = vector.extract_strided_slice %104 {offsets = [3, 0], sizes = [1, 512], strides = [1, 1]} : vector<8x512xf32> to vector<1x512xf32>
    %120 = arith.cmpf ogt, %119, %117 : vector<1x512xf32>
    %121 = arith.select %120, %119, %117 : vector<1x512xi1>, vector<1x512xf32>
    %c3_i32_38 = arith.constant 3 : i32
    %122 = vector.broadcast %c3_i32_38 : i32 to vector<1x512xi32>
    %123 = arith.select %120, %122, %118 : vector<1x512xi1>, vector<1x512xi32>
    %124 = vector.extract_strided_slice %104 {offsets = [4, 0], sizes = [1, 512], strides = [1, 1]} : vector<8x512xf32> to vector<1x512xf32>
    %125 = arith.cmpf ogt, %124, %121 : vector<1x512xf32>
    %126 = arith.select %125, %124, %121 : vector<1x512xi1>, vector<1x512xf32>
    %c4_i32_39 = arith.constant 4 : i32
    %127 = vector.broadcast %c4_i32_39 : i32 to vector<1x512xi32>
    %128 = arith.select %125, %127, %123 : vector<1x512xi1>, vector<1x512xi32>
    %129 = vector.extract_strided_slice %104 {offsets = [4, 0], sizes = [1, 512], strides = [1, 1]} : vector<8x512xf32> to vector<1x512xf32>
    %c4_i32_40 = arith.constant 4 : i32
    %130 = vector.broadcast %c4_i32_40 : i32 to vector<1x512xi32>
    %131 = vector.extract_strided_slice %104 {offsets = [5, 0], sizes = [1, 512], strides = [1, 1]} : vector<8x512xf32> to vector<1x512xf32>
    %132 = arith.cmpf ogt, %131, %129 : vector<1x512xf32>
    %133 = arith.select %132, %131, %129 : vector<1x512xi1>, vector<1x512xf32>
    %c5_i32_41 = arith.constant 5 : i32
    %134 = vector.broadcast %c5_i32_41 : i32 to vector<1x512xi32>
    %135 = arith.select %132, %134, %130 : vector<1x512xi1>, vector<1x512xi32>
    %136 = vector.extract_strided_slice %104 {offsets = [6, 0], sizes = [1, 512], strides = [1, 1]} : vector<8x512xf32> to vector<1x512xf32>
    %137 = arith.cmpf ogt, %136, %133 : vector<1x512xf32>
    %138 = arith.select %137, %136, %133 : vector<1x512xi1>, vector<1x512xf32>
    %c6_i32_42 = arith.constant 6 : i32
    %139 = vector.broadcast %c6_i32_42 : i32 to vector<1x512xi32>
    %140 = arith.select %137, %139, %135 : vector<1x512xi1>, vector<1x512xi32>
    %141 = vector.extract_strided_slice %104 {offsets = [6, 0], sizes = [1, 512], strides = [1, 1]} : vector<8x512xf32> to vector<1x512xf32>
    %c6_i32_43 = arith.constant 6 : i32
    %142 = vector.broadcast %c6_i32_43 : i32 to vector<1x512xi32>
    %143 = vector.extract_strided_slice %104 {offsets = [7, 0], sizes = [1, 512], strides = [1, 1]} : vector<8x512xf32> to vector<1x512xf32>
    %144 = arith.cmpf ogt, %143, %141 : vector<1x512xf32>
    %145 = arith.select %144, %143, %141 : vector<1x512xi1>, vector<1x512xf32>
    %c7_i32_44 = arith.constant 7 : i32
    %146 = vector.broadcast %c7_i32_44 : i32 to vector<1x512xi32>
    %147 = arith.select %144, %146, %142 : vector<1x512xi1>, vector<1x512xi32>
    %148 = tpu.concatenate %114, %126, %138, %145 in 0 : vector<1x512xf32>, vector<1x512xf32>, vector<1x512xf32>, vector<1x512xf32> -> vector<4x512xf32>
    %149 = tpu.concatenate %116, %128, %140, %147 in 0 : vector<1x512xi32>, vector<1x512xi32>, vector<1x512xi32>, vector<1x512xi32> -> vector<4x512xi32>
    %c0_45 = arith.constant 0 : index
    %c0_46 = arith.constant 0 : index
    %c0_47 = arith.constant 0 : index
    %150 = vector.load %arg14[%c0_45, %c0_46, %c0_47] : memref<1x4x512xi32, #tpu.memory_space<vmem>>, vector<1x4x512xi32>
    %151 = vector.shape_cast %150 : vector<1x4x512xi32> to vector<4x512xi32>
    %152 = vector.shape_cast %149 : vector<4x512xi32> to vector<1x4x512xi32>
    tpu.vector_store %arg14[%c0_45, %c0_46, %c0_47], %152 {strides = array<i32>} : memref<1x4x512xi32, #tpu.memory_space<vmem>>, vector<1x4x512xi32>,
    %cst_48 = arith.constant 0.000000e+00 : f32
    %153 = vector.broadcast %cst_48 : f32 to vector<1x512xf32>
    %154 = vector.extract_strided_slice %148 {offsets = [0, 0], sizes = [3, 512], strides = [1, 1]} : vector<4x512xf32> to vector<3x512xf32>
    %155 = tpu.concatenate %153, %154 in 0 : vector<1x512xf32>, vector<3x512xf32> -> vector<4x512xf32>
    %156 = vector.extract_strided_slice %148 {offsets = [1, 0], sizes = [3, 512], strides = [1, 1]} : vector<4x512xf32> to vector<3x512xf32>
    %157 = tpu.concatenate %156, %153 in 0 : vector<3x512xf32>, vector<1x512xf32> -> vector<4x512xf32>
    %c0_49 = arith.constant 0 : index
    %c0_50 = arith.constant 0 : index
    %c0_51 = arith.constant 0 : index
    %158 = vector.load %arg6[%c0_49, %c0_50, %c0_51] : memref<3x512x128xf32, #tpu.memory_space<vmem>>, vector<1x512x128xf32>
    %159 = vector.shape_cast %158 : vector<1x512x128xf32> to vector<512x128xf32>
    %cst_52 = arith.constant dense<0.000000e+00> : vector<4x128xf32>
    %160 = tpu.matmul %155, %159, %cst_52 {dimension_numbers = #tpu.dot_dimension_numbers<[1], [0], [0], [1], [0, 0, 1, 1], [], []>} : vector<4x512xf32>, vector<512x128xf32>, vector<4x128xf32> -> vector<4x128xf32>
    %c1_53 = arith.constant 1 : index
    %c0_54 = arith.constant 0 : index
    %c0_55 = arith.constant 0 : index
    %161 = vector.load %arg6[%c1_53, %c0_54, %c0_55] : memref<3x512x128xf32, #tpu.memory_space<vmem>>, vector<1x512x128xf32>
    %162 = vector.shape_cast %161 : vector<1x512x128xf32> to vector<512x128xf32>
    %cst_56 = arith.constant dense<0.000000e+00> : vector<4x128xf32>
    %163 = tpu.matmul %148, %162, %cst_56 {dimension_numbers = #tpu.dot_dimension_numbers<[1], [0], [0], [1], [0, 0, 1, 1], [], []>} : vector<4x512xf32>, vector<512x128xf32>, vector<4x128xf32> -> vector<4x128xf32>
    %164 = arith.addf %160, %163 : vector<4x128xf32>
    %c2_57 = arith.constant 2 : index
    %c0_58 = arith.constant 0 : index
    %c0_59 = arith.constant 0 : index
    %165 = vector.load %arg6[%c2_57, %c0_58, %c0_59] : memref<3x512x128xf32, #tpu.memory_space<vmem>>, vector<1x512x128xf32>
    %166 = vector.shape_cast %165 : vector<1x512x128xf32> to vector<512x128xf32>
    %cst_60 = arith.constant dense<0.000000e+00> : vector<4x128xf32>
    %167 = tpu.matmul %157, %166, %cst_60 {dimension_numbers = #tpu.dot_dimension_numbers<[1], [0], [0], [1], [0, 0, 1, 1], [], []>} : vector<4x512xf32>, vector<512x128xf32>, vector<4x128xf32> -> vector<4x128xf32>
    %168 = arith.addf %164, %167 : vector<4x128xf32>
    %c0_61 = arith.constant 0 : index
    %c0_62 = arith.constant 0 : index
    %169 = vector.load %arg7[%c0_61, %c0_62] : memref<1x128xf32, #tpu.memory_space<vmem>>, vector<1x128xf32>
    %170 = vector.broadcast %169 : vector<1x128xf32> to vector<4x128xf32>
    %171 = arith.addf %168, %170 : vector<4x128xf32>
    %cst_63 = arith.constant 0.000000e+00 : f32
    %172 = vector.broadcast %cst_63 : f32 to vector<4x128xf32>
    %173 = arith.maximumf %171, %172 : vector<4x128xf32>
    %174 = vector.extract_strided_slice %173 {offsets = [0, 0], sizes = [1, 128], strides = [1, 1]} : vector<4x128xf32> to vector<1x128xf32>
    %c0_i32_64 = arith.constant 0 : i32
    %175 = vector.broadcast %c0_i32_64 : i32 to vector<1x128xi32>
    %176 = vector.extract_strided_slice %173 {offsets = [1, 0], sizes = [1, 128], strides = [1, 1]} : vector<4x128xf32> to vector<1x128xf32>
    %177 = arith.cmpf ogt, %176, %174 : vector<1x128xf32>
    %178 = arith.select %177, %176, %174 : vector<1x128xi1>, vector<1x128xf32>
    %c1_i32_65 = arith.constant 1 : i32
    %179 = vector.broadcast %c1_i32_65 : i32 to vector<1x128xi32>
    %180 = arith.select %177, %179, %175 : vector<1x128xi1>, vector<1x128xi32>
    %181 = vector.extract_strided_slice %173 {offsets = [2, 0], sizes = [1, 128], strides = [1, 1]} : vector<4x128xf32> to vector<1x128xf32>
    %c2_i32_66 = arith.constant 2 : i32
    %182 = vector.broadcast %c2_i32_66 : i32 to vector<1x128xi32>
    %183 = vector.extract_strided_slice %173 {offsets = [3, 0], sizes = [1, 128], strides = [1, 1]} : vector<4x128xf32> to vector<1x128xf32>
    %184 = arith.cmpf ogt, %183, %181 : vector<1x128xf32>
    %185 = arith.select %184, %183, %181 : vector<1x128xi1>, vector<1x128xf32>
    %c3_i32_67 = arith.constant 3 : i32
    %186 = vector.broadcast %c3_i32_67 : i32 to vector<1x128xi32>
    %187 = arith.select %184, %186, %182 : vector<1x128xi1>, vector<1x128xi32>
    %188 = tpu.concatenate %178, %185 in 0 : vector<1x128xf32>, vector<1x128xf32> -> vector<2x128xf32>
    %189 = tpu.concatenate %180, %187 in 0 : vector<1x128xi32>, vector<1x128xi32> -> vector<2x128xi32>
    %c0_68 = arith.constant 0 : index
    %c0_69 = arith.constant 0 : index
    %c0_70 = arith.constant 0 : index
    %190 = vector.load %arg15[%c0_68, %c0_69, %c0_70] : memref<1x2x128xi32, #tpu.memory_space<vmem>>, vector<1x2x128xi32>
    %191 = vector.shape_cast %190 : vector<1x2x128xi32> to vector<2x128xi32>
    %192 = vector.shape_cast %189 : vector<2x128xi32> to vector<1x2x128xi32>
    tpu.vector_store %arg15[%c0_68, %c0_69, %c0_70], %192 {strides = array<i32>} : memref<1x2x128xi32, #tpu.memory_space<vmem>>, vector<1x2x128xi32>,
    %cst_71 = arith.constant 0.000000e+00 : f32
    %193 = vector.broadcast %cst_71 : f32 to vector<1x128xf32>
    %194 = vector.extract_strided_slice %188 {offsets = [0, 0], sizes = [1, 128], strides = [1, 1]} : vector<2x128xf32> to vector<1x128xf32>
    %195 = tpu.concatenate %193, %194 in 0 : vector<1x128xf32>, vector<1x128xf32> -> vector<2x128xf32>
    %196 = vector.extract_strided_slice %188 {offsets = [1, 0], sizes = [1, 128], strides = [1, 1]} : vector<2x128xf32> to vector<1x128xf32>
    %197 = tpu.concatenate %196, %193 in 0 : vector<1x128xf32>, vector<1x128xf32> -> vector<2x128xf32>
    %c0_72 = arith.constant 0 : index
    %c0_73 = arith.constant 0 : index
    %c0_74 = arith.constant 0 : index
    %198 = vector.load %arg8[%c0_72, %c0_73, %c0_74] : memref<3x128x128xf32, #tpu.memory_space<vmem>>, vector<1x128x128xf32>
    %199 = vector.shape_cast %198 : vector<1x128x128xf32> to vector<128x128xf32>
    %cst_75 = arith.constant dense<0.000000e+00> : vector<2x128xf32>
    %200 = tpu.matmul %195, %199, %cst_75 {dimension_numbers = #tpu.dot_dimension_numbers<[1], [0], [0], [1], [0, 0, 1, 1], [], []>} : vector<2x128xf32>, vector<128x128xf32>, vector<2x128xf32> -> vector<2x128xf32>
    %c1_76 = arith.constant 1 : index
    %c0_77 = arith.constant 0 : index
    %c0_78 = arith.constant 0 : index
    %201 = vector.load %arg8[%c1_76, %c0_77, %c0_78] : memref<3x128x128xf32, #tpu.memory_space<vmem>>, vector<1x128x128xf32>
    %202 = vector.shape_cast %201 : vector<1x128x128xf32> to vector<128x128xf32>
    %cst_79 = arith.constant dense<0.000000e+00> : vector<2x128xf32>
    %203 = tpu.matmul %188, %202, %cst_79 {dimension_numbers = #tpu.dot_dimension_numbers<[1], [0], [0], [1], [0, 0, 1, 1], [], []>} : vector<2x128xf32>, vector<128x128xf32>, vector<2x128xf32> -> vector<2x128xf32>
    %204 = arith.addf %200, %203 : vector<2x128xf32>
    %c2_80 = arith.constant 2 : index
    %c0_81 = arith.constant 0 : index
    %c0_82 = arith.constant 0 : index
    %205 = vector.load %arg8[%c2_80, %c0_81, %c0_82] : memref<3x128x128xf32, #tpu.memory_space<vmem>>, vector<1x128x128xf32>
    %206 = vector.shape_cast %205 : vector<1x128x128xf32> to vector<128x128xf32>
    %cst_83 = arith.constant dense<0.000000e+00> : vector<2x128xf32>
    %207 = tpu.matmul %197, %206, %cst_83 {dimension_numbers = #tpu.dot_dimension_numbers<[1], [0], [0], [1], [0, 0, 1, 1], [], []>} : vector<2x128xf32>, vector<128x128xf32>, vector<2x128xf32> -> vector<2x128xf32>
    %208 = arith.addf %204, %207 : vector<2x128xf32>
    %c0_84 = arith.constant 0 : index
    %c0_85 = arith.constant 0 : index
    %209 = vector.load %arg9[%c0_84, %c0_85] : memref<1x128xf32, #tpu.memory_space<vmem>>, vector<1x128xf32>
    %210 = vector.broadcast %209 : vector<1x128xf32> to vector<2x128xf32>
    %211 = arith.addf %208, %210 : vector<2x128xf32>
    %cst_86 = arith.constant 0.000000e+00 : f32
    %212 = vector.broadcast %cst_86 : f32 to vector<2x128xf32>
    %213 = arith.maximumf %211, %212 : vector<2x128xf32>
    %214 = vector.extract_strided_slice %213 {offsets = [0, 0], sizes = [1, 128], strides = [1, 1]} : vector<2x128xf32> to vector<1x128xf32>
    %c0_i32_87 = arith.constant 0 : i32
    %215 = vector.broadcast %c0_i32_87 : i32 to vector<1x128xi32>
    %216 = vector.extract_strided_slice %213 {offsets = [1, 0], sizes = [1, 128], strides = [1, 1]} : vector<2x128xf32> to vector<1x128xf32>
    %217 = arith.cmpf ogt, %216, %214 : vector<1x128xf32>
    %218 = arith.select %217, %216, %214 : vector<1x128xi1>, vector<1x128xf32>
    %c1_i32_88 = arith.constant 1 : i32
    %219 = vector.broadcast %c1_i32_88 : i32 to vector<1x128xi32>
    %220 = arith.select %217, %219, %215 : vector<1x128xi1>, vector<1x128xi32>
    %c0_89 = arith.constant 0 : index
    %c0_90 = arith.constant 0 : index
    %c0_91 = arith.constant 0 : index
    %221 = vector.load %arg16[%c0_89, %c0_90, %c0_91] : memref<1x1x128xi32, #tpu.memory_space<vmem>>, vector<1x1x128xi32>
    %222 = vector.shape_cast %221 : vector<1x1x128xi32> to vector<1x128xi32>
    %223 = vector.shape_cast %220 : vector<1x128xi32> to vector<1x1x128xi32>
    tpu.vector_store %arg16[%c0_89, %c0_90, %c0_91], %223 {strides = array<i32>} : memref<1x1x128xi32, #tpu.memory_space<vmem>>, vector<1x1x128xi32>,
    %c0_92 = arith.constant 0 : index
    %c0_93 = arith.constant 0 : index
    %224 = vector.load %arg10[%c0_92, %c0_93] : memref<128x64xf32, #tpu.memory_space<vmem>>, vector<128x64xf32>
    %cst_94 = arith.constant dense<0.000000e+00> : vector<1x64xf32>
    %225 = tpu.matmul %218, %224, %cst_94 {dimension_numbers = #tpu.dot_dimension_numbers<[1], [0], [0], [1], [0, 0, 1, 1], [], []>} : vector<1x128xf32>, vector<128x64xf32>, vector<1x64xf32> -> vector<1x64xf32>
    %c0_95 = arith.constant 0 : index
    %c0_96 = arith.constant 0 : index
    %226 = vector.load %arg11[%c0_95, %c0_96] : memref<1x64xf32, #tpu.memory_space<vmem>>, vector<1x64xf32>
    %227 = arith.addf %225, %226 : vector<1x64xf32>
    %228 = tpu.iota {dimensions = array<i32: 1>} : vector<1x64xi32>
    %cst_97 = arith.constant 0.000000e+00 : f32
    %229 = vector.broadcast %cst_97 : f32 to vector<1x64xf32>
    %230 = arith.maximumf %227, %229 : vector<1x64xf32>
    %231 = math.absf %227 : vector<1x64xf32>
    %cst_98 = arith.constant 0.000000e+00 : f32
    %232 = vector.broadcast %cst_98 : f32 to vector<1x64xf32>
    %233 = arith.subf %232, %231 : vector<1x64xf32>
    %234 = math.exp %233 : vector<1x64xf32>
    %235 = math.log1p %234 : vector<1x64xf32>
    %236 = arith.addf %230, %235 : vector<1x64xf32>
    %cst_99 = arith.constant 1.000000e-07 : f32
    %237 = vector.broadcast %cst_99 : f32 to vector<1x64xf32>
    %238 = arith.addf %236, %237 : vector<1x64xf32>
    %c32_i32 = arith.constant 32 : i32
    %239 = vector.broadcast %c32_i32 : i32 to vector<1x64xi32>
    %240 = arith.cmpi slt, %228, %239 : vector<1x64xi32>
    %241 = arith.select %240, %227, %238 : vector<1x64xi1>, vector<1x64xf32>
    %c0_100 = arith.constant 0 : index
    %c0_101 = arith.constant 0 : index
    %c0_102 = arith.constant 0 : index
    %242 = vector.load %arg12[%c0_100, %c0_101, %c0_102] : memref<1x1x64xf32, #tpu.memory_space<vmem>>, vector<1x1x64xf32>
    %243 = vector.shape_cast %242 : vector<1x1x64xf32> to vector<1x64xf32>
    %244 = vector.shape_cast %241 : vector<1x64xf32> to vector<1x1x64xf32>
    tpu.vector_store %arg12[%c0_100, %c0_101, %c0_102], %244 {strides = array<i32>} : memref<1x1x64xf32, #tpu.memory_space<vmem>>, vector<1x1x64xf32>,
    return
  }
  func.func @transform_0(%arg0: i32) -> (i32, i32, i32) {
    %c0_i32 = arith.constant 0 : i32
    %c0_i32_0 = arith.constant 0 : i32
    %c0_i32_1 = arith.constant 0 : i32
    return %arg0, %c0_i32, %c0_i32_0 : i32, i32, i32
  }
  func.func @transform_1(%arg0: i32) -> (i32, i32, i32) {
    %c0_i32 = arith.constant 0 : i32
    %c0_i32_0 = arith.constant 0 : i32
    %c0_i32_1 = arith.constant 0 : i32
    %c0_i32_2 = arith.constant 0 : i32
    return %c0_i32, %c0_i32_0, %c0_i32_1 : i32, i32, i32
  }
  func.func @transform_2(%arg0: i32) -> (i32, i32) {
    %c0_i32 = arith.constant 0 : i32
    %c0_i32_0 = arith.constant 0 : i32
    %c0_i32_1 = arith.constant 0 : i32
    return %c0_i32, %c0_i32_0 : i32, i32
  }
  func.func @transform_3(%arg0: i32) -> (i32, i32, i32) {
    %c0_i32 = arith.constant 0 : i32
    %c0_i32_0 = arith.constant 0 : i32
    %c0_i32_1 = arith.constant 0 : i32
    %c0_i32_2 = arith.constant 0 : i32
    return %c0_i32, %c0_i32_0, %c0_i32_1 : i32, i32, i32
  }
  func.func @transform_4(%arg0: i32) -> (i32, i32) {
    %c0_i32 = arith.constant 0 : i32
    %c0_i32_0 = arith.constant 0 : i32
    %c0_i32_1 = arith.constant 0 : i32
    return %c0_i32, %c0_i32_0 : i32, i32
  }
  func.func @transform_5(%arg0: i32) -> (i32, i32, i32) {
    %c0_i32 = arith.constant 0 : i32
    %c0_i32_0 = arith.constant 0 : i32
    %c0_i32_1 = arith.constant 0 : i32
    %c0_i32_2 = arith.constant 0 : i32
    return %c0_i32, %c0_i32_0, %c0_i32_1 : i32, i32, i32
  }
  func.func @transform_6(%arg0: i32) -> (i32, i32) {
    %c0_i32 = arith.constant 0 : i32
    %c0_i32_0 = arith.constant 0 : i32
    %c0_i32_1 = arith.constant 0 : i32
    return %c0_i32, %c0_i32_0 : i32, i32
  }
  func.func @transform_7(%arg0: i32) -> (i32, i32, i32) {
    %c0_i32 = arith.constant 0 : i32
    %c0_i32_0 = arith.constant 0 : i32
    %c0_i32_1 = arith.constant 0 : i32
    %c0_i32_2 = arith.constant 0 : i32
    return %c0_i32, %c0_i32_0, %c0_i32_1 : i32, i32, i32
  }
  func.func @transform_8(%arg0: i32) -> (i32, i32) {
    %c0_i32 = arith.constant 0 : i32
    %c0_i32_0 = arith.constant 0 : i32
    %c0_i32_1 = arith.constant 0 : i32
    return %c0_i32, %c0_i32_0 : i32, i32
  }
  func.func @transform_9(%arg0: i32) -> (i32, i32) {
    %c0_i32 = arith.constant 0 : i32
    %c0_i32_0 = arith.constant 0 : i32
    %c0_i32_1 = arith.constant 0 : i32
    return %c0_i32, %c0_i32_0 : i32, i32
  }
  func.func @transform_10(%arg0: i32) -> (i32, i32) {
    %c0_i32 = arith.constant 0 : i32
    %c0_i32_0 = arith.constant 0 : i32
    %c0_i32_1 = arith.constant 0 : i32
    return %c0_i32, %c0_i32_0 : i32, i32
  }
  func.func @transform_11(%arg0: i32) -> (i32, i32, i32) {
    %c0_i32 = arith.constant 0 : i32
    %c0_i32_0 = arith.constant 0 : i32
    %c0_i32_1 = arith.constant 0 : i32
    return %arg0, %c0_i32, %c0_i32_0 : i32, i32, i32
  }
  func.func @transform_12(%arg0: i32) -> (i32, i32, i32) {
    %c0_i32 = arith.constant 0 : i32
    %c0_i32_0 = arith.constant 0 : i32
    %c0_i32_1 = arith.constant 0 : i32
    return %arg0, %c0_i32, %c0_i32_0 : i32, i32, i32
  }
  func.func @transform_13(%arg0: i32) -> (i32, i32, i32) {
    %c0_i32 = arith.constant 0 : i32
    %c0_i32_0 = arith.constant 0 : i32
    %c0_i32_1 = arith.constant 0 : i32
    return %arg0, %c0_i32, %c0_i32_0 : i32, i32, i32
  }
  func.func @transform_14(%arg0: i32) -> (i32, i32, i32) {
    %c0_i32 = arith.constant 0 : i32
    %c0_i32_0 = arith.constant 0 : i32
    %c0_i32_1 = arith.constant 0 : i32
    return %arg0, %c0_i32, %c0_i32_0 : i32, i32, i32
  }
  func.func @transform_15(%arg0: i32) -> (i32, i32, i32) {
    %c0_i32 = arith.constant 0 : i32
    %c0_i32_0 = arith.constant 0 : i32
    %c0_i32_1 = arith.constant 0 : i32
    return %arg0, %c0_i32, %c0_i32_0 : i32, i32, i32
  }
}

</mosaic_0001>

<llo_original>
// kernel: tpu_custom_call.1
$region0: #{tpu_custom_call.1}
  #allocation0 [shape = 'u32[]', space=smem, size = 0x4, offset = 0x4, fixed_abs, tag = 'smem constant byte address 0x4 - core index']
  #allocation1 [shape = 'u32[144,128]{1,0:T(1,128)}', space=vmem, size = 0x12000, scoped, tag = 'internal scratch']
  %s0 = inlined_call_operand.vmem [shape: f32[2,16,4], index: 0, kind: input, shape index: {}]
  %s1 = inlined_call_operand.hbm [shape: f32[3,4,512], index: 1, kind: input, shape index: {}]
  %s2 = inlined_call_operand.hbm [shape: f32[1,512], index: 2, kind: input, shape index: {}]
  %s3 = inlined_call_operand.hbm [shape: f32[3,512,512], index: 3, kind: input, shape index: {}]
  %s4 = inlined_call_operand.hbm [shape: f32[1,512], index: 4, kind: input, shape index: {}]
  %s5 = inlined_call_operand.hbm [shape: f32[3,512,128], index: 5, kind: input, shape index: {}]
  %s6 = inlined_call_operand.hbm [shape: f32[1,128], index: 6, kind: input, shape index: {}]
  %s7 = inlined_call_operand.hbm [shape: f32[3,128,128], index: 7, kind: input, shape index: {}]
  %s8 = inlined_call_operand.hbm [shape: f32[1,128], index: 8, kind: input, shape index: {}]
  %s9 = inlined_call_operand.vmem [shape: f32[128,64], index: 9, kind: input, shape index: {}]
  %s10 = inlined_call_operand.hbm [shape: f32[1,64], index: 10, kind: input, shape index: {}]
  %s11 = inlined_call_operand.hbm [shape: f32[2,1,64], index: 11, kind: output, shape index: {0}]
  %s12 = inlined_call_operand.hbm [shape: s32[2,8,512], index: 12, kind: output, shape index: {1}]
  %s13 = inlined_call_operand.hbm [shape: s32[2,4,512], index: 13, kind: output, shape index: {2}]
  %s14 = inlined_call_operand.hbm [shape: s32[2,2,128], index: 14, kind: output, shape index: {3}]
  %s15 = inlined_call_operand.hbm [shape: s32[2,1,128], index: 15, kind: output, shape index: {4}]
  %16 = xla_tuple %s11, %s12, %s13, %s14, %s15
  %s17 = sld [smem:[#allocation0]]
  $region145: #{tpu_custom_call.1} parent=0
    _
  %s19 = ssub.s32 1, %s17
  %s20 = scalar_select 0, %s19, %s17
  $region1: #{tpu_custom_call.1} parent=0
    #allocation2 [shape = 'u8[24576]{0}', space=vmem, size = 0x6000, scoped, tag = 'input window, operand 1, single buffered']
    #allocation3 [shape = 's32[2]{0}', space=sflag, size = 0x8, scoped, tag = 'scoped memory for tpu_custom_call.1']
    #allocation4 [shape = 's32[2]{0}', space=sflag, size = 0x8, scoped, tag = 'scoped memory for tpu_custom_call.1']
    #allocation5 [shape = 'u8[2048]{0}', space=vmem, size = 0x800, scoped, tag = 'input window, operand 2, single buffered']
    #allocation6 [shape = 's32[1]{0}', space=sflag, size = 0x4, scoped, tag = 'scoped memory for tpu_custom_call.1']
    #allocation7 [shape = 'u8[3145728]{0}', space=vmem, size = 0x300000, scoped, tag = 'input window, operand 3, single buffered']
    #allocation8 [shape = 'u8[2048]{0}', space=vmem, size = 0x800, scoped, tag = 'input window, operand 4, single buffered']
    #allocation9 [shape = 's32[1]{0}', space=sflag, size = 0x4, scoped, tag = 'scoped memory for tpu_custom_call.1']
    #allocation10 [shape = 'u8[786432]{0}', space=vmem, size = 0xc0000, scoped, tag = 'input window, operand 5, single buffered']
    #allocation11 [shape = 'u8[512]{0}', space=vmem, size = 0x400, scoped, tag = 'input window, operand 6, single buffered']
    #allocation12 [shape = 's32[1]{0}', space=sflag, size = 0x4, scoped, tag = 'scoped memory for tpu_custom_call.1']
    #allocation13 [shape = 'u8[196608]{0}', space=vmem, size = 0x30000, scoped, tag = 'input window, operand 7, single buffered']
    #allocation14 [shape = 'u8[512]{0}', space=vmem, size = 0x400, scoped, tag = 'input window, operand 8, single buffered']
    #allocation15 [shape = 's32[1]{0}', space=sflag, size = 0x4, scoped, tag = 'scoped memory for tpu_custom_call.1']
    #allocation16 [shape = 'u8[512]{0}', space=vmem, size = 0x400, scoped, tag = 'input window, operand 10, single buffered']
    #allocation17 [shape = 'u8[1024]{0}', space=vmem, size = 0x400, scoped, tag = 'output window, operand 0']
    #allocation18 [shape = 'u8[32768]{0}', space=vmem, size = 0x8000, scoped, tag = 'output window, operand 1']
    #allocation19 [shape = 's32[2]{0}', space=sflag, size = 0x8, scoped, tag = 'scoped memory for tpu_custom_call.1']
    #allocation20 [shape = 'u8[16384]{0}', space=vmem, size = 0x4000, scoped, tag = 'output window, operand 2']
    #allocation21 [shape = 'u8[2048]{0}', space=vmem, size = 0x800, scoped, tag = 'output window, operand 3']
    #allocation22 [shape = 's32[2]{0}', space=sflag, size = 0x8, scoped, tag = 'scoped memory for tpu_custom_call.1']
    #allocation23 [shape = 'u8[1024]{0}', space=vmem, size = 0x400, scoped, tag = 'output window, operand 4']
    %21 = vsyncpa [#allocation3], 0
    %22 = vsyncpa [#allocation6], 0
    %23 = vsyncpa [#allocation9], 0
    %24 = vsyncpa [#allocation12], 0
    %25 = vsyncpa [#allocation15], 0
    %26 = vsyncpa [#allocation4], 0
    %s27 = scalar_lea.sflag [#allocation4], 1
    %28 = vsyncpa %s27, 0
    %29 = vsyncpa [#allocation19], 0
    %s30 = scalar_lea.sflag [#allocation19], 1
    %31 = vsyncpa %s30, 0
    %32 = vsyncpa [#allocation22], 0
    %s33 = scalar_lea.sflag [#allocation22], 1
    %34 = vsyncpa %s33, 0
    loop: start=0, step=1, limit=4
    $region2: #{tpu_custom_call.1} parent=1 // loop_pre_header
      _
    $region3: #{tpu_custom_call.1} parent=1 // loop_header
      %s36 = sphi 0, %s40
      %p37 = scmp.ge.s32.totalorder %s36, 4
      %s46 = sphi 0, %s48
      %s49 = sphi 0, %s46
      %s50 = sphi 0, %s49
      %s66 = sphi 0, %s50
      %s70 = sphi 0, %s70
      %s72 = sphi 0, %s70
      %s73 = sphi 0, %s72
      %s87 = sphi 0, %s73
      %s91 = sphi 0, %s91
      %s93 = sphi 0, %s91
      %s94 = sphi 0, %s93
      %s108 = sphi 0, %s94
      %s112 = sphi 0, %s112
      %s114 = sphi 0, %s112
      %s115 = sphi 0, %s114
      %s129 = sphi 0, %s115
      %s133 = sphi 0, %s133
      %s135 = sphi 0, %s133
      %s136 = sphi 0, %s135
      %s150 = sphi 0, %s136
      %s154 = sphi 0, %s154
      %s156 = sphi 0, %s154
      %s157 = sphi 0, %s156
      %s171 = sphi 0, %s157
      %s175 = sphi 0, %s175
      %s177 = sphi 0, %s175
      %s178 = sphi 0, %s177
      %s192 = sphi 0, %s178
      %s196 = sphi 0, %s196
      %s198 = sphi 0, %s196
      %s199 = sphi 0, %s198
      %s213 = sphi 0, %s199
      %s217 = sphi 0, %s217
      %s219 = sphi 0, %s217
      %s220 = sphi 0, %s219
      %s234 = sphi 0, %s220
      %s238 = sphi 0, %s238
      %s240 = sphi 0, %s238
      %s241 = sphi 0, %s240
      %s255 = sphi 0, %s241
      %s259 = sphi 0, %s259
      %s261 = sphi 0, %s259
      %s262 = sphi 0, %s261
      %s276 = sphi 0, %s262
      %s282 = sphi 0, %s284
      %s285 = sphi 0, %s282
      %s286 = sphi 0, %s285
      %s302 = sphi 0, %s286
      %s308 = sphi 0, %s310
      %s311 = sphi 0, %s308
      %s312 = sphi 0, %s311
      %s328 = sphi 0, %s312
      %s334 = sphi 0, %s336
      %s337 = sphi 0, %s334
      %s338 = sphi 0, %s337
      %s354 = sphi 0, %s338
      %s360 = sphi 0, %s362
      %s363 = sphi 0, %s360
      %s364 = sphi 0, %s363
      %s380 = sphi 0, %s364
      %s386 = sphi 0, %s388
      %s389 = sphi 0, %s386
      %s390 = sphi 0, %s389
      %s406 = sphi 0, %s390
    $region4: #{tpu_custom_call.1} parent=1 // loop_header_branch
      %39 = sbr.rel (%p37) target = $region8
    $region5: #{tpu_custom_call.1} parent=1 // loop_body
      %s41 = ssub.s32 %s36, 1
      %s42 = ssub.s32 %s36, 2
      %s43 = sadd.s32 %s36, 1
      %s44 = ssub.s32 %s36, %s43
      %p45 = scmp.eq.s32.totalorder %s44, 0
      %s47 = sadd.s32 %s46, 1
      %s48 = scalar_select %p45, %s46, %s47
      %p51 = pneg %p45
      %p52 = scmp.eq.s32.totalorder %s36, 1
      %p53 = por %p51, %p52
      %p54 = scmp.ne.s32.totalorder %s46, %s49
      %p55 = scmp.eq.s32.totalorder %s36, 0
      %p56 = por %p54, %p55
      %p57 = scmp.ne.s32.totalorder %s46, %s49
      %p58 = scmp.eq.s32.totalorder %s41, 1
      %p59 = por %p57, %p58
      %p60 = scmp.ne.s32.totalorder %s49, %s50
      %p61 = scmp.eq.s32.totalorder %s41, 0
      %p62 = por %p60, %p61
      %p63 = scmp.ne.s32.totalorder %s49, %s50
      %p64 = scmp.eq.s32.totalorder %s42, 1
      %p65 = por %p63, %p64
      %p67 = scmp.ne.s32.totalorder %s50, %s66
      %p68 = scmp.eq.s32.totalorder %s42, 0
      %p69 = por %p67, %p68
      %s71 = sadd.s32 %s70, 1
      %p74 = scmp.eq.s32.totalorder %s36, 1
      %p75 = scmp.ne.s32.totalorder %s70, %s72
      %p76 = scmp.eq.s32.totalorder %s36, 0
      %p77 = por %p75, %p76
      %p78 = scmp.ne.s32.totalorder %s70, %s72
      %p79 = scmp.eq.s32.totalorder %s41, 1
      %p80 = por %p78, %p79
      %p81 = scmp.ne.s32.totalorder %s72, %s73
      %p82 = scmp.eq.s32.totalorder %s41, 0
      %p83 = por %p81, %p82
      %p84 = scmp.ne.s32.totalorder %s72, %s73
      %p85 = scmp.eq.s32.totalorder %s42, 1
      %p86 = por %p84, %p85
      %p88 = scmp.ne.s32.totalorder %s73, %s87
      %p89 = scmp.eq.s32.totalorder %s42, 0
      %p90 = por %p88, %p89
      %s92 = sadd.s32 %s91, 1
      %p95 = scmp.eq.s32.totalorder %s36, 1
      %p96 = scmp.ne.s32.totalorder %s91, %s93
      %p97 = scmp.eq.s32.totalorder %s36, 0
      %p98 = por %p96, %p97
      %p99 = scmp.ne.s32.totalorder %s91, %s93
      %p100 = scmp.eq.s32.totalorder %s41, 1
      %p101 = por %p99, %p100
      %p102 = scmp.ne.s32.totalorder %s93, %s94
      %p103 = scmp.eq.s32.totalorder %s41, 0
      %p104 = por %p102, %p103
      %p105 = scmp.ne.s32.totalorder %s93, %s94
      %p106 = scmp.eq.s32.totalorder %s42, 1
      %p107 = por %p105, %p106
      %p109 = scmp.ne.s32.totalorder %s94, %s108
      %p110 = scmp.eq.s32.totalorder %s42, 0
      %p111 = por %p109, %p110
      %s113 = sadd.s32 %s112, 1
      %p116 = scmp.eq.s32.totalorder %s36, 1
      %p117 = scmp.ne.s32.totalorder %s112, %s114
      %p118 = scmp.eq.s32.totalorder %s36, 0
      %p119 = por %p117, %p118
      %p120 = scmp.ne.s32.totalorder %s112, %s114
      %p121 = scmp.eq.s32.totalorder %s41, 1
      %p122 = por %p120, %p121
      %p123 = scmp.ne.s32.totalorder %s114, %s115
      %p124 = scmp.eq.s32.totalorder %s41, 0
      %p125 = por %p123, %p124
      %p126 = scmp.ne.s32.totalorder %s114, %s115
      %p127 = scmp.eq.s32.totalorder %s42, 1
      %p128 = por %p126, %p127
      %p130 = scmp.ne.s32.totalorder %s115, %s129
      %p131 = scmp.eq.s32.totalorder %s42, 0
      %p132 = por %p130, %p131
      %s134 = sadd.s32 %s133, 1
      %p137 = scmp.eq.s32.totalorder %s36, 1
      %p138 = scmp.ne.s32.totalorder %s133, %s135
      %p139 = scmp.eq.s32.totalorder %s36, 0
      %p140 = por %p138, %p139
      %p141 = scmp.ne.s32.totalorder %s133, %s135
      %p142 = scmp.eq.s32.totalorder %s41, 1
      %p143 = por %p141, %p142
      %p144 = scmp.ne.s32.totalorder %s135, %s136
      %p145 = scmp.eq.s32.totalorder %s41, 0
      %p146 = por %p144, %p145
      %p147 = scmp.ne.s32.totalorder %s135, %s136
      %p148 = scmp.eq.s32.totalorder %s42, 1
      %p149 = por %p147, %p148
      %p151 = scmp.ne.s32.totalorder %s136, %s150
      %p152 = scmp.eq.s32.totalorder %s42, 0
      %p153 = por %p151, %p152
      %s155 = sadd.s32 %s154, 1
      %p158 = scmp.eq.s32.totalorder %s36, 1
      %p159 = scmp.ne.s32.totalorder %s154, %s156
      %p160 = scmp.eq.s32.totalorder %s36, 0
      %p161 = por %p159, %p160
      %p162 = scmp.ne.s32.totalorder %s154, %s156
      %p163 = scmp.eq.s32.totalorder %s41, 1
      %p164 = por %p162, %p163
      %p165 = scmp.ne.s32.totalorder %s156, %s157
      %p166 = scmp.eq.s32.totalorder %s41, 0
      %p167 = por %p165, %p166
      %p168 = scmp.ne.s32.totalorder %s156, %s157
      %p169 = scmp.eq.s32.totalorder %s42, 1
      %p170 = por %p168, %p169
      %p172 = scmp.ne.s32.totalorder %s157, %s171
      %p173 = scmp.eq.s32.totalorder %s42, 0
      %p174 = por %p172, %p173
      %s176 = sadd.s32 %s175, 1
      %p179 = scmp.eq.s32.totalorder %s36, 1
      %p180 = scmp.ne.s32.totalorder %s175, %s177
      %p181 = scmp.eq.s32.totalorder %s36, 0
      %p182 = por %p180, %p181
      %p183 = scmp.ne.s32.totalorder %s175, %s177
      %p184 = scmp.eq.s32.totalorder %s41, 1
      %p185 = por %p183, %p184
      %p186 = scmp.ne.s32.totalorder %s177, %s178
      %p187 = scmp.eq.s32.totalorder %s41, 0
      %p188 = por %p186, %p187
      %p189 = scmp.ne.s32.totalorder %s177, %s178
      %p190 = scmp.eq.s32.totalorder %s42, 1
      %p191 = por %p189, %p190
      %p193 = scmp.ne.s32.totalorder %s178, %s192
      %p194 = scmp.eq.s32.totalorder %s42, 0
      %p195 = por %p193, %p194
      %s197 = sadd.s32 %s196, 1
      %p200 = scmp.eq.s32.totalorder %s36, 1
      %p201 = scmp.ne.s32.totalorder %s196, %s198
      %p202 = scmp.eq.s32.totalorder %s36, 0
      %p203 = por %p201, %p202
      %p204 = scmp.ne.s32.totalorder %s196, %s198
      %p205 = scmp.eq.s32.totalorder %s41, 1
      %p206 = por %p204, %p205
      %p207 = scmp.ne.s32.totalorder %s198, %s199
      %p208 = scmp.eq.s32.totalorder %s41, 0
      %p209 = por %p207, %p208
      %p210 = scmp.ne.s32.totalorder %s198, %s199
      %p211 = scmp.eq.s32.totalorder %s42, 1
      %p212 = por %p210, %p211
      %p214 = scmp.ne.s32.totalorder %s199, %s213
      %p215 = scmp.eq.s32.totalorder %s42, 0
      %p216 = por %p214, %p215
      %s218 = sadd.s32 %s217, 1
      %p221 = scmp.eq.s32.totalorder %s36, 1
      %p222 = scmp.ne.s32.totalorder %s217, %s219
      %p223 = scmp.eq.s32.totalorder %s36, 0
      %p224 = por %p222, %p223
      %p225 = scmp.ne.s32.totalorder %s217, %s219
      %p226 = scmp.eq.s32.totalorder %s41, 1
      %p227 = por %p225, %p226
      %p228 = scmp.ne.s32.totalorder %s219, %s220
      %p229 = scmp.eq.s32.totalorder %s41, 0
      %p230 = por %p228, %p229
      %p231 = scmp.ne.s32.totalorder %s219, %s220
      %p232 = scmp.eq.s32.totalorder %s42, 1
      %p233 = por %p231, %p232
      %p235 = scmp.ne.s32.totalorder %s220, %s234
      %p236 = scmp.eq.s32.totalorder %s42, 0
      %p237 = por %p235, %p236
      %s239 = sadd.s32 %s238, 1
      %p242 = scmp.eq.s32.totalorder %s36, 1
      %p243 = scmp.ne.s32.totalorder %s238, %s240
      %p244 = scmp.eq.s32.totalorder %s36, 0
      %p245 = por %p243, %p244
      %p246 = scmp.ne.s32.totalorder %s238, %s240
      %p247 = scmp.eq.s32.totalorder %s41, 1
      %p248 = por %p246, %p247
      %p249 = scmp.ne.s32.totalorder %s240, %s241
      %p250 = scmp.eq.s32.totalorder %s41, 0
      %p251 = por %p249, %p250
      %p252 = scmp.ne.s32.totalorder %s240, %s241
      %p253 = scmp.eq.s32.totalorder %s42, 1
      %p254 = por %p252, %p253
      %p256 = scmp.ne.s32.totalorder %s241, %s255
      %p257 = scmp.eq.s32.totalorder %s42, 0
      %p258 = por %p256, %p257
      %s260 = sadd.s32 %s259, 1
      %p263 = scmp.eq.s32.totalorder %s36, 1
      %p264 = scmp.ne.s32.totalorder %s259, %s261
      %p265 = scmp.eq.s32.totalorder %s36, 0
      %p266 = por %p264, %p265
      %p267 = scmp.ne.s32.totalorder %s259, %s261
      %p268 = scmp.eq.s32.totalorder %s41, 1
      %p269 = por %p267, %p268
      %p270 = scmp.ne.s32.totalorder %s261, %s262
      %p271 = scmp.eq.s32.totalorder %s41, 0
      %p272 = por %p270, %p271
      %p273 = scmp.ne.s32.totalorder %s261, %s262
      %p274 = scmp.eq.s32.totalorder %s42, 1
      %p275 = por %p273, %p274
      %p277 = scmp.ne.s32.totalorder %s262, %s276
      %p278 = scmp.eq.s32.totalorder %s42, 0
      %p279 = por %p277, %p278
      %s280 = ssub.s32 %s36, %s43
      %p281 = scmp.eq.s32.totalorder %s280, 0
      %s283 = sadd.s32 %s282, 1
      %s284 = scalar_select %p281, %s282, %s283
      %p287 = pneg %p281
      %p288 = scmp.eq.s32.totalorder %s36, 1
      %p289 = por %p287, %p288
      %p290 = scmp.ne.s32.totalorder %s282, %s285
      %p291 = scmp.eq.s32.totalorder %s36, 0
      %p292 = por %p290, %p291
      %p293 = scmp.ne.s32.totalorder %s282, %s285
      %p294 = scmp.eq.s32.totalorder %s41, 1
      %p295 = por %p293, %p294
      %p296 = scmp.ne.s32.totalorder %s285, %s286
      %p297 = scmp.eq.s32.totalorder %s41, 0
      %p298 = por %p296, %p297
      %p299 = scmp.ne.s32.totalorder %s285, %s286
      %p300 = scmp.eq.s32.totalorder %s42, 1
      %p301 = por %p299, %p300
      %p303 = scmp.ne.s32.totalorder %s286, %s302
      %p304 = scmp.eq.s32.totalorder %s42, 0
      %p305 = por %p303, %p304
      %s306 = ssub.s32 %s36, %s43
      %p307 = scmp.eq.s32.totalorder %s306, 0
      %s309 = sadd.s32 %s308, 1
      %s310 = scalar_select %p307, %s308, %s309
      %p313 = pneg %p307
      %p314 = scmp.eq.s32.totalorder %s36, 1
      %p315 = por %p313, %p314
      %p316 = scmp.ne.s32.totalorder %s308, %s311
      %p317 = scmp.eq.s32.totalorder %s36, 0
      %p318 = por %p316, %p317
      %p319 = scmp.ne.s32.totalorder %s308, %s311
      %p320 = scmp.eq.s32.totalorder %s41, 1
      %p321 = por %p319, %p320
      %p322 = scmp.ne.s32.totalorder %s311, %s312
      %p323 = scmp.eq.s32.totalorder %s41, 0
      %p324 = por %p322, %p323
      %p325 = scmp.ne.s32.totalorder %s311, %s312
      %p326 = scmp.eq.s32.totalorder %s42, 1
      %p327 = por %p325, %p326
      %p329 = scmp.ne.s32.totalorder %s312, %s328
      %p330 = scmp.eq.s32.totalorder %s42, 0
      %p331 = por %p329, %p330
      %s332 = ssub.s32 %s36, %s43
      %p333 = scmp.eq.s32.totalorder %s332, 0
      %s335 = sadd.s32 %s334, 1
      %s336 = scalar_select %p333, %s334, %s335
      %p339 = pneg %p333
      %p340 = scmp.eq.s32.totalorder %s36, 1
      %p341 = por %p339, %p340
      %p342 = scmp.ne.s32.totalorder %s334, %s337
      %p343 = scmp.eq.s32.totalorder %s36, 0
      %p344 = por %p342, %p343
      %p345 = scmp.ne.s32.totalorder %s334, %s337
      %p346 = scmp.eq.s32.totalorder %s41, 1
      %p347 = por %p345, %p346
      %p348 = scmp.ne.s32.totalorder %s337, %s338
      %p349 = scmp.eq.s32.totalorder %s41, 0
      %p350 = por %p348, %p349
      %p351 = scmp.ne.s32.totalorder %s337, %s338
      %p352 = scmp.eq.s32.totalorder %s42, 1
      %p353 = por %p351, %p352
      %p355 = scmp.ne.s32.totalorder %s338, %s354
      %p356 = scmp.eq.s32.totalorder %s42, 0
      %p357 = por %p355, %p356
      %s358 = ssub.s32 %s36, %s43
      %p359 = scmp.eq.s32.totalorder %s358, 0
      %s361 = sadd.s32 %s360, 1
      %s362 = scalar_select %p359, %s360, %s361
      %p365 = pneg %p359
      %p366 = scmp.eq.s32.totalorder %s36, 1
      %p367 = por %p365, %p366
      %p368 = scmp.ne.s32.totalorder %s360, %s363
      %p369 = scmp.eq.s32.totalorder %s36, 0
      %p370 = por %p368, %p369
      %p371 = scmp.ne.s32.totalorder %s360, %s363
      %p372 = scmp.eq.s32.totalorder %s41, 1
      %p373 = por %p371, %p372
      %p374 = scmp.ne.s32.totalorder %s363, %s364
      %p375 = scmp.eq.s32.totalorder %s41, 0
      %p376 = por %p374, %p375
      %p377 = scmp.ne.s32.totalorder %s363, %s364
      %p378 = scmp.eq.s32.totalorder %s42, 1
      %p379 = por %p377, %p378
      %p381 = scmp.ne.s32.totalorder %s364, %s380
      %p382 = scmp.eq.s32.totalorder %s42, 0
      %p383 = por %p381, %p382
      %s384 = ssub.s32 %s36, %s43
      %p385 = scmp.eq.s32.totalorder %s384, 0
      %s387 = sadd.s32 %s386, 1
      %s388 = scalar_select %p385, %s386, %s387
      %p391 = pneg %p385
      %p392 = scmp.eq.s32.totalorder %s36, 1
      %p393 = por %p391, %p392
      %p394 = scmp.ne.s32.totalorder %s386, %s389
      %p395 = scmp.eq.s32.totalorder %s36, 0
      %p396 = por %p394, %p395
      %p397 = scmp.ne.s32.totalorder %s386, %s389
      %p398 = scmp.eq.s32.totalorder %s41, 1
      %p399 = por %p397, %p398
      %p400 = scmp.ne.s32.totalorder %s389, %s390
      %p401 = scmp.eq.s32.totalorder %s41, 0
      %p402 = por %p400, %p401
      %p403 = scmp.ne.s32.totalorder %s389, %s390
      %p404 = scmp.eq.s32.totalorder %s42, 1
      %p405 = por %p403, %p404
      %p407 = scmp.ne.s32.totalorder %s390, %s406
      %p408 = scmp.eq.s32.totalorder %s42, 0
      %p409 = por %p407, %p408
      %p410 = scmp.le.s32.totalorder 1, %s36
      %p411 = scmp.lt.s32.totalorder %s36, 3
      %p412 = pnand %p410, %p411
      %p413 = pneg %p412
      // Predicated region
      $region9: #{tpu_custom_call.1} parent=5 // pred_check
        _
      $region10: #{tpu_custom_call.1} parent=5 // pred_check_branch
        %415 = sbr.rel (%p412) target = $region12
      $region11: #{tpu_custom_call.1} parent=5 // pred_region
        %s416 = ssub.s32 %s36, 1
        // Predicated region
        $region13: #{tpu_custom_call.1} parent=11 // pred_check
          %p417 = pneg %p83
        $region14: #{tpu_custom_call.1} parent=11 // pred_check_branch
          %419 = sbr.rel (%p417) target = $region16
        $region15: #{tpu_custom_call.1} parent=11 // pred_region
          %s421 = ssub.s32 768, 768
          %422 = vsyncadd [#allocation3], %s421
          %s423 = sshll.u32 [#allocation2], 4
          %s424 = int_to_ptr.vmem [resolvable:$true] %s423
          %429 = dma.hbm_to_vmem [thread:$0]  %s1, 768, %s424, [#allocation3], 256, 256, 16
        $region16: #{tpu_custom_call.1} parent=11 // pred_fallthru
          _
        // Predicated region
        $region17: #{tpu_custom_call.1} parent=11 // pred_check
          %p430 = pneg %p104
        $region18: #{tpu_custom_call.1} parent=11 // pred_check_branch
          %432 = sbr.rel (%p430) target = $region20
        $region19: #{tpu_custom_call.1} parent=11 // pred_region
          %s434 = ssub.s32 64, 64
          %435 = vsyncadd [#allocation6], %s434
          %s437 = sshll.u32 [#allocation5], 4
          %s438 = int_to_ptr.vmem [resolvable:$true] %s437
          %440 = dma.hbm_to_vmem [thread:$0]  %s2, 64, %s438, [#allocation6]
        $region20: #{tpu_custom_call.1} parent=11 // pred_fallthru
          _
        // Predicated region
        $region21: #{tpu_custom_call.1} parent=11 // pred_check
          %p441 = pneg %p125
        $region22: #{tpu_custom_call.1} parent=11 // pred_check_branch
          %443 = sbr.rel (%p441) target = $region24
        $region23: #{tpu_custom_call.1} parent=11 // pred_region
          %s445 = ssub.s32 98304, 98304
          %446 = vsyncadd [#allocation6], %s445
          %s447 = sshll.u32 [#allocation7], 4
          %s448 = int_to_ptr.vmem [resolvable:$true] %s447
          %453 = dma.hbm_to_vmem [thread:$0]  %s3, 98304, %s448, [#allocation6], 512, 512, 32
        $region24: #{tpu_custom_call.1} parent=11 // pred_fallthru
          _
        // Predicated region
        $region25: #{tpu_custom_call.1} parent=11 // pred_check
          %p454 = pneg %p146
        $region26: #{tpu_custom_call.1} parent=11 // pred_check_branch
          %456 = sbr.rel (%p454) target = $region28
        $region27: #{tpu_custom_call.1} parent=11 // pred_region
          %s458 = ssub.s32 64, 64
          %459 = vsyncadd [#allocation9], %s458
          %s461 = sshll.u32 [#allocation8], 4
          %s462 = int_to_ptr.vmem [resolvable:$true] %s461
          %464 = dma.hbm_to_vmem [thread:$0]  %s4, 64, %s462, [#allocation9]
        $region28: #{tpu_custom_call.1} parent=11 // pred_fallthru
          _
        // Predicated region
        $region29: #{tpu_custom_call.1} parent=11 // pred_check
          %p465 = pneg %p167
        $region30: #{tpu_custom_call.1} parent=11 // pred_check_branch
          %467 = sbr.rel (%p465) target = $region32
        $region31: #{tpu_custom_call.1} parent=11 // pred_region
          %s469 = ssub.s32 24576, 24576
          %470 = vsyncadd [#allocation9], %s469
          %s471 = sshll.u32 [#allocation10], 4
          %s472 = int_to_ptr.vmem [resolvable:$true] %s471
          %477 = dma.hbm_to_vmem [thread:$0]  %s5, 24576, %s472, [#allocation9], 128, 128, 8
        $region32: #{tpu_custom_call.1} parent=11 // pred_fallthru
          _
        // Predicated region
        $region33: #{tpu_custom_call.1} parent=11 // pred_check
          %p478 = pneg %p188
        $region34: #{tpu_custom_call.1} parent=11 // pred_check_branch
          %480 = sbr.rel (%p478) target = $region36
        $region35: #{tpu_custom_call.1} parent=11 // pred_region
          %s482 = ssub.s32 16, 16
          %483 = vsyncadd [#allocation12], %s482
          %s485 = sshll.u32 [#allocation11], 4
          %s486 = int_to_ptr.vmem [resolvable:$true] %s485
          %488 = dma.hbm_to_vmem [thread:$0]  %s6, 16, %s486, [#allocation12]
        $region36: #{tpu_custom_call.1} parent=11 // pred_fallthru
          _
        // Predicated region
        $region37: #{tpu_custom_call.1} parent=11 // pred_check
          %p489 = pneg %p209
        $region38: #{tpu_custom_call.1} parent=11 // pred_check_branch
          %491 = sbr.rel (%p489) target = $region40
        $region39: #{tpu_custom_call.1} parent=11 // pred_region
          %s493 = ssub.s32 6144, 6144
          %494 = vsyncadd [#allocation12], %s493
          %s495 = sshll.u32 [#allocation13], 4
          %s496 = int_to_ptr.vmem [resolvable:$true] %s495
          %501 = dma.hbm_to_vmem [thread:$0]  %s7, 6144, %s496, [#allocation12], 128, 128, 8
        $region40: #{tpu_custom_call.1} parent=11 // pred_fallthru
          _
        // Predicated region
        $region41: #{tpu_custom_call.1} parent=11 // pred_check
          %p502 = pneg %p230
        $region42: #{tpu_custom_call.1} parent=11 // pred_check_branch
          %504 = sbr.rel (%p502) target = $region44
        $region43: #{tpu_custom_call.1} parent=11 // pred_region
          %s506 = ssub.s32 16, 16
          %507 = vsyncadd [#allocation15], %s506
          %s509 = sshll.u32 [#allocation14], 4
          %s510 = int_to_ptr.vmem [resolvable:$true] %s509
          %512 = dma.hbm_to_vmem [thread:$0]  %s8, 16, %s510, [#allocation15]
        $region44: #{tpu_custom_call.1} parent=11 // pred_fallthru
          _
        // Predicated region
        $region45: #{tpu_custom_call.1} parent=11 // pred_check
          %p513 = pneg %p251
        $region46: #{tpu_custom_call.1} parent=11 // pred_check_branch
          %515 = sbr.rel (%p513) target = $region48
        $region47: #{tpu_custom_call.1} parent=11 // pred_region
          _
        $region48: #{tpu_custom_call.1} parent=11 // pred_fallthru
          _
        // Predicated region
        $region49: #{tpu_custom_call.1} parent=11 // pred_check
          %p516 = pneg %p272
        $region50: #{tpu_custom_call.1} parent=11 // pred_check_branch
          %518 = sbr.rel (%p516) target = $region52
        $region51: #{tpu_custom_call.1} parent=11 // pred_region
          %s520 = ssub.s32 16, 16
          %521 = vsyncadd [#allocation15], %s520
          %s523 = sshll.u32 [#allocation16], 4
          %s524 = int_to_ptr.vmem [resolvable:$true] %s523
          %526 = dma.hbm_to_vmem [thread:$0]  %s10, 16, %s524, [#allocation15]
        $region52: #{tpu_custom_call.1} parent=11 // pred_fallthru
          _
      $region12: #{tpu_custom_call.1} parent=5 // pred_fallthru
        _
      %p527 = scmp.lt.s32.totalorder %s36, 2
      // Predicated region
      $region53: #{tpu_custom_call.1} parent=5 // pred_check
        %p528 = pneg %p527
      $region54: #{tpu_custom_call.1} parent=5 // pred_check_branch
        %530 = sbr.rel (%p528) target = $region56
      $region55: #{tpu_custom_call.1} parent=5 // pred_region
        // Predicated region
        $region57: #{tpu_custom_call.1} parent=55 // pred_check
          %p531 = pneg %p56
        $region58: #{tpu_custom_call.1} parent=55 // pred_check_branch
          %533 = sbr.rel (%p531) target = $region60
        $region59: #{tpu_custom_call.1} parent=55 // pred_region
          %p534 = scmp.lt.s32.totalorder %s36, 1
          %s535 = scalar_select %p534, %s36, 1
          %s536 = smul.addr %s535, 2
          %s537 = smul.addr %s536, 8
          %s538 = scalar_lea.vmem %s0, %s537
        $region60: #{tpu_custom_call.1} parent=55 // pred_fallthru
          _
      $region56: #{tpu_custom_call.1} parent=5 // pred_fallthru
        _
      %p539 = scmp.le.s32.totalorder 1, %s36
      %p540 = scmp.lt.s32.totalorder %s36, 3
      %p541 = pnand %p539, %p540
      %p542 = pneg %p541
      // Predicated region
      $region61: #{tpu_custom_call.1} parent=5 // pred_check
        _
      $region62: #{tpu_custom_call.1} parent=5 // pred_check_branch
        %544 = sbr.rel (%p541) target = $region64
      $region63: #{tpu_custom_call.1} parent=5 // pred_region
        %s545 = ssub.s32 %s36, 1
        // Predicated region
        $region65: #{tpu_custom_call.1} parent=63 // pred_check
          %p546 = pneg %p83
        $region66: #{tpu_custom_call.1} parent=63 // pred_check_branch
          %548 = sbr.rel (%p546) target = $region68
        $region67: #{tpu_custom_call.1} parent=63 // pred_region
          %549 = dma.done [#allocation3], 768
        $region68: #{tpu_custom_call.1} parent=63 // pred_fallthru
          _
        // Predicated region
        $region69: #{tpu_custom_call.1} parent=63 // pred_check
          %p550 = pneg %p104
        $region70: #{tpu_custom_call.1} parent=63 // pred_check_branch
          %552 = sbr.rel (%p550) target = $region72
        $region71: #{tpu_custom_call.1} parent=63 // pred_region
          %553 = dma.done [#allocation6], 64
        $region72: #{tpu_custom_call.1} parent=63 // pred_fallthru
          _
        // Predicated region
        $region73: #{tpu_custom_call.1} parent=63 // pred_check
          %p554 = pneg %p125
        $region74: #{tpu_custom_call.1} parent=63 // pred_check_branch
          %556 = sbr.rel (%p554) target = $region76
        $region75: #{tpu_custom_call.1} parent=63 // pred_region
          %557 = dma.done [#allocation6], 98304
        $region76: #{tpu_custom_call.1} parent=63 // pred_fallthru
          _
        // Predicated region
        $region77: #{tpu_custom_call.1} parent=63 // pred_check
          %p558 = pneg %p146
        $region78: #{tpu_custom_call.1} parent=63 // pred_check_branch
          %560 = sbr.rel (%p558) target = $region80
        $region79: #{tpu_custom_call.1} parent=63 // pred_region
          %561 = dma.done [#allocation9], 64
        $region80: #{tpu_custom_call.1} parent=63 // pred_fallthru
          _
        // Predicated region
        $region81: #{tpu_custom_call.1} parent=63 // pred_check
          %p562 = pneg %p167
        $region82: #{tpu_custom_call.1} parent=63 // pred_check_branch
          %564 = sbr.rel (%p562) target = $region84
        $region83: #{tpu_custom_call.1} parent=63 // pred_region
          %565 = dma.done [#allocation9], 24576
        $region84: #{tpu_custom_call.1} parent=63 // pred_fallthru
          _
        // Predicated region
        $region85: #{tpu_custom_call.1} parent=63 // pred_check
          %p566 = pneg %p188
        $region86: #{tpu_custom_call.1} parent=63 // pred_check_branch
          %568 = sbr.rel (%p566) target = $region88
        $region87: #{tpu_custom_call.1} parent=63 // pred_region
          %569 = dma.done [#allocation12], 16
        $region88: #{tpu_custom_call.1} parent=63 // pred_fallthru
          _
        // Predicated region
        $region89: #{tpu_custom_call.1} parent=63 // pred_check
          %p570 = pneg %p209
        $region90: #{tpu_custom_call.1} parent=63 // pred_check_branch
          %572 = sbr.rel (%p570) target = $region92
        $region91: #{tpu_custom_call.1} parent=63 // pred_region
          %573 = dma.done [#allocation12], 6144
        $region92: #{tpu_custom_call.1} parent=63 // pred_fallthru
          _
        // Predicated region
        $region93: #{tpu_custom_call.1} parent=63 // pred_check
          %p574 = pneg %p230
        $region94: #{tpu_custom_call.1} parent=63 // pred_check_branch
          %576 = sbr.rel (%p574) target = $region96
        $region95: #{tpu_custom_call.1} parent=63 // pred_region
          %577 = dma.done [#allocation15], 16
        $region96: #{tpu_custom_call.1} parent=63 // pred_fallthru
          _
        // Predicated region
        $region97: #{tpu_custom_call.1} parent=63 // pred_check
          %p578 = pneg %p272
        $region98: #{tpu_custom_call.1} parent=63 // pred_check_branch
          %580 = sbr.rel (%p578) target = $region100
        $region99: #{tpu_custom_call.1} parent=63 // pred_region
          %581 = dma.done [#allocation15], 16
        $region100: #{tpu_custom_call.1} parent=63 // pred_fallthru
          _
        %p582 = scmp.lt.s32.totalorder %s41, 1
        %s583 = scalar_select %p582, %s41, 1
        %s584 = smul.addr %s583, 2
        %s585 = smul.addr %s584, 8
        %s586 = scalar_lea.vmem %s0, %s585
        %p587 = pneg %p62
        %p588 = pneg %p59
        %p589 = pneg %p83
        %p590 = pneg %p80
        %p591 = pneg %p104
        %p592 = pneg %p101
        %p593 = pneg %p125
        %p594 = pneg %p122
        %p595 = pneg %p146
        %p596 = pneg %p143
        %p597 = pneg %p167
        %p598 = pneg %p164
        %p599 = pneg %p188
        %p600 = pneg %p185
        %p601 = pneg %p209
        %p602 = pneg %p206
        %p603 = pneg %p230
        %p604 = pneg %p227
        %p605 = pneg %p251
        %p606 = pneg %p248
        %p607 = pneg %p272
        %p608 = pneg %p269
        %p609 = pneg %p298
        %p610 = pneg %p295
        %s611 = sand.u32 %s285, 1
        %s612 = scalar_lea.sflag [#allocation4], %s611
        %s613 = sand.u32 %s285, 1
        %s614 = scalar_lea.vmem [#allocation17], %s613
        %p615 = pneg %p324
        %p616 = pneg %p321
        %s617 = sand.u32 %s41, 1
        %s618 = scalar_lea.sflag [#allocation19], %s617
        %s619 = sand.u32 %s311, 1
        %s620 = smul.addr %s619, 32
        %s621 = scalar_lea.vmem [#allocation18], %s620
        %p622 = pneg %p350
        %p623 = pneg %p347
        %s624 = sand.u32 %s41, 1
        %s625 = scalar_lea.sflag [#allocation19], %s624
        %s626 = sand.u32 %s337, 1
        %s627 = smul.addr %s626, 16
        %s628 = scalar_lea.vmem [#allocation20], %s627
        %p629 = pneg %p376
        %p630 = pneg %p373
        %s631 = sand.u32 %s41, 1
        %s632 = scalar_lea.sflag [#allocation22], %s631
        %s633 = sand.u32 %s363, 1
        %s634 = smul.addr %s633, 2
        %s635 = scalar_lea.vmem [#allocation21], %s634
        %p636 = pneg %p402
        %p637 = pneg %p399
        %s638 = sand.u32 %s41, 1
        %s639 = scalar_lea.sflag [#allocation22], %s638
        %s640 = sand.u32 %s389, 1
        %s641 = scalar_lea.vmem [#allocation23], %s640
        %p642 = scmp.lt.s32.totalorder %s41, 1
        %s643 = scalar_select %p642, %s41, 1
        %s644 = smul.addr %s643, 2
        %s645 = smul.addr %s644, 8
        %s646 = scalar_lea.vmem %s0, %s645
        %v647 = vld [vmem:[%s646] sm:$0xff]
        %v648 = vld [vmem:[%s646 + $0x8] sm:$0xff]
        %vm651 = vcmask 1040384
        %v652 = vrot.slane %v647, 7
        %v653 = vrot.slane %v648, 7
        %v654 = vsel %vm651, %v652, %v653
        %v656 = vsel %vm651, 0.0, %v652
        %vm657 = vcmask 1046528
        %v658 = vrot.slane %v647, 1
        %v659 = vrot.slane %v648, 1
        %v660 = vsel %vm657, %v658, %v659
        %v662 = vsel %vm657, %v659, 0.0
        %v663 = vld [vmem:[#allocation2] sm:$0xff]
        %v664 = vld [vmem:[#allocation2 + $0x8] sm:$0xff]
        %s665 = scalar_lea.vmem [#allocation2], 16
        %v666 = vld [vmem:[%s665] sm:$0xff]
        %v667 = vld [vmem:[%s665 + $0x8] sm:$0xff]
        %v670 = vcombine.high %v666, %v666
        %v671 = vcombine.high %v667, %v667
        %vm672 = vcmask 31744
        %v673 = vsel %vm672, %v647, 0
        %v675 = vsel %vm672, %v648, 0
        %vm677 = vcmask 1043456
        %v678 = vsel %vm677, %v666, 0
        %v680 = vsel %vm677, %v670, 0
        %v682 = vsel %vm677, %v667, 0
        %v684 = vsel %vm677, %v671, 0
        %686 = vmatprep.subr.mxu0 %v680
        %687 = vmatpush1.msra.mxu0 %v678
        %688 = vmatprep.subr.mxu0 0.0
        %689 = vmatpush1.msra.mxu0 0.0
        %690 = vmatprep.subr.mxu0 0.0
        %691 = vmatpush1.msra.mxu0 0.0
        %692 = vmatprep.subr.mxu0 0.0
        %693 = vmatpush1.msra.mxu0 0.0
        %694 = vmatprep.subr.mxu0 0.0
        %695 = vmatpush1.msra.mxu0 0.0
        %696 = vmatprep.subr.mxu0 0.0
        %697 = vmatpush1.msra.mxu0 0.0
        %698 = vmatprep.subr.mxu0 0.0
        %699 = vmatpush1.msra.mxu0 0.0
        %700 = vmatprep.subr.mxu0 0.0
        %701 = vmatpush1.msra.mxu0 0.0
        %702 = vmatprep.subr.mxu0 0.0
        %703 = vmatpush1.msra.mxu0 0.0
        %704 = vmatprep.subr.mxu0 0.0
        %705 = vmatpush1.msra.mxu0 0.0
        %706 = vmatprep.subr.mxu0 0.0
        %707 = vmatpush1.msra.mxu0 0.0
        %708 = vmatprep.subr.mxu0 0.0
        %709 = vmatpush1.msra.mxu0 0.0
        %710 = vmatprep.subr.mxu0 0.0
        %711 = vmatpush1.msra.mxu0 0.0
        %712 = vmatprep.subr.mxu0 0.0
        %713 = vmatpush1.msra.mxu0 0.0
        %714 = vmatprep.subr.mxu0 0.0
        %715 = vmatpush1.msra.mxu0 0.0
        %716 = vmatprep.subr.mxu0 0.0
        %717 = vmatpush1.msra.mxu0 0.0
        %718 = vmatprep.subr.mxu0 0.0
        %719 = vmatpush1.msra.mxu0 0.0
        %720 = vmatprep.subr.mxu0 0.0
        %721 = vmatpush1.msra.mxu0 0.0
        %722 = vmatprep.subr.mxu0 0.0
        %723 = vmatpush1.msra.mxu0 0.0
        %724 = vmatprep.subr.mxu0 0.0
        %725 = vmatpush1.msra.mxu0 0.0
        %726 = vmatprep.subr.mxu0 0.0
        %727 = vmatpush1.msra.mxu0 0.0
        %728 = vmatprep.subr.mxu0 0.0
        %729 = vmatpush1.msra.mxu0 0.0
        %730 = vmatprep.subr.mxu0 0.0
        %731 = vmatpush1.msra.mxu0 0.0
        %732 = vmatprep.subr.mxu0 0.0
        %733 = vmatpush1.msra.mxu0 0.0
        %734 = vmatprep.subr.mxu0 0.0
        %735 = vmatpush1.msra.mxu0 0.0
        %736 = vmatprep.subr.mxu0 0.0
        %737 = vmatpush1.msra.mxu0 0.0
        %738 = vmatprep.subr.mxu0 0.0
        %739 = vmatpush1.msra.mxu0 0.0
        %740 = vmatprep.subr.mxu0 0.0
        %741 = vmatpush1.msra.mxu0 0.0
        %742 = vmatprep.subr.mxu0 0.0
        %743 = vmatpush1.msra.mxu0 0.0
        %744 = vmatprep.subr.mxu0 0.0
        %745 = vmatpush1.msra.mxu0 0.0
        %746 = vmatprep.subr.mxu0 0.0
        %747 = vmatpush1.msra.mxu0 0.0
        %748 = vmatprep.subr.mxu0 0.0
        %749 = vmatpush1.msra.mxu0 0.0
        %750 = vmatprep.mubr.f32.mxu0 0.0
        %751 = vmatmul.mubr.f32.gmra.mrb[0].mxu0 %v673
        %v752 = vpop.f32.mrb[0].mxu0
        %v753 = vadd.f32 0.0, %v752
        %v754 = vpop.f32.mrb[0].mxu0
        %v755 = vadd.f32 0.0, %v754
        %756 = vmatprep.mubr.f32.mxu0 0.0
        %757 = vmatmul.mubr.f32.gmra.mrb[0].mxu0 %v675
        %v758 = vpop.f32.mrb[0].mxu0
        %v759 = vadd.f32 0.0, %v758
        %v760 = vpop.f32.mrb[0].mxu0
        %v761 = vadd.f32 0.0, %v760
        %762 = vdwg.mxu0
        %763 = vmatprep.subr.mxu0 %v684
        %764 = vmatpush1.msra.mxu0 %v682
        %765 = vmatprep.subr.mxu0 0.0
        %766 = vmatpush1.msra.mxu0 0.0
        %767 = vmatprep.subr.mxu0 0.0
        %768 = vmatpush1.msra.mxu0 0.0
        %769 = vmatprep.subr.mxu0 0.0
        %770 = vmatpush1.msra.mxu0 0.0
        %771 = vmatprep.subr.mxu0 0.0
        %772 = vmatpush1.msra.mxu0 0.0
        %773 = vmatprep.subr.mxu0 0.0
        %774 = vmatpush1.msra.mxu0 0.0
        %775 = vmatprep.subr.mxu0 0.0
        %776 = vmatpush1.msra.mxu0 0.0
        %777 = vmatprep.subr.mxu0 0.0
        %778 = vmatpush1.msra.mxu0 0.0
        %779 = vmatprep.subr.mxu0 0.0
        %780 = vmatpush1.msra.mxu0 0.0
        %781 = vmatprep.subr.mxu0 0.0
        %782 = vmatpush1.msra.mxu0 0.0
        %783 = vmatprep.subr.mxu0 0.0
        %784 = vmatpush1.msra.mxu0 0.0
        %785 = vmatprep.subr.mxu0 0.0
        %786 = vmatpush1.msra.mxu0 0.0
        %787 = vmatprep.subr.mxu0 0.0
        %788 = vmatpush1.msra.mxu0 0.0
        %789 = vmatprep.subr.mxu0 0.0
        %790 = vmatpush1.msra.mxu0 0.0
        %791 = vmatprep.subr.mxu0 0.0
        %792 = vmatpush1.msra.mxu0 0.0
        %793 = vmatprep.subr.mxu0 0.0
        %794 = vmatpush1.msra.mxu0 0.0
        %795 = vmatprep.subr.mxu0 0.0
        %796 = vmatpush1.msra.mxu0 0.0
        %797 = vmatprep.subr.mxu0 0.0
        %798 = vmatpush1.msra.mxu0 0.0
        %799 = vmatprep.subr.mxu0 0.0
        %800 = vmatpush1.msra.mxu0 0.0
        %801 = vmatprep.subr.mxu0 0.0
        %802 = vmatpush1.msra.mxu0 0.0
        %803 = vmatprep.subr.mxu0 0.0
        %804 = vmatpush1.msra.mxu0 0.0
        %805 = vmatprep.subr.mxu0 0.0
        %806 = vmatpush1.msra.mxu0 0.0
        %807 = vmatprep.subr.mxu0 0.0
        %808 = vmatpush1.msra.mxu0 0.0
        %809 = vmatprep.subr.mxu0 0.0
        %810 = vmatpush1.msra.mxu0 0.0
        %811 = vmatprep.subr.mxu0 0.0
        %812 = vmatpush1.msra.mxu0 0.0
        %813 = vmatprep.subr.mxu0 0.0
        %814 = vmatpush1.msra.mxu0 0.0
        %815 = vmatprep.subr.mxu0 0.0
        %816 = vmatpush1.msra.mxu0 0.0
        %817 = vmatprep.subr.mxu0 0.0
        %818 = vmatpush1.msra.mxu0 0.0
        %819 = vmatprep.subr.mxu0 0.0
        %820 = vmatpush1.msra.mxu0 0.0
        %821 = vmatprep.subr.mxu0 0.0
        %822 = vmatpush1.msra.mxu0 0.0
        %823 = vmatprep.subr.mxu0 0.0
        %824 = vmatpush1.msra.mxu0 0.0
        %825 = vmatprep.subr.mxu0 0.0
        %826 = vmatpush1.msra.mxu0 0.0
        %827 = vmatprep.mubr.f32.mxu0 0.0
        %828 = vmatmul.mubr.f32.gmra.mrb[0].mxu0 %v673
        %v829 = vpop.f32.mrb[0].mxu0
        %v830 = vadd.f32 0.0, %v829
        %v831 = vpop.f32.mrb[0].mxu0
        %v832 = vadd.f32 0.0, %v831
        %833 = vmatprep.mubr.f32.mxu0 0.0
        %834 = vmatmul.mubr.f32.gmra.mrb[0].mxu0 %v675
        %v835 = vpop.f32.mrb[0].mxu0
        %v836 = vadd.f32 0.0, %v835
        %v837 = vpop.f32.mrb[0].mxu0
        %v838 = vadd.f32 0.0, %v837
        %839 = vdwg.mxu0
        %v842 = vcombine.high %v663, %v663
        %v843 = vcombine.high %v664, %v664
        %v845 = vsel %vm672, %v656, 0
        %v847 = vsel %vm672, %v654, 0
        %v849 = vsel %vm677, %v663, 0
        %v851 = vsel %vm677, %v842, 0
        %v853 = vsel %vm677, %v664, 0
        %v855 = vsel %vm677, %v843, 0
        %857 = vmatprep.subr.mxu0 %v851
        %858 = vmatpush1.msra.mxu0 %v849
        %859 = vmatprep.subr.mxu0 0.0
        %860 = vmatpush1.msra.mxu0 0.0
        %861 = vmatprep.subr.mxu0 0.0
        %862 = vmatpush1.msra.mxu0 0.0
        %863 = vmatprep.subr.mxu0 0.0
        %864 = vmatpush1.msra.mxu0 0.0
        %865 = vmatprep.subr.mxu0 0.0
        %866 = vmatpush1.msra.mxu0 0.0
        %867 = vmatprep.subr.mxu0 0.0
        %868 = vmatpush1.msra.mxu0 0.0
        %869 = vmatprep.subr.mxu0 0.0
        %870 = vmatpush1.msra.mxu0 0.0
        %871 = vmatprep.subr.mxu0 0.0
        %872 = vmatpush1.msra.mxu0 0.0
        %873 = vmatprep.subr.mxu0 0.0
        %874 = vmatpush1.msra.mxu0 0.0
        %875 = vmatprep.subr.mxu0 0.0
        %876 = vmatpush1.msra.mxu0 0.0
        %877 = vmatprep.subr.mxu0 0.0
        %878 = vmatpush1.msra.mxu0 0.0
        %879 = vmatprep.subr.mxu0 0.0
        %880 = vmatpush1.msra.mxu0 0.0
        %881 = vmatprep.subr.mxu0 0.0
        %882 = vmatpush1.msra.mxu0 0.0
        %883 = vmatprep.subr.mxu0 0.0
        %884 = vmatpush1.msra.mxu0 0.0
        %885 = vmatprep.subr.mxu0 0.0
        %886 = vmatpush1.msra.mxu0 0.0
        %887 = vmatprep.subr.mxu0 0.0
        %888 = vmatpush1.msra.mxu0 0.0
        %889 = vmatprep.subr.mxu0 0.0
        %890 = vmatpush1.msra.mxu0 0.0
        %891 = vmatprep.subr.mxu0 0.0
        %892 = vmatpush1.msra.mxu0 0.0
        %893 = vmatprep.subr.mxu0 0.0
        %894 = vmatpush1.msra.mxu0 0.0
        %895 = vmatprep.subr.mxu0 0.0
        %896 = vmatpush1.msra.mxu0 0.0
        %897 = vmatprep.subr.mxu0 0.0
        %898 = vmatpush1.msra.mxu0 0.0
        %899 = vmatprep.subr.mxu0 0.0
        %900 = vmatpush1.msra.mxu0 0.0
        %901 = vmatprep.subr.mxu0 0.0
        %902 = vmatpush1.msra.mxu0 0.0
        %903 = vmatprep.subr.mxu0 0.0
        %904 = vmatpush1.msra.mxu0 0.0
        %905 = vmatprep.subr.mxu0 0.0
        %906 = vmatpush1.msra.mxu0 0.0
        %907 = vmatprep.subr.mxu0 0.0
        %908 = vmatpush1.msra.mxu0 0.0
        %909 = vmatprep.subr.mxu0 0.0
        %910 = vmatpush1.msra.mxu0 0.0
        %911 = vmatprep.subr.mxu0 0.0
        %912 = vmatpush1.msra.mxu0 0.0
        %913 = vmatprep.subr.mxu0 0.0
        %914 = vmatpush1.msra.mxu0 0.0
        %915 = vmatprep.subr.mxu0 0.0
        %916 = vmatpush1.msra.mxu0 0.0
        %917 = vmatprep.subr.mxu0 0.0
        %918 = vmatpush1.msra.mxu0 0.0
        %919 = vmatprep.subr.mxu0 0.0
        %920 = vmatpush1.msra.mxu0 0.0
        %921 = vmatprep.mubr.f32.mxu0 0.0
        %922 = vmatmul.mubr.f32.gmra.mrb[0].mxu0 %v845
        %v923 = vpop.f32.mrb[0].mxu0
        %v924 = vadd.f32 %v753, %v923
        %v925 = vpop.f32.mrb[0].mxu0
        %v926 = vadd.f32 %v755, %v925
        %927 = vmatprep.mubr.f32.mxu0 0.0
        %928 = vmatmul.mubr.f32.gmra.mrb[0].mxu0 %v847
        %v929 = vpop.f32.mrb[0].mxu0
        %v930 = vadd.f32 %v759, %v929
        %v931 = vpop.f32.mrb[0].mxu0
        %v932 = vadd.f32 %v761, %v931
        %933 = vdwg.mxu0
        %934 = vmatprep.subr.mxu0 %v855
        %935 = vmatpush1.msra.mxu0 %v853
        %936 = vmatprep.subr.mxu0 0.0
        %937 = vmatpush1.msra.mxu0 0.0
        %938 = vmatprep.subr.mxu0 0.0
        %939 = vmatpush1.msra.mxu0 0.0
        %940 = vmatprep.subr.mxu0 0.0
        %941 = vmatpush1.msra.mxu0 0.0
        %942 = vmatprep.subr.mxu0 0.0
        %943 = vmatpush1.msra.mxu0 0.0
        %944 = vmatprep.subr.mxu0 0.0
        %945 = vmatpush1.msra.mxu0 0.0
        %946 = vmatprep.subr.mxu0 0.0
        %947 = vmatpush1.msra.mxu0 0.0
        %948 = vmatprep.subr.mxu0 0.0
        %949 = vmatpush1.msra.mxu0 0.0
        %950 = vmatprep.subr.mxu0 0.0
        %951 = vmatpush1.msra.mxu0 0.0
        %952 = vmatprep.subr.mxu0 0.0
        %953 = vmatpush1.msra.mxu0 0.0
        %954 = vmatprep.subr.mxu0 0.0
        %955 = vmatpush1.msra.mxu0 0.0
        %956 = vmatprep.subr.mxu0 0.0
        %957 = vmatpush1.msra.mxu0 0.0
        %958 = vmatprep.subr.mxu0 0.0
        %959 = vmatpush1.msra.mxu0 0.0
        %960 = vmatprep.subr.mxu0 0.0
        %961 = vmatpush1.msra.mxu0 0.0
        %962 = vmatprep.subr.mxu0 0.0
        %963 = vmatpush1.msra.mxu0 0.0
        %964 = vmatprep.subr.mxu0 0.0
        %965 = vmatpush1.msra.mxu0 0.0
        %966 = vmatprep.subr.mxu0 0.0
        %967 = vmatpush1.msra.mxu0 0.0
        %968 = vmatprep.subr.mxu0 0.0
        %969 = vmatpush1.msra.mxu0 0.0
        %970 = vmatprep.subr.mxu0 0.0
        %971 = vmatpush1.msra.mxu0 0.0
        %972 = vmatprep.subr.mxu0 0.0
        %973 = vmatpush1.msra.mxu0 0.0
        %974 = vmatprep.subr.mxu0 0.0
        %975 = vmatpush1.msra.mxu0 0.0
        %976 = vmatprep.subr.mxu0 0.0
        %977 = vmatpush1.msra.mxu0 0.0
        %978 = vmatprep.subr.mxu0 0.0
        %979 = vmatpush1.msra.mxu0 0.0
        %980 = vmatprep.subr.mxu0 0.0
        %981 = vmatpush1.msra.mxu0 0.0
        %982 = vmatprep.subr.mxu0 0.0
        %983 = vmatpush1.msra.mxu0 0.0
        %984 = vmatprep.subr.mxu0 0.0
        %985 = vmatpush1.msra.mxu0 0.0
        %986 = vmatprep.subr.mxu0 0.0
        %987 = vmatpush1.msra.mxu0 0.0
        %988 = vmatprep.subr.mxu0 0.0
        %989 = vmatpush1.msra.mxu0 0.0
        %990 = vmatprep.subr.mxu0 0.0
        %991 = vmatpush1.msra.mxu0 0.0
        %992 = vmatprep.subr.mxu0 0.0
        %993 = vmatpush1.msra.mxu0 0.0
        %994 = vmatprep.subr.mxu0 0.0
        %995 = vmatpush1.msra.mxu0 0.0
        %996 = vmatprep.subr.mxu0 0.0
        %997 = vmatpush1.msra.mxu0 0.0
        %998 = vmatprep.mubr.f32.mxu0 0.0
        %999 = vmatmul.mubr.f32.gmra.mrb[0].mxu0 %v845
        %v1000 = vpop.f32.mrb[0].mxu0
        %v1001 = vadd.f32 %v830, %v1000
        %v1002 = vpop.f32.mrb[0].mxu0
        %v1003 = vadd.f32 %v832, %v1002
        %1004 = vmatprep.mubr.f32.mxu0 0.0
        %1005 = vmatmul.mubr.f32.gmra.mrb[0].mxu0 %v847
        %v1006 = vpop.f32.mrb[0].mxu0
        %v1007 = vadd.f32 %v836, %v1006
        %v1008 = vpop.f32.mrb[0].mxu0
        %v1009 = vadd.f32 %v838, %v1008
        %1010 = vdwg.mxu0
        %s1011 = scalar_lea.vmem [#allocation2], 32
        %v1012 = vld [vmem:[%s1011] sm:$0xff]
        %v1013 = vld [vmem:[%s1011 + $0x8] sm:$0xff]
        %v1016 = vcombine.high %v1012, %v1012
        %v1017 = vcombine.high %v1013, %v1013
        %v1018 = vsel %vm672, %v660, 0
        %v1021 = vsel %vm672, %v662, 0
        %v1023 = vsel %vm677, %v1012, 0
        %v1025 = vsel %vm677, %v1016, 0
        %v1027 = vsel %vm677, %v1013, 0
        %v1029 = vsel %vm677, %v1017, 0
        %1031 = vmatprep.subr.mxu0 %v1025
        %1032 = vmatpush1.msra.mxu0 %v1023
        %1033 = vmatprep.subr.mxu0 0.0
        %1034 = vmatpush1.msra.mxu0 0.0
        %1035 = vmatprep.subr.mxu0 0.0
        %1036 = vmatpush1.msra.mxu0 0.0
        %1037 = vmatprep.subr.mxu0 0.0
        %1038 = vmatpush1.msra.mxu0 0.0
        %1039 = vmatprep.subr.mxu0 0.0
        %1040 = vmatpush1.msra.mxu0 0.0
        %1041 = vmatprep.subr.mxu0 0.0
        %1042 = vmatpush1.msra.mxu0 0.0
        %1043 = vmatprep.subr.mxu0 0.0
        %1044 = vmatpush1.msra.mxu0 0.0
        %1045 = vmatprep.subr.mxu0 0.0
        %1046 = vmatpush1.msra.mxu0 0.0
        %1047 = vmatprep.subr.mxu0 0.0
        %1048 = vmatpush1.msra.mxu0 0.0
        %1049 = vmatprep.subr.mxu0 0.0
        %1050 = vmatpush1.msra.mxu0 0.0
        %1051 = vmatprep.subr.mxu0 0.0
        %1052 = vmatpush1.msra.mxu0 0.0
        %1053 = vmatprep.subr.mxu0 0.0
        %1054 = vmatpush1.msra.mxu0 0.0
        %1055 = vmatprep.subr.mxu0 0.0
        %1056 = vmatpush1.msra.mxu0 0.0
        %1057 = vmatprep.subr.mxu0 0.0
        %1058 = vmatpush1.msra.mxu0 0.0
        %1059 = vmatprep.subr.mxu0 0.0
        %1060 = vmatpush1.msra.mxu0 0.0
        %1061 = vmatprep.subr.mxu0 0.0
        %1062 = vmatpush1.msra.mxu0 0.0
        %1063 = vmatprep.subr.mxu0 0.0
        %1064 = vmatpush1.msra.mxu0 0.0
        %1065 = vmatprep.subr.mxu0 0.0
        %1066 = vmatpush1.msra.mxu0 0.0
        %1067 = vmatprep.subr.mxu0 0.0
        %1068 = vmatpush1.msra.mxu0 0.0
        %1069 = vmatprep.subr.mxu0 0.0
        %1070 = vmatpush1.msra.mxu0 0.0
        %1071 = vmatprep.subr.mxu0 0.0
        %1072 = vmatpush1.msra.mxu0 0.0
        %1073 = vmatprep.subr.mxu0 0.0
        %1074 = vmatpush1.msra.mxu0 0.0
        %1075 = vmatprep.subr.mxu0 0.0
        %1076 = vmatpush1.msra.mxu0 0.0
        %1077 = vmatprep.subr.mxu0 0.0
        %1078 = vmatpush1.msra.mxu0 0.0
        %1079 = vmatprep.subr.mxu0 0.0
        %1080 = vmatpush1.msra.mxu0 0.0
        %1081 = vmatprep.subr.mxu0 0.0
        %1082 = vmatpush1.msra.mxu0 0.0
        %1083 = vmatprep.subr.mxu0 0.0
        %1084 = vmatpush1.msra.mxu0 0.0
        %1085 = vmatprep.subr.mxu0 0.0
        %1086 = vmatpush1.msra.mxu0 0.0
        %1087 = vmatprep.subr.mxu0 0.0
        %1088 = vmatpush1.msra.mxu0 0.0
        %1089 = vmatprep.subr.mxu0 0.0
        %1090 = vmatpush1.msra.mxu0 0.0
        %1091 = vmatprep.subr.mxu0 0.0
        %1092 = vmatpush1.msra.mxu0 0.0
        %1093 = vmatprep.subr.mxu0 0.0
        %1094 = vmatpush1.msra.mxu0 0.0
        %1095 = vmatprep.mubr.f32.mxu0 0.0
        %1096 = vmatmul.mubr.f32.gmra.mrb[0].mxu0 %v1018
        %v1097 = vpop.f32.mrb[0].mxu0
        %v1098 = vadd.f32 0.0, %v1097
        %v1099 = vpop.f32.mrb[0].mxu0
        %v1100 = vadd.f32 0.0, %v1099
        %1101 = vmatprep.mubr.f32.mxu0 0.0
        %1102 = vmatmul.mubr.f32.gmra.mrb[0].mxu0 %v1021
        %v1103 = vpop.f32.mrb[0].mxu0
        %v1104 = vadd.f32 0.0, %v1103
        %v1105 = vpop.f32.mrb[0].mxu0
        %v1106 = vadd.f32 0.0, %v1105
        %1107 = vdwg.mxu0
        %1108 = vmatprep.subr.mxu0 %v1029
        %1109 = vmatpush1.msra.mxu0 %v1027
        %1110 = vmatprep.subr.mxu0 0.0
        %1111 = vmatpush1.msra.mxu0 0.0
        %1112 = vmatprep.subr.mxu0 0.0
        %1113 = vmatpush1.msra.mxu0 0.0
        %1114 = vmatprep.subr.mxu0 0.0
        %1115 = vmatpush1.msra.mxu0 0.0
        %1116 = vmatprep.subr.mxu0 0.0
        %1117 = vmatpush1.msra.mxu0 0.0
        %1118 = vmatprep.subr.mxu0 0.0
        %1119 = vmatpush1.msra.mxu0 0.0
        %1120 = vmatprep.subr.mxu0 0.0
        %1121 = vmatpush1.msra.mxu0 0.0
        %1122 = vmatprep.subr.mxu0 0.0
        %1123 = vmatpush1.msra.mxu0 0.0
        %1124 = vmatprep.subr.mxu0 0.0
        %1125 = vmatpush1.msra.mxu0 0.0
        %1126 = vmatprep.subr.mxu0 0.0
        %1127 = vmatpush1.msra.mxu0 0.0
        %1128 = vmatprep.subr.mxu0 0.0
        %1129 = vmatpush1.msra.mxu0 0.0
        %1130 = vmatprep.subr.mxu0 0.0
        %1131 = vmatpush1.msra.mxu0 0.0
        %1132 = vmatprep.subr.mxu0 0.0
        %1133 = vmatpush1.msra.mxu0 0.0
        %1134 = vmatprep.subr.mxu0 0.0
        %1135 = vmatpush1.msra.mxu0 0.0
        %1136 = vmatprep.subr.mxu0 0.0
        %1137 = vmatpush1.msra.mxu0 0.0
        %1138 = vmatprep.subr.mxu0 0.0
        %1139 = vmatpush1.msra.mxu0 0.0
        %1140 = vmatprep.subr.mxu0 0.0
        %1141 = vmatpush1.msra.mxu0 0.0
        %1142 = vmatprep.subr.mxu0 0.0
        %1143 = vmatpush1.msra.mxu0 0.0
        %1144 = vmatprep.subr.mxu0 0.0
        %1145 = vmatpush1.msra.mxu0 0.0
        %1146 = vmatprep.subr.mxu0 0.0
        %1147 = vmatpush1.msra.mxu0 0.0
        %1148 = vmatprep.subr.mxu0 0.0
        %1149 = vmatpush1.msra.mxu0 0.0
        %1150 = vmatprep.subr.mxu0 0.0
        %1151 = vmatpush1.msra.mxu0 0.0
        %1152 = vmatprep.subr.mxu0 0.0
        %1153 = vmatpush1.msra.mxu0 0.0
        %1154 = vmatprep.subr.mxu0 0.0
        %1155 = vmatpush1.msra.mxu0 0.0
        %1156 = vmatprep.subr.mxu0 0.0
        %1157 = vmatpush1.msra.mxu0 0.0
        %1158 = vmatprep.subr.mxu0 0.0
        %1159 = vmatpush1.msra.mxu0 0.0
        %1160 = vmatprep.subr.mxu0 0.0
        %1161 = vmatpush1.msra.mxu0 0.0
        %1162 = vmatprep.subr.mxu0 0.0
        %1163 = vmatpush1.msra.mxu0 0.0
        %1164 = vmatprep.subr.mxu0 0.0
        %1165 = vmatpush1.msra.mxu0 0.0
        %1166 = vmatprep.subr.mxu0 0.0
        %1167 = vmatpush1.msra.mxu0 0.0
        %1168 = vmatprep.subr.mxu0 0.0
        %1169 = vmatpush1.msra.mxu0 0.0
        %1170 = vmatprep.subr.mxu0 0.0
        %1171 = vmatpush1.msra.mxu0 0.0
        %1172 = vmatprep.mubr.f32.mxu0 0.0
        %1173 = vmatmul.mubr.f32.gmra.mrb[0].mxu0 %v1018
        %v1174 = vpop.f32.mrb[0].mxu0
        %v1175 = vadd.f32 0.0, %v1174
        %v1176 = vpop.f32.mrb[0].mxu0
        %v1177 = vadd.f32 0.0, %v1176
        %1178 = vmatprep.mubr.f32.mxu0 0.0
        %1179 = vmatmul.mubr.f32.gmra.mrb[0].mxu0 %v1021
        %v1180 = vpop.f32.mrb[0].mxu0
        %v1181 = vadd.f32 0.0, %v1180
        %v1182 = vpop.f32.mrb[0].mxu0
        %v1183 = vadd.f32 0.0, %v1182
        %1184 = vdwg.mxu0
        %v1185 = vadd.f32 %v924, %v1098
        %v1186 = vadd.f32 %v926, %v1100
        %v1187 = vadd.f32 %v1001, %v1175
        %v1188 = vadd.f32 %v1003, %v1177
        %v1189 = vadd.f32 %v930, %v1104
        %v1190 = vadd.f32 %v932, %v1106
        %v1191 = vadd.f32 %v1007, %v1181
        %v1192 = vadd.f32 %v1009, %v1183
        %v1193 = vld [vmem:[#allocation5] sm:$0xf]
        %v1195 = vlaneseq
        %v1196 = vshrl.u32 %v1195, 7
        %v1197 = vsub.s32 0, %v1196
        %v1198 = vrot.slane %v1193, %v1197
        %v1199 = vlaneseq
        %v1200 = vshrl.u32 %v1199, 7
        %v1201 = vsub.s32 1, %v1200
        %v1202 = vrot.slane %v1193, %v1201
        %v1203 = vlaneseq
        %v1204 = vshrl.u32 %v1203, 7
        %v1205 = vsub.s32 2, %v1204
        %v1206 = vrot.slane %v1193, %v1205
        %v1207 = vlaneseq
        %v1208 = vshrl.u32 %v1207, 7
        %v1209 = vsub.s32 3, %v1208
        %v1210 = vrot.slane %v1193, %v1209
        %v1215 = vadd.f32 %v1185, %v1198
        %v1216 = vadd.f32 %v1186, %v1202
        %v1217 = vadd.f32 %v1187, %v1206
        %v1218 = vadd.f32 %v1188, %v1210
        %v1219 = vadd.f32 %v1189, %v1198
        %v1220 = vadd.f32 %v1190, %v1202
        %v1221 = vadd.f32 %v1191, %v1206
        %v1222 = vadd.f32 %v1192, %v1210
        %v1223 = vmax.f32 %v1215, 0.0
        %v1224 = vmax.f32 %v1216, 0.0
        %v1225 = vmax.f32 %v1217, 0.0
        %v1226 = vmax.f32 %v1218, 0.0
        %v1227 = vmax.f32 %v1219, 0.0
        %v1228 = vmax.f32 %v1220, 0.0
        %v1229 = vmax.f32 %v1221, 0.0
        %v1230 = vmax.f32 %v1222, 0.0
        %v1235 = vrot.slane %v1223, 7
        %v1236 = vrot.slane %v1224, 7
        %v1237 = vrot.slane %v1225, 7
        %v1238 = vrot.slane %v1226, 7
        %vm1243 = vcmp.gt.f32.partialorder %v1223, %v1235
        %vm1244 = vcmp.gt.f32.partialorder %v1224, %v1236
        %vm1245 = vcmp.gt.f32.partialorder %v1225, %v1237
        %vm1246 = vcmp.gt.f32.partialorder %v1226, %v1238
        %v1247 = vsel %vm1243, %v1223, %v1235
        %v1248 = vsel %vm1244, %v1224, %v1236
        %v1249 = vsel %vm1245, %v1225, %v1237
        %v1250 = vsel %vm1246, %v1226, %v1238
        %v1251 = vsel %vm1243, 1, 0
        %v1252 = vsel %vm1244, 1, 0
        %v1253 = vsel %vm1245, 1, 0
        %v1254 = vsel %vm1246, 1, 0
        %v1255 = vsel %vm1243, 3, 2
        %v1256 = vsel %vm1244, 3, 2
        %v1257 = vsel %vm1245, 3, 2
        %v1258 = vsel %vm1246, 3, 2
        %v1259 = vsel %vm1243, 5, 4
        %v1260 = vsel %vm1244, 5, 4
        %v1261 = vsel %vm1245, 5, 4
        %v1262 = vsel %vm1246, 5, 4
        %v1263 = vsel %vm1243, 7, 6
        %v1264 = vsel %vm1244, 7, 6
        %v1265 = vsel %vm1245, 7, 6
        %v1266 = vsel %vm1246, 7, 6
        %v1271 = vrot.slane %v1227, 7
        %v1272 = vrot.slane %v1228, 7
        %v1273 = vrot.slane %v1229, 7
        %v1274 = vrot.slane %v1230, 7
        %vm1279 = vcmp.gt.f32.partialorder %v1227, %v1271
        %vm1280 = vcmp.gt.f32.partialorder %v1228, %v1272
        %vm1281 = vcmp.gt.f32.partialorder %v1229, %v1273
        %vm1282 = vcmp.gt.f32.partialorder %v1230, %v1274
        %v1283 = vsel %vm1279, %v1227, %v1271
        %v1284 = vsel %vm1280, %v1228, %v1272
        %v1285 = vsel %vm1281, %v1229, %v1273
        %v1286 = vsel %vm1282, %v1230, %v1274
        %v1287 = vsel %vm1279, 9, 8
        %v1288 = vsel %vm1280, 9, 8
        %v1289 = vsel %vm1281, 9, 8
        %v1290 = vsel %vm1282, 9, 8
        %v1291 = vsel %vm1279, 11, 10
        %v1292 = vsel %vm1280, 11, 10
        %v1293 = vsel %vm1281, 11, 10
        %v1294 = vsel %vm1282, 11, 10
        %v1295 = vsel %vm1279, 13, 12
        %v1296 = vsel %vm1280, 13, 12
        %v1297 = vsel %vm1281, 13, 12
        %v1298 = vsel %vm1282, 13, 12
        %v1299 = vsel %vm1279, 15, 14
        %v1300 = vsel %vm1280, 15, 14
        %v1301 = vsel %vm1281, 15, 14
        %v1302 = vsel %vm1282, 15, 14
        %v1307 = vrot.slane %v1247, 1
        %v1308 = vrot.slane %v1248, 1
        %v1309 = vrot.slane %v1249, 1
        %v1310 = vrot.slane %v1250, 1
        %v1315 = vrot.slane %v1247, 2
        %v1316 = vrot.slane %v1248, 2
        %v1317 = vrot.slane %v1249, 2
        %v1318 = vrot.slane %v1250, 2
        %v1323 = vrot.slane %v1247, 3
        %v1324 = vrot.slane %v1248, 3
        %v1325 = vrot.slane %v1249, 3
        %v1326 = vrot.slane %v1250, 3
        %v1331 = vrot.slane %v1247, 4
        %v1332 = vrot.slane %v1248, 4
        %v1333 = vrot.slane %v1249, 4
        %v1334 = vrot.slane %v1250, 4
        %v1343 = vrot.slane %v1283, 5
        %v1344 = vrot.slane %v1284, 5
        %v1345 = vrot.slane %v1285, 5
        %v1346 = vrot.slane %v1286, 5
        %v1351 = vrot.slane %v1283, 6
        %v1352 = vrot.slane %v1284, 6
        %v1353 = vrot.slane %v1285, 6
        %v1354 = vrot.slane %v1286, 6
        %v1359 = vrot.slane %v1283, 7
        %v1360 = vrot.slane %v1284, 7
        %v1361 = vrot.slane %v1285, 7
        %v1362 = vrot.slane %v1286, 7
        %v1367 = vsel %vm651, %v1307, %v1315
        %v1368 = vsel %vm651, %v1308, %v1316
        %v1369 = vsel %vm651, %v1309, %v1317
        %v1370 = vsel %vm651, %v1310, %v1318
        %vm1371 = vcmask 1041408
        %v1372 = vsel %vm1371, %v1367, %v1323
        %v1373 = vsel %vm1371, %v1368, %v1324
        %v1374 = vsel %vm1371, %v1369, %v1325
        %v1375 = vsel %vm1371, %v1370, %v1326
        %vm1376 = vcmask 1042432
        %v1377 = vsel %vm1376, %v1372, %v1331
        %v1378 = vsel %vm1376, %v1373, %v1332
        %v1379 = vsel %vm1376, %v1374, %v1333
        %v1380 = vsel %vm1376, %v1375, %v1334
        %v1381 = vsel %vm677, %v1377, %v1343
        %v1382 = vsel %vm677, %v1378, %v1344
        %v1383 = vsel %vm677, %v1379, %v1345
        %v1384 = vsel %vm677, %v1380, %v1346
        %vm1385 = vcmask 1044480
        %v1386 = vsel %vm1385, %v1381, %v1351
        %v1387 = vsel %vm1385, %v1382, %v1352
        %v1388 = vsel %vm1385, %v1383, %v1353
        %v1389 = vsel %vm1385, %v1384, %v1354
        %vm1390 = vcmask 1045504
        %v1391 = vsel %vm1390, %v1386, %v1359
        %v1392 = vsel %vm1390, %v1387, %v1360
        %v1393 = vsel %vm1390, %v1388, %v1361
        %v1394 = vsel %vm1390, %v1389, %v1362
        %v1395 = vsel %vm657, %v1391, %v1283
        %v1396 = vsel %vm657, %v1392, %v1284
        %v1397 = vsel %vm657, %v1393, %v1285
        %v1398 = vsel %vm657, %v1394, %v1286
        %v1399 = vrot.slane %v1251, 1
        %v1400 = vrot.slane %v1252, 1
        %v1401 = vrot.slane %v1253, 1
        %v1402 = vrot.slane %v1254, 1
        %v1403 = vrot.slane %v1255, 2
        %v1404 = vrot.slane %v1256, 2
        %v1405 = vrot.slane %v1257, 2
        %v1406 = vrot.slane %v1258, 2
        %v1407 = vrot.slane %v1259, 3
        %v1408 = vrot.slane %v1260, 3
        %v1409 = vrot.slane %v1261, 3
        %v1410 = vrot.slane %v1262, 3
        %v1411 = vrot.slane %v1263, 4
        %v1412 = vrot.slane %v1264, 4
        %v1413 = vrot.slane %v1265, 4
        %v1414 = vrot.slane %v1266, 4
        %v1415 = vrot.slane %v1287, 5
        %v1416 = vrot.slane %v1288, 5
        %v1417 = vrot.slane %v1289, 5
        %v1418 = vrot.slane %v1290, 5
        %v1419 = vrot.slane %v1291, 6
        %v1420 = vrot.slane %v1292, 6
        %v1421 = vrot.slane %v1293, 6
        %v1422 = vrot.slane %v1294, 6
        %v1423 = vrot.slane %v1295, 7
        %v1424 = vrot.slane %v1296, 7
        %v1425 = vrot.slane %v1297, 7
        %v1426 = vrot.slane %v1298, 7
        %v1427 = vsel %vm651, %v1399, %v1403
        %v1428 = vsel %vm651, %v1400, %v1404
        %v1429 = vsel %vm651, %v1401, %v1405
        %v1430 = vsel %vm651, %v1402, %v1406
        %v1431 = vsel %vm1371, %v1427, %v1407
        %v1432 = vsel %vm1371, %v1428, %v1408
        %v1433 = vsel %vm1371, %v1429, %v1409
        %v1434 = vsel %vm1371, %v1430, %v1410
        %v1435 = vsel %vm1376, %v1431, %v1411
        %v1436 = vsel %vm1376, %v1432, %v1412
        %v1437 = vsel %vm1376, %v1433, %v1413
        %v1438 = vsel %vm1376, %v1434, %v1414
        %v1439 = vsel %vm677, %v1435, %v1415
        %v1440 = vsel %vm677, %v1436, %v1416
        %v1441 = vsel %vm677, %v1437, %v1417
        %v1442 = vsel %vm677, %v1438, %v1418
        %v1443 = vsel %vm1385, %v1439, %v1419
        %v1444 = vsel %vm1385, %v1440, %v1420
        %v1445 = vsel %vm1385, %v1441, %v1421
        %v1446 = vsel %vm1385, %v1442, %v1422
        %v1447 = vsel %vm1390, %v1443, %v1423
        %v1448 = vsel %vm1390, %v1444, %v1424
        %v1449 = vsel %vm1390, %v1445, %v1425
        %v1450 = vsel %vm1390, %v1446, %v1426
        %v1451 = vsel %vm657, %v1447, %v1299
        %v1452 = vsel %vm657, %v1448, %v1300
        %v1453 = vsel %vm657, %v1449, %v1301
        %v1454 = vsel %vm657, %v1450, %v1302
        %1455 = vst [vmem:[%s621] sm:$0xff] %v1451
        %1456 = vst [vmem:[%s621 + $0x8] sm:$0xff] %v1452
        %1457 = vst [vmem:[%s621 + $0x10] sm:$0xff] %v1453
        %1458 = vst [vmem:[%s621 + $0x18] sm:$0xff] %v1454
        %v1463 = vrot.slane %v1395, 7
        %v1464 = vrot.slane %v1396, 7
        %v1465 = vrot.slane %v1397, 7
        %v1466 = vrot.slane %v1398, 7
        %v1471 = vsel %vm651, 0.0, %v1463
        %v1472 = vsel %vm651, 0.0, %v1464
        %v1473 = vsel %vm651, 0.0, %v1465
        %v1474 = vsel %vm651, 0.0, %v1466
        %v1475 = vrot.slane %v1395, 1
        %v1476 = vrot.slane %v1396, 1
        %v1477 = vrot.slane %v1397, 1
        %v1478 = vrot.slane %v1398, 1
        %v1483 = vsel %vm657, %v1475, 0.0
        %v1484 = vsel %vm657, %v1476, 0.0
        %v1485 = vsel %vm657, %v1477, 0.0
        %v1486 = vsel %vm657, %v1478, 0.0
        %v1487 = vld [vmem:[#allocation7] sm:$0xff]
        %v1488 = vld [vmem:[#allocation7 + $0x8] sm:$0xff]
        %v1489 = vld [vmem:[#allocation7 + $0x10] sm:$0xff]
        %v1490 = vld [vmem:[#allocation7 + $0x18] sm:$0xff]
        %v1491 = vld [vmem:[#allocation7 + $0x20] sm:$0xff]
        %v1492 = vld [vmem:[#allocation7 + $0x28] sm:$0xff]
        %v1493 = vld [vmem:[#allocation7 + $0x30] sm:$0xff]
        %v1494 = vld [vmem:[#allocation7 + $0x38] sm:$0xff]
        %v1495 = vld [vmem:[#allocation7 + $0x40] sm:$0xff]
        %v1496 = vld [vmem:[#allocation7 + $0x48] sm:$0xff]
        %v1497 = vld [vmem:[#allocation7 + $0x50] sm:$0xff]
        %v1498 = vld [vmem:[#allocation7 + $0x58] sm:$0xff]
        %v1499 = vld [vmem:[#allocation7 + $0x60] sm:$0xff]
        %v1500 = vld [vmem:[#allocation7 + $0x68] sm:$0xff]
        %v1501 = vld [vmem:[#allocation7 + $0x70] sm:$0xff]
        %v1502 = vld [vmem:[#allocation7 + $0x78] sm:$0xff]
        %v1503 = vld [vmem:[#allocation7 + $0x80] sm:$0xff]
        %v1504 = vld [vmem:[#allocation7 + $0x88] sm:$0xff]
        %v1505 = vld [vmem:[#allocation7 + $0x90] sm:$0xff]
        %v1506 = vld [vmem:[#allocation7 + $0x98] sm:$0xff]
        %v1507 = vld [vmem:[#allocation7 + $0xa0] sm:$0xff]
        %v1508 = vld [vmem:[#allocation7 + $0xa8] sm:$0xff]
        %v1509 = vld [vmem:[#allocation7 + $0xb0] sm:$0xff]
        %v1510 = vld [vmem:[#allocation7 + $0xb8] sm:$0xff]
        %v1511 = vld [vmem:[#allocation7 + $0xc0] sm:$0xff]
        %v1512 = vld [vmem:[#allocation7 + $0xc8] sm:$0xff]
        %v1513 = vld [vmem:[#allocation7 + $0xd0] sm:$0xff]
        %v1514 = vld [vmem:[#allocation7 + $0xd8] sm:$0xff]
        %v1515 = vld [vmem:[#allocation7 + $0xe0] sm:$0xff]
        %v1516 = vld [vmem:[#allocation7 + $0xe8] sm:$0xff]
        %v1517 = vld [vmem:[#allocation7 + $0xf0] sm:$0xff]
        %v1518 = vld [vmem:[#allocation7 + $0xf8] sm:$0xff]
        %v1519 = vld [vmem:[#allocation7 + $0x100] sm:$0xff]
        %v1520 = vld [vmem:[#allocation7 + $0x108] sm:$0xff]
        %v1521 = vld [vmem:[#allocation7 + $0x110] sm:$0xff]
        %v1522 = vld [vmem:[#allocation7 + $0x118] sm:$0xff]
        %v1523 = vld [vmem:[#allocation7 + $0x120] sm:$0xff]
        %v1524 = vld [vmem:[#allocation7 + $0x128] sm:$0xff]
        %v1525 = vld [vmem:[#allocation7 + $0x130] sm:$0xff]
        %v1526 = vld [vmem:[#allocation7 + $0x138] sm:$0xff]
        %v1527 = vld [vmem:[#allocation7 + $0x140] sm:$0xff]
        %v1528 = vld [vmem:[#allocation7 + $0x148] sm:$0xff]
        %v1529 = vld [vmem:[#allocation7 + $0x150] sm:$0xff]
        %v1530 = vld [vmem:[#allocation7 + $0x158] sm:$0xff]
        %v1531 = vld [vmem:[#allocation7 + $0x160] sm:$0xff]
        %v1532 = vld [vmem:[#allocation7 + $0x168] sm:$0xff]
        %v1533 = vld [vmem:[#allocation7 + $0x170] sm:$0xff]
        %v1534 = vld [vmem:[#allocation7 + $0x178] sm:$0xff]
        %v1535 = vld [vmem:[#allocation7 + $0x180] sm:$0xff]
        %v1536 = vld [vmem:[#allocation7 + $0x188] sm:$0xff]
        %v1537 = vld [vmem:[#allocation7 + $0x190] sm:$0xff]
        %v1538 = vld [vmem:[#allocation7 + $0x198] sm:$0xff]
        %v1539 = vld [vmem:[#allocation7 + $0x1a0] sm:$0xff]
        %v1540 = vld [vmem:[#allocation7 + $0x1a8] sm:$0xff]
        %v1541 = vld [vmem:[#allocation7 + $0x1b0] sm:$0xff]
        %v1542 = vld [vmem:[#allocation7 + $0x1b8] sm:$0xff]
        %v1543 = vld [vmem:[#allocation7 + $0x1c0] sm:$0xff]
        %v1544 = vld [vmem:[#allocation7 + $0x1c8] sm:$0xff]
        %v1545 = vld [vmem:[#allocation7 + $0x1d0] sm:$0xff]
        %v1546 = vld [vmem:[#allocation7 + $0x1d8] sm:$0xff]
        %v1547 = vld [vmem:[#allocation7 + $0x1e0] sm:$0xff]
        %v1548 = vld [vmem:[#allocation7 + $0x1e8] sm:$0xff]
        %v1549 = vld [vmem:[#allocation7 + $0x1f0] sm:$0xff]
        %v1550 = vld [vmem:[#allocation7 + $0x1f8] sm:$0xff]
        %v1551 = vld [vmem:[#allocation7 + $0x200] sm:$0xff]
        %v1552 = vld [vmem:[#allocation7 + $0x208] sm:$0xff]
        %v1553 = vld [vmem:[#allocation7 + $0x210] sm:$0xff]
        %v1554 = vld [vmem:[#allocation7 + $0x218] sm:$0xff]
        %v1555 = vld [vmem:[#allocation7 + $0x220] sm:$0xff]
        %v1556 = vld [vmem:[#allocation7 + $0x228] sm:$0xff]
        %v1557 = vld [vmem:[#allocation7 + $0x230] sm:$0xff]
        %v1558 = vld [vmem:[#allocation7 + $0x238] sm:$0xff]
        %v1559 = vld [vmem:[#allocation7 + $0x240] sm:$0xff]
        %v1560 = vld [vmem:[#allocation7 + $0x248] sm:$0xff]
        %v1561 = vld [vmem:[#allocation7 + $0x250] sm:$0xff]
        %v1562 = vld [vmem:[#allocation7 + $0x258] sm:$0xff]
        %v1563 = vld [vmem:[#allocation7 + $0x260] sm:$0xff]
        %v1564 = vld [vmem:[#allocation7 + $0x268] sm:$0xff]
        %v1565 = vld [vmem:[#allocation7 + $0x270] sm:$0xff]
        %v1566 = vld [vmem:[#allocation7 + $0x278] sm:$0xff]
        %v1567 = vld [vmem:[#allocation7 + $0x280] sm:$0xff]
        %v1568 = vld [vmem:[#allocation7 + $0x288] sm:$0xff]
        %v1569 = vld [vmem:[#allocation7 + $0x290] sm:$0xff]
        %v1570 = vld [vmem:[#allocation7 + $0x298] sm:$0xff]
        %v1571 = vld [vmem:[#allocation7 + $0x2a0] sm:$0xff]
        %v1572 = vld [vmem:[#allocation7 + $0x2a8] sm:$0xff]
        %v1573 = vld [vmem:[#allocation7 + $0x2b0] sm:$0xff]
        %v1574 = vld [vmem:[#allocation7 + $0x2b8] sm:$0xff]
        %v1575 = vld [vmem:[#allocation7 + $0x2c0] sm:$0xff]
        %v1576 = vld [vmem:[#allocation7 + $0x2c8] sm:$0xff]
        %v1577 = vld [vmem:[#allocation7 + $0x2d0] sm:$0xff]
        %v1578 = vld [vmem:[#allocation7 + $0x2d8] sm:$0xff]
        %v1579 = vld [vmem:[#allocation7 + $0x2e0] sm:$0xff]
        %v1580 = vld [vmem:[#allocation7 + $0x2e8] sm:$0xff]
        %v1581 = vld [vmem:[#allocation7 + $0x2f0] sm:$0xff]
        %v1582 = vld [vmem:[#allocation7 + $0x2f8] sm:$0xff]
        %v1583 = vld [vmem:[#allocation7 + $0x300] sm:$0xff]
        %v1584 = vld [vmem:[#allocation7 + $0x308] sm:$0xff]
        %v1585 = vld [vmem:[#allocation7 + $0x310] sm:$0xff]
        %v1586 = vld [vmem:[#allocation7 + $0x318] sm:$0xff]
        %v1587 = vld [vmem:[#allocation7 + $0x320] sm:$0xff]
        %v1588 = vld [vmem:[#allocation7 + $0x328] sm:$0xff]
        %v1589 = vld [vmem:[#allocation7 + $0x330] sm:$0xff]
        %v1590 = vld [vmem:[#allocation7 + $0x338] sm:$0xff]
        %v1591 = vld [vmem:[#allocation7 + $0x340] sm:$0xff]
        %v1592 = vld [vmem:[#allocation7 + $0x348] sm:$0xff]
        %v1593 = vld [vmem:[#allocation7 + $0x350] sm:$0xff]
        %v1594 = vld [vmem:[#allocation7 + $0x358] sm:$0xff]
        %v1595 = vld [vmem:[#allocation7 + $0x360] sm:$0xff]
        %v1596 = vld [vmem:[#allocation7 + $0x368] sm:$0xff]
        %v1597 = vld [vmem:[#allocation7 + $0x370] sm:$0xff]
        %v1598 = vld [vmem:[#allocation7 + $0x378] sm:$0xff]
        %v1599 = vld [vmem:[#allocation7 + $0x380] sm:$0xff]
        %v1600 = vld [vmem:[#allocation7 + $0x388] sm:$0xff]
        %v1601 = vld [vmem:[#allocation7 + $0x390] sm:$0xff]
        %v1602 = vld [vmem:[#allocation7 + $0x398] sm:$0xff]
        %v1603 = vld [vmem:[#allocation7 + $0x3a0] sm:$0xff]
        %v1604 = vld [vmem:[#allocation7 + $0x3a8] sm:$0xff]
        %v1605 = vld [vmem:[#allocation7 + $0x3b0] sm:$0xff]
        %v1606 = vld [vmem:[#allocation7 + $0x3b8] sm:$0xff]
        %v1607 = vld [vmem:[#allocation7 + $0x3c0] sm:$0xff]
        %v1608 = vld [vmem:[#allocation7 + $0x3c8] sm:$0xff]
        %v1609 = vld [vmem:[#allocation7 + $0x3d0] sm:$0xff]
        %v1610 = vld [vmem:[#allocation7 + $0x3d8] sm:$0xff]
        %v1611 = vld [vmem:[#allocation7 + $0x3e0] sm:$0xff]
        %v1612 = vld [vmem:[#allocation7 + $0x3e8] sm:$0xff]
        %v1613 = vld [vmem:[#allocation7 + $0x3f0] sm:$0xff]
        %v1614 = vld [vmem:[#allocation7 + $0x3f8] sm:$0xff]
        %v1615 = vld [vmem:[#allocation7 + $0x400] sm:$0xff]
        %v1616 = vld [vmem:[#allocation7 + $0x408] sm:$0xff]
        %v1617 = vld [vmem:[#allocation7 + $0x410] sm:$0xff]
        %v1618 = vld [vmem:[#allocation7 + $0x418] sm:$0xff]
        %v1619 = vld [vmem:[#allocation7 + $0x420] sm:$0xff]
        %v1620 = vld [vmem:[#allocation7 + $0x428] sm:$0xff]
        %v1621 = vld [vmem:[#allocation7 + $0x430] sm:$0xff]
        %v1622 = vld [vmem:[#allocation7 + $0x438] sm:$0xff]
        %v1623 = vld [vmem:[#allocation7 + $0x440] sm:$0xff]
        %v1624 = vld [vmem:[#allocation7 + $0x448] sm:$0xff]
        %v1625 = vld [vmem:[#allocation7 + $0x450] sm:$0xff]
        %v1626 = vld [vmem:[#allocation7 + $0x458] sm:$0xff]
        %v1627 = vld [vmem:[#allocation7 + $0x460] sm:$0xff]
        %v1628 = vld [vmem:[#allocation7 + $0x468] sm:$0xff]
        %v1629 = vld [vmem:[#allocation7 + $0x470] sm:$0xff]
        %v1630 = vld [vmem:[#allocation7 + $0x478] sm:$0xff]
        %v1631 = vld [vmem:[#allocation7 + $0x480] sm:$0xff]
        %v1632 = vld [vmem:[#allocation7 + $0x488] sm:$0xff]
        %v1633 = vld [vmem:[#allocation7 + $0x490] sm:$0xff]
        %v1634 = vld [vmem:[#allocation7 + $0x498] sm:$0xff]
        %v1635 = vld [vmem:[#allocation7 + $0x4a0] sm:$0xff]
        %v1636 = vld [vmem:[#allocation7 + $0x4a8] sm:$0xff]
        %v1637 = vld [vmem:[#allocation7 + $0x4b0] sm:$0xff]
        %v1638 = vld [vmem:[#allocation7 + $0x4b8] sm:$0xff]
        %v1639 = vld [vmem:[#allocation7 + $0x4c0] sm:$0xff]
        %v1640 = vld [vmem:[#allocation7 + $0x4c8] sm:$0xff]
        %v1641 = vld [vmem:[#allocation7 + $0x4d0] sm:$0xff]
        %v1642 = vld [vmem:[#allocation7 + $0x4d8] sm:$0xff]
        %v1643 = vld [vmem:[#allocation7 + $0x4e0] sm:$0xff]
        %v1644 = vld [vmem:[#allocation7 + $0x4e8] sm:$0xff]
        %v1645 = vld [vmem:[#allocation7 + $0x4f0] sm:$0xff]
        %v1646 = vld [vmem:[#allocation7 + $0x4f8] sm:$0xff]
        %v1647 = vld [vmem:[#allocation7 + $0x500] sm:$0xff]
        %v1648 = vld [vmem:[#allocation7 + $0x508] sm:$0xff]
        %v1649 = vld [vmem:[#allocation7 + $0x510] sm:$0xff]
        %v1650 = vld [vmem:[#allocation7 + $0x518] sm:$0xff]
        %v1651 = vld [vmem:[#allocation7 + $0x520] sm:$0xff]
        %v1652 = vld [vmem:[#allocation7 + $0x528] sm:$0xff]
        %v1653 = vld [vmem:[#allocation7 + $0x530] sm:$0xff]
        %v1654 = vld [vmem:[#allocation7 + $0x538] sm:$0xff]
        %v1655 = vld [vmem:[#allocation7 + $0x540] sm:$0xff]
        %v1656 = vld [vmem:[#allocation7 + $0x548] sm:$0xff]
        %v1657 = vld [vmem:[#allocation7 + $0x550] sm:$0xff]
        %v1658 = vld [vmem:[#allocation7 + $0x558] sm:$0xff]
        %v1659 = vld [vmem:[#allocation7 + $0x560] sm:$0xff]
        %v1660 = vld [vmem:[#allocation7 + $0x568] sm:$0xff]
        %v1661 = vld [vmem:[#allocation7 + $0x570] sm:$0xff]
        %v1662 = vld [vmem:[#allocation7 + $0x578] sm:$0xff]
        %v1663 = vld [vmem:[#allocation7 + $0x580] sm:$0xff]
        %v1664 = vld [vmem:[#allocation7 + $0x588] sm:$0xff]
        %v1665 = vld [vmem:[#allocation7 + $0x590] sm:$0xff]
        %v1666 = vld [vmem:[#allocation7 + $0x598] sm:$0xff]
        %v1667 = vld [vmem:[#allocation7 + $0x5a0] sm:$0xff]
        %v1668 = vld [vmem:[#allocation7 + $0x5a8] sm:$0xff]
        %v1669 = vld [vmem:[#allocation7 + $0x5b0] sm:$0xff]
        %v1670 = vld [vmem:[#allocation7 + $0x5b8] sm:$0xff]
        %v1671 = vld [vmem:[#allocation7 + $0x5c0] sm:$0xff]
        %v1672 = vld [vmem:[#allocation7 + $0x5c8] sm:$0xff]
        %v1673 = vld [vmem:[#allocation7 + $0x5d0] sm:$0xff]
        %v1674 = vld [vmem:[#allocation7 + $0x5d8] sm:$0xff]
        %v1675 = vld [vmem:[#allocation7 + $0x5e0] sm:$0xff]
        %v1676 = vld [vmem:[#allocation7 + $0x5e8] sm:$0xff]
        %v1677 = vld [vmem:[#allocation7 + $0x5f0] sm:$0xff]
        %v1678 = vld [vmem:[#allocation7 + $0x5f8] sm:$0xff]
        %v1679 = vld [vmem:[#allocation7 + $0x600] sm:$0xff]
        %v1680 = vld [vmem:[#allocation7 + $0x608] sm:$0xff]
        %v1681 = vld [vmem:[#allocation7 + $0x610] sm:$0xff]
        %v1682 = vld [vmem:[#allocation7 + $0x618] sm:$0xff]
        %v1683 = vld [vmem:[#allocation7 + $0x620] sm:$0xff]
        %v1684 = vld [vmem:[#allocation7 + $0x628] sm:$0xff]
        %v1685 = vld [vmem:[#allocation7 + $0x630] sm:$0xff]
        %v1686 = vld [vmem:[#allocation7 + $0x638] sm:$0xff]
        %v1687 = vld [vmem:[#allocation7 + $0x640] sm:$0xff]
        %v1688 = vld [vmem:[#allocation7 + $0x648] sm:$0xff]
        %v1689 = vld [vmem:[#allocation7 + $0x650] sm:$0xff]
        %v1690 = vld [vmem:[#allocation7 + $0x658] sm:$0xff]
        %v1691 = vld [vmem:[#allocation7 + $0x660] sm:$0xff]
        %v1692 = vld [vmem:[#allocation7 + $0x668] sm:$0xff]
        %v1693 = vld [vmem:[#allocation7 + $0x670] sm:$0xff]
        %v1694 = vld [vmem:[#allocation7 + $0x678] sm:$0xff]
        %v1695 = vld [vmem:[#allocation7 + $0x680] sm:$0xff]
        %v1696 = vld [vmem:[#allocation7 + $0x688] sm:$0xff]
        %v1697 = vld [vmem:[#allocation7 + $0x690] sm:$0xff]
        %v1698 = vld [vmem:[#allocation7 + $0x698] sm:$0xff]
        %v1699 = vld [vmem:[#allocation7 + $0x6a0] sm:$0xff]
        %v1700 = vld [vmem:[#allocation7 + $0x6a8] sm:$0xff]
        %v1701 = vld [vmem:[#allocation7 + $0x6b0] sm:$0xff]
        %v1702 = vld [vmem:[#allocation7 + $0x6b8] sm:$0xff]
        %v1703 = vld [vmem:[#allocation7 + $0x6c0] sm:$0xff]
        %v1704 = vld [vmem:[#allocation7 + $0x6c8] sm:$0xff]
        %v1705 = vld [vmem:[#allocation7 + $0x6d0] sm:$0xff]
        %v1706 = vld [vmem:[#allocation7 + $0x6d8] sm:$0xff]
        %v1707 = vld [vmem:[#allocation7 + $0x6e0] sm:$0xff]
        %v1708 = vld [vmem:[#allocation7 + $0x6e8] sm:$0xff]
        %v1709 = vld [vmem:[#allocation7 + $0x6f0] sm:$0xff]
        %v1710 = vld [vmem:[#allocation7 + $0x6f8] sm:$0xff]
        %v1711 = vld [vmem:[#allocation7 + $0x700] sm:$0xff]
        %v1712 = vld [vmem:[#allocation7 + $0x708] sm:$0xff]
        %v1713 = vld [vmem:[#allocation7 + $0x710] sm:$0xff]
        %v1714 = vld [vmem:[#allocation7 + $0x718] sm:$0xff]
        %v1715 = vld [vmem:[#allocation7 + $0x720] sm:$0xff]
        %v1716 = vld [vmem:[#allocation7 + $0x728] sm:$0xff]
        %v1717 = vld [vmem:[#allocation7 + $0x730] sm:$0xff]
        %v1718 = vld [vmem:[#allocation7 + $0x738] sm:$0xff]
        %v1719 = vld [vmem:[#allocation7 + $0x740] sm:$0xff]
        %v1720 = vld [vmem:[#allocation7 + $0x748] sm:$0xff]
        %v1721 = vld [vmem:[#allocation7 + $0x750] sm:$0xff]
        %v1722 = vld [vmem:[#allocation7 + $0x758] sm:$0xff]
        %v1723 = vld [vmem:[#allocation7 + $0x760] sm:$0xff]
        %v1724 = vld [vmem:[#allocation7 + $0x768] sm:$0xff]
        %v1725 = vld [vmem:[#allocation7 + $0x770] sm:$0xff]
        %v1726 = vld [vmem:[#allocation7 + $0x778] sm:$0xff]
        %v1727 = vld [vmem:[#allocation7 + $0x780] sm:$0xff]
        %v1728 = vld [vmem:[#allocation7 + $0x788] sm:$0xff]
        %v1729 = vld [vmem:[#allocation7 + $0x790] sm:$0xff]
        %v1730 = vld [vmem:[#allocation7 + $0x798] sm:$0xff]
        %v1731 = vld [vmem:[#allocation7 + $0x7a0] sm:$0xff]
        %v1732 = vld [vmem:[#allocation7 + $0x7a8] sm:$0xff]
        %v1733 = vld [vmem:[#allocation7 + $0x7b0] sm:$0xff]
        %v1734 = vld [vmem:[#allocation7 + $0x7b8] sm:$0xff]
        %v1735 = vld [vmem:[#allocation7 + $0x7c0] sm:$0xff]
        %v1736 = vld [vmem:[#allocation7 + $0x7c8] sm:$0xff]
        %v1737 = vld [vmem:[#allocation7 + $0x7d0] sm:$0xff]
        %v1738 = vld [vmem:[#allocation7 + $0x7d8] sm:$0xff]
        %v1739 = vld [vmem:[#allocation7 + $0x7e0] sm:$0xff]
        %v1740 = vld [vmem:[#allocation7 + $0x7e8] sm:$0xff]
        %v1741 = vld [vmem:[#allocation7 + $0x7f0] sm:$0xff]
        %v1742 = vld [vmem:[#allocation7 + $0x7f8] sm:$0xff]
        %s1743 = scalar_lea.vmem [#allocation7], 2048
        %v1744 = vld [vmem:[%s1743] sm:$0xff]
        %v1745 = vld [vmem:[%s1743 + $0x8] sm:$0xff]
        %v1746 = vld [vmem:[%s1743 + $0x10] sm:$0xff]
        %v1747 = vld [vmem:[%s1743 + $0x18] sm:$0xff]
        %v1748 = vld [vmem:[%s1743 + $0x20] sm:$0xff]
        %v1749 = vld [vmem:[%s1743 + $0x28] sm:$0xff]
        %v1750 = vld [vmem:[%s1743 + $0x30] sm:$0xff]
        %v1751 = vld [vmem:[%s1743 + $0x38] sm:$0xff]
        %v1752 = vld [vmem:[%s1743 + $0x40] sm:$0xff]
        %v1753 = vld [vmem:[%s1743 + $0x48] sm:$0xff]
        %v1754 = vld [vmem:[%s1743 + $0x50] sm:$0xff]
        %v1755 = vld [vmem:[%s1743 + $0x58] sm:$0xff]
        %v1756 = vld [vmem:[%s1743 + $0x60] sm:$0xff]
        %v1757 = vld [vmem:[%s1743 + $0x68] sm:$0xff]
        %v1758 = vld [vmem:[%s1743 + $0x70] sm:$0xff]
        %v1759 = vld [vmem:[%s1743 + $0x78] sm:$0xff]
        %v1760 = vld [vmem:[%s1743 + $0x80] sm:$0xff]
        %v1761 = vld [vmem:[%s1743 + $0x88] sm:$0xff]
        %v1762 = vld [vmem:[%s1743 + $0x90] sm:$0xff]
        %v1763 = vld [vmem:[%s1743 + $0x98] sm:$0xff]
        %v1764 = vld [vmem:[%s1743 + $0xa0] sm:$0xff]
        %v1765 = vld [vmem:[%s1743 + $0xa8] sm:$0xff]
        %v1766 = vld [vmem:[%s1743 + $0xb0] sm:$0xff]
        %v1767 = vld [vmem:[%s1743 + $0xb8] sm:$0xff]
        %v1768 = vld [vmem:[%s1743 + $0xc0] sm:$0xff]
        %v1769 = vld [vmem:[%s1743 + $0xc8] sm:$0xff]
        %v1770 = vld [vmem:[%s1743 + $0xd0] sm:$0xff]
        %v1771 = vld [vmem:[%s1743 + $0xd8] sm:$0xff]
        %v1772 = vld [vmem:[%s1743 + $0xe0] sm:$0xff]
        %v1773 = vld [vmem:[%s1743 + $0xe8] sm:$0xff]
        %v1774 = vld [vmem:[%s1743 + $0xf0] sm:$0xff]
        %v1775 = vld [vmem:[%s1743 + $0xf8] sm:$0xff]
        %v1776 = vld [vmem:[%s1743 + $0x100] sm:$0xff]
        %v1777 = vld [vmem:[%s1743 + $0x108] sm:$0xff]
        %v1778 = vld [vmem:[%s1743 + $0x110] sm:$0xff]
        %v1779 = vld [vmem:[%s1743 + $0x118] sm:$0xff]
        %v1780 = vld [vmem:[%s1743 + $0x120] sm:$0xff]
        %v1781 = vld [vmem:[%s1743 + $0x128] sm:$0xff]
        %v1782 = vld [vmem:[%s1743 + $0x130] sm:$0xff]
        %v1783 = vld [vmem:[%s1743 + $0x138] sm:$0xff]
        %v1784 = vld [vmem:[%s1743 + $0x140] sm:$0xff]
        %v1785 = vld [vmem:[%s1743 + $0x148] sm:$0xff]
        %v1786 = vld [vmem:[%s1743 + $0x150] sm:$0xff]
        %v1787 = vld [vmem:[%s1743 + $0x158] sm:$0xff]
        %v1788 = vld [vmem:[%s1743 + $0x160] sm:$0xff]
        %v1789 = vld [vmem:[%s1743 + $0x168] sm:$0xff]
        %v1790 = vld [vmem:[%s1743 + $0x170] sm:$0xff]
        %v1791 = vld [vmem:[%s1743 + $0x178] sm:$0xff]
        %v1792 = vld [vmem:[%s1743 + $0x180] sm:$0xff]
        %v1793 = vld [vmem:[%s1743 + $0x188] sm:$0xff]
        %v1794 = vld [vmem:[%s1743 + $0x190] sm:$0xff]
        %v1795 = vld [vmem:[%s1743 + $0x198] sm:$0xff]
        %v1796 = vld [vmem:[%s1743 + $0x1a0] sm:$0xff]
        %v1797 = vld [vmem:[%s1743 + $0x1a8] sm:$0xff]
        %v1798 = vld [vmem:[%s1743 + $0x1b0] sm:$0xff]
        %v1799 = vld [vmem:[%s1743 + $0x1b8] sm:$0xff]
        %v1800 = vld [vmem:[%s1743 + $0x1c0] sm:$0xff]
        %v1801 = vld [vmem:[%s1743 + $0x1c8] sm:$0xff]
        %v1802 = vld [vmem:[%s1743 + $0x1d0] sm:$0xff]
        %v1803 = vld [vmem:[%s1743 + $0x1d8] sm:$0xff]
        %v1804 = vld [vmem:[%s1743 + $0x1e0] sm:$0xff]
        %v1805 = vld [vmem:[%s1743 + $0x1e8] sm:$0xff]
        %v1806 = vld [vmem:[%s1743 + $0x1f0] sm:$0xff]
        %v1807 = vld [vmem:[%s1743 + $0x1f8] sm:$0xff]
        %v1808 = vld [vmem:[%s1743 + $0x200] sm:$0xff]
        %v1809 = vld [vmem:[%s1743 + $0x208] sm:$0xff]
        %v1810 = vld [vmem:[%s1743 + $0x210] sm:$0xff]
        %v1811 = vld [vmem:[%s1743 + $0x218] sm:$0xff]
        %v1812 = vld [vmem:[%s1743 + $0x220] sm:$0xff]
        %v1813 = vld [vmem:[%s1743 + $0x228] sm:$0xff]
        %v1814 = vld [vmem:[%s1743 + $0x230] sm:$0xff]
        %v1815 = vld [vmem:[%s1743 + $0x238] sm:$0xff]
        %v1816 = vld [vmem:[%s1743 + $0x240] sm:$0xff]
        %v1817 = vld [vmem:[%s1743 + $0x248] sm:$0xff]
        %v1818 = vld [vmem:[%s1743 + $0x250] sm:$0xff]
        %v1819 = vld [vmem:[%s1743 + $0x258] sm:$0xff]
        %v1820 = vld [vmem:[%s1743 + $0x260] sm:$0xff]
        %v1821 = vld [vmem:[%s1743 + $0x268] sm:$0xff]
        %v1822 = vld [vmem:[%s1743 + $0x270] sm:$0xff]
        %v1823 = vld [vmem:[%s1743 + $0x278] sm:$0xff]
        %v1824 = vld [vmem:[%s1743 + $0x280] sm:$0xff]
        %v1825 = vld [vmem:[%s1743 + $0x288] sm:$0xff]
        %v1826 = vld [vmem:[%s1743 + $0x290] sm:$0xff]
        %v1827 = vld [vmem:[%s1743 + $0x298] sm:$0xff]
        %v1828 = vld [vmem:[%s1743 + $0x2a0] sm:$0xff]
        %v1829 = vld [vmem:[%s1743 + $0x2a8] sm:$0xff]
        %v1830 = vld [vmem:[%s1743 + $0x2b0] sm:$0xff]
        %v1831 = vld [vmem:[%s1743 + $0x2b8] sm:$0xff]
        %v1832 = vld [vmem:[%s1743 + $0x2c0] sm:$0xff]
        %v1833 = vld [vmem:[%s1743 + $0x2c8] sm:$0xff]
        %v1834 = vld [vmem:[%s1743 + $0x2d0] sm:$0xff]
        %v1835 = vld [vmem:[%s1743 + $0x2d8] sm:$0xff]
        %v1836 = vld [vmem:[%s1743 + $0x2e0] sm:$0xff]
        %v1837 = vld [vmem:[%s1743 + $0x2e8] sm:$0xff]
        %v1838 = vld [vmem:[%s1743 + $0x2f0] sm:$0xff]
        %v1839 = vld [vmem:[%s1743 + $0x2f8] sm:$0xff]
        %v1840 = vld [vmem:[%s1743 + $0x300] sm:$0xff]
        %v1841 = vld [vmem:[%s1743 + $0x308] sm:$0xff]
        %v1842 = vld [vmem:[%s1743 + $0x310] sm:$0xff]
        %v1843 = vld [vmem:[%s1743 + $0x318] sm:$0xff]
        %v1844 = vld [vmem:[%s1743 + $0x320] sm:$0xff]
        %v1845 = vld [vmem:[%s1743 + $0x328] sm:$0xff]
        %v1846 = vld [vmem:[%s1743 + $0x330] sm:$0xff]
        %v1847 = vld [vmem:[%s1743 + $0x338] sm:$0xff]
        %v1848 = vld [vmem:[%s1743 + $0x340] sm:$0xff]
        %v1849 = vld [vmem:[%s1743 + $0x348] sm:$0xff]
        %v1850 = vld [vmem:[%s1743 + $0x350] sm:$0xff]
        %v1851 = vld [vmem:[%s1743 + $0x358] sm:$0xff]
        %v1852 = vld [vmem:[%s1743 + $0x360] sm:$0xff]
        %v1853 = vld [vmem:[%s1743 + $0x368] sm:$0xff]
        %v1854 = vld [vmem:[%s1743 + $0x370] sm:$0xff]
        %v1855 = vld [vmem:[%s1743 + $0x378] sm:$0xff]
        %v1856 = vld [vmem:[%s1743 + $0x380] sm:$0xff]
        %v1857 = vld [vmem:[%s1743 + $0x388] sm:$0xff]
        %v1858 = vld [vmem:[%s1743 + $0x390] sm:$0xff]
        %v1859 = vld [vmem:[%s1743 + $0x398] sm:$0xff]
        %v1860 = vld [vmem:[%s1743 + $0x3a0] sm:$0xff]
        %v1861 = vld [vmem:[%s1743 + $0x3a8] sm:$0xff]
        %v1862 = vld [vmem:[%s1743 + $0x3b0] sm:$0xff]
        %v1863 = vld [vmem:[%s1743 + $0x3b8] sm:$0xff]
        %v1864 = vld [vmem:[%s1743 + $0x3c0] sm:$0xff]
        %v1865 = vld [vmem:[%s1743 + $0x3c8] sm:$0xff]
        %v1866 = vld [vmem:[%s1743 + $0x3d0] sm:$0xff]
        %v1867 = vld [vmem:[%s1743 + $0x3d8] sm:$0xff]
        %v1868 = vld [vmem:[%s1743 + $0x3e0] sm:$0xff]
        %v1869 = vld [vmem:[%s1743 + $0x3e8] sm:$0xff]
        %v1870 = vld [vmem:[%s1743 + $0x3f0] sm:$0xff]
        %v1871 = vld [vmem:[%s1743 + $0x3f8] sm:$0xff]
        %v1872 = vld [vmem:[%s1743 + $0x400] sm:$0xff]
        %v1873 = vld [vmem:[%s1743 + $0x408] sm:$0xff]
        %v1874 = vld [vmem:[%s1743 + $0x410] sm:$0xff]
        %v1875 = vld [vmem:[%s1743 + $0x418] sm:$0xff]
        %v1876 = vld [vmem:[%s1743 + $0x420] sm:$0xff]
        %v1877 = vld [vmem:[%s1743 + $0x428] sm:$0xff]
        %v1878 = vld [vmem:[%s1743 + $0x430] sm:$0xff]
        %v1879 = vld [vmem:[%s1743 + $0x438] sm:$0xff]
        %v1880 = vld [vmem:[%s1743 + $0x440] sm:$0xff]
        %v1881 = vld [vmem:[%s1743 + $0x448] sm:$0xff]
        %v1882 = vld [vmem:[%s1743 + $0x450] sm:$0xff]
        %v1883 = vld [vmem:[%s1743 + $0x458] sm:$0xff]
        %v1884 = vld [vmem:[%s1743 + $0x460] sm:$0xff]
        %v1885 = vld [vmem:[%s1743 + $0x468] sm:$0xff]
        %v1886 = vld [vmem:[%s1743 + $0x470] sm:$0xff]
        %v1887 = vld [vmem:[%s1743 + $0x478] sm:$0xff]
        %v1888 = vld [vmem:[%s1743 + $0x480] sm:$0xff]
        %v1889 = vld [vmem:[%s1743 + $0x488] sm:$0xff]
        %v1890 = vld [vmem:[%s1743 + $0x490] sm:$0xff]
        %v1891 = vld [vmem:[%s1743 + $0x498] sm:$0xff]
        %v1892 = vld [vmem:[%s1743 + $0x4a0] sm:$0xff]
        %v1893 = vld [vmem:[%s1743 + $0x4a8] sm:$0xff]
        %v1894 = vld [vmem:[%s1743 + $0x4b0] sm:$0xff]
        %v1895 = vld [vmem:[%s1743 + $0x4b8] sm:$0xff]
        %v1896 = vld [vmem:[%s1743 + $0x4c0] sm:$0xff]
        %v1897 = vld [vmem:[%s1743 + $0x4c8] sm:$0xff]
        %v1898 = vld [vmem:[%s1743 + $0x4d0] sm:$0xff]
        %v1899 = vld [vmem:[%s1743 + $0x4d8] sm:$0xff]
        %v1900 = vld [vmem:[%s1743 + $0x4e0] sm:$0xff]
        %v1901 = vld [vmem:[%s1743 + $0x4e8] sm:$0xff]
        %v1902 = vld [vmem:[%s1743 + $0x4f0] sm:$0xff]
        %v1903 = vld [vmem:[%s1743 + $0x4f8] sm:$0xff]
        %v1904 = vld [vmem:[%s1743 + $0x500] sm:$0xff]
        %v1905 = vld [vmem:[%s1743 + $0x508] sm:$0xff]
        %v1906 = vld [vmem:[%s1743 + $0x510] sm:$0xff]
        %v1907 = vld [vmem:[%s1743 + $0x518] sm:$0xff]
        %v1908 = vld [vmem:[%s1743 + $0x520] sm:$0xff]
        %v1909 = vld [vmem:[%s1743 + $0x528] sm:$0xff]
        %v1910 = vld [vmem:[%s1743 + $0x530] sm:$0xff]
        %v1911 = vld [vmem:[%s1743 + $0x538] sm:$0xff]
        %v1912 = vld [vmem:[%s1743 + $0x540] sm:$0xff]
        %v1913 = vld [vmem:[%s1743 + $0x548] sm:$0xff]
        %v1914 = vld [vmem:[%s1743 + $0x550] sm:$0xff]
        %v1915 = vld [vmem:[%s1743 + $0x558] sm:$0xff]
        %v1916 = vld [vmem:[%s1743 + $0x560] sm:$0xff]
        %v1917 = vld [vmem:[%s1743 + $0x568] sm:$0xff]
        %v1918 = vld [vmem:[%s1743 + $0x570] sm:$0xff]
        %v1919 = vld [vmem:[%s1743 + $0x578] sm:$0xff]
        %v1920 = vld [vmem:[%s1743 + $0x580] sm:$0xff]
        %v1921 = vld [vmem:[%s1743 + $0x588] sm:$0xff]
        %v1922 = vld [vmem:[%s1743 + $0x590] sm:$0xff]
        %v1923 = vld [vmem:[%s1743 + $0x598] sm:$0xff]
        %v1924 = vld [vmem:[%s1743 + $0x5a0] sm:$0xff]
        %v1925 = vld [vmem:[%s1743 + $0x5a8] sm:$0xff]
        %v1926 = vld [vmem:[%s1743 + $0x5b0] sm:$0xff]
        %v1927 = vld [vmem:[%s1743 + $0x5b8] sm:$0xff]
        %v1928 = vld [vmem:[%s1743 + $0x5c0] sm:$0xff]
        %v1929 = vld [vmem:[%s1743 + $0x5c8] sm:$0xff]
        %v1930 = vld [vmem:[%s1743 + $0x5d0] sm:$0xff]
        %v1931 = vld [vmem:[%s1743 + $0x5d8] sm:$0xff]
        %v1932 = vld [vmem:[%s1743 + $0x5e0] sm:$0xff]
        %v1933 = vld [vmem:[%s1743 + $0x5e8] sm:$0xff]
        %v1934 = vld [vmem:[%s1743 + $0x5f0] sm:$0xff]
        %v1935 = vld [vmem:[%s1743 + $0x5f8] sm:$0xff]
        %v1936 = vld [vmem:[%s1743 + $0x600] sm:$0xff]
        %v1937 = vld [vmem:[%s1743 + $0x608] sm:$0xff]
        %v1938 = vld [vmem:[%s1743 + $0x610] sm:$0xff]
        %v1939 = vld [vmem:[%s1743 + $0x618] sm:$0xff]
        %v1940 = vld [vmem:[%s1743 + $0x620] sm:$0xff]
        %v1941 = vld [vmem:[%s1743 + $0x628] sm:$0xff]
        %v1942 = vld [vmem:[%s1743 + $0x630] sm:$0xff]
        %v1943 = vld [vmem:[%s1743 + $0x638] sm:$0xff]
        %v1944 = vld [vmem:[%s1743 + $0x640] sm:$0xff]
        %v1945 = vld [vmem:[%s1743 + $0x648] sm:$0xff]
        %v1946 = vld [vmem:[%s1743 + $0x650] sm:$0xff]
        %v1947 = vld [vmem:[%s1743 + $0x658] sm:$0xff]
        %v1948 = vld [vmem:[%s1743 + $0x660] sm:$0xff]
        %v1949 = vld [vmem:[%s1743 + $0x668] sm:$0xff]
        %v1950 = vld [vmem:[%s1743 + $0x670] sm:$0xff]
        %v1951 = vld [vmem:[%s1743 + $0x678] sm:$0xff]
        %v1952 = vld [vmem:[%s1743 + $0x680] sm:$0xff]
        %v1953 = vld [vmem:[%s1743 + $0x688] sm:$0xff]
        %v1954 = vld [vmem:[%s1743 + $0x690] sm:$0xff]
        %v1955 = vld [vmem:[%s1743 + $0x698] sm:$0xff]
        %v1956 = vld [vmem:[%s1743 + $0x6a0] sm:$0xff]
        %v1957 = vld [vmem:[%s1743 + $0x6a8] sm:$0xff]
        %v1958 = vld [vmem:[%s1743 + $0x6b0] sm:$0xff]
        %v1959 = vld [vmem:[%s1743 + $0x6b8] sm:$0xff]
        %v1960 = vld [vmem:[%s1743 + $0x6c0] sm:$0xff]
        %v1961 = vld [vmem:[%s1743 + $0x6c8] sm:$0xff]
        %v1962 = vld [vmem:[%s1743 + $0x6d0] sm:$0xff]
        %v1963 = vld [vmem:[%s1743 + $0x6d8] sm:$0xff]
        %v1964 = vld [vmem:[%s1743 + $0x6e0] sm:$0xff]
        %v1965 = vld [vmem:[%s1743 + $0x6e8] sm:$0xff]
        %v1966 = vld [vmem:[%s1743 + $0x6f0] sm:$0xff]
        %v1967 = vld [vmem:[%s1743 + $0x6f8] sm:$0xff]
        %v1968 = vld [vmem:[%s1743 + $0x700] sm:$0xff]
        %v1969 = vld [vmem:[%s1743 + $0x708] sm:$0xff]
        %v1970 = vld [vmem:[%s1743 + $0x710] sm:$0xff]
        %v1971 = vld [vmem:[%s1743 + $0x718] sm:$0xff]
        %v1972 = vld [vmem:[%s1743 + $0x720] sm:$0xff]
        %v1973 = vld [vmem:[%s1743 + $0x728] sm:$0xff]
        %v1974 = vld [vmem:[%s1743 + $0x730] sm:$0xff]
        %v1975 = vld [vmem:[%s1743 + $0x738] sm:$0xff]
        %v1976 = vld [vmem:[%s1743 + $0x740] sm:$0xff]
        %v1977 = vld [vmem:[%s1743 + $0x748] sm:$0xff]
        %v1978 = vld [vmem:[%s1743 + $0x750] sm:$0xff]
        %v1979 = vld [vmem:[%s1743 + $0x758] sm:$0xff]
        %v1980 = vld [vmem:[%s1743 + $0x760] sm:$0xff]
        %v1981 = vld [vmem:[%s1743 + $0x768] sm:$0xff]
        %v1982 = vld [vmem:[%s1743 + $0x770] sm:$0xff]
        %v1983 = vld [vmem:[%s1743 + $0x778] sm:$0xff]
        %v1984 = vld [vmem:[%s1743 + $0x780] sm:$0xff]
        %v1985 = vld [vmem:[%s1743 + $0x788] sm:$0xff]
        %v1986 = vld [vmem:[%s1743 + $0x790] sm:$0xff]
        %v1987 = vld [vmem:[%s1743 + $0x798] sm:$0xff]
        %v1988 = vld [vmem:[%s1743 + $0x7a0] sm:$0xff]
        %v1989 = vld [vmem:[%s1743 + $0x7a8] sm:$0xff]
        %v1990 = vld [vmem:[%s1743 + $0x7b0] sm:$0xff]
        %v1991 = vld [vmem:[%s1743 + $0x7b8] sm:$0xff]
        %v1992 = vld [vmem:[%s1743 + $0x7c0] sm:$0xff]
        %v1993 = vld [vmem:[%s1743 + $0x7c8] sm:$0xff]
        %v1994 = vld [vmem:[%s1743 + $0x7d0] sm:$0xff]
        %v1995 = vld [vmem:[%s1743 + $0x7d8] sm:$0xff]
        %v1996 = vld [vmem:[%s1743 + $0x7e0] sm:$0xff]
        %v1997 = vld [vmem:[%s1743 + $0x7e8] sm:$0xff]
        %v1998 = vld [vmem:[%s1743 + $0x7f0] sm:$0xff]
        %v1999 = vld [vmem:[%s1743 + $0x7f8] sm:$0xff]
        %2000 = vmatprep.subr.mxu0 %v1745
        %2001 = vmatpush1.msra.mxu0 %v1744
        %2002 = vmatprep.subr.mxu0 %v1749
        %2003 = vmatpush1.msra.mxu0 %v1748
        %2004 = vmatprep.subr.mxu0 %v1753
        %2005 = vmatpush1.msra.mxu0 %v1752
        %2006 = vmatprep.subr.mxu0 %v1757
        %2007 = vmatpush1.msra.mxu0 %v1756
        %2008 = vmatprep.subr.mxu0 %v1761
        %2009 = vmatpush1.msra.mxu0 %v1760
        %2010 = vmatprep.subr.mxu0 %v1765
        %2011 = vmatpush1.msra.mxu0 %v1764
        %2012 = vmatprep.subr.mxu0 %v1769
        %2013 = vmatpush1.msra.mxu0 %v1768
        %2014 = vmatprep.subr.mxu0 %v1773
        %2015 = vmatpush1.msra.mxu0 %v1772
        %2016 = vmatprep.subr.mxu0 %v1777
        %2017 = vmatpush1.msra.mxu0 %v1776
        %2018 = vmatprep.subr.mxu0 %v1781
        %2019 = vmatpush1.msra.mxu0 %v1780
        %2020 = vmatprep.subr.mxu0 %v1785
        %2021 = vmatpush1.msra.mxu0 %v1784
        %2022 = vmatprep.subr.mxu0 %v1789
        %2023 = vmatpush1.msra.mxu0 %v1788
        %2024 = vmatprep.subr.mxu0 %v1793
        %2025 = vmatpush1.msra.mxu0 %v1792
        %2026 = vmatprep.subr.mxu0 %v1797
        %2027 = vmatpush1.msra.mxu0 %v1796
        %2028 = vmatprep.subr.mxu0 %v1801
        %2029 = vmatpush1.msra.mxu0 %v1800
        %2030 = vmatprep.subr.mxu0 %v1805
        %2031 = vmatpush1.msra.mxu0 %v1804
        %2032 = vmatprep.subr.mxu0 %v1809
        %2033 = vmatpush1.msra.mxu0 %v1808
        %2034 = vmatprep.subr.mxu0 %v1813
        %2035 = vmatpush1.msra.mxu0 %v1812
        %2036 = vmatprep.subr.mxu0 %v1817
        %2037 = vmatpush1.msra.mxu0 %v1816
        %2038 = vmatprep.subr.mxu0 %v1821
        %2039 = vmatpush1.msra.mxu0 %v1820
        %2040 = vmatprep.subr.mxu0 %v1825
        %2041 = vmatpush1.msra.mxu0 %v1824
        %2042 = vmatprep.subr.mxu0 %v1829
        %2043 = vmatpush1.msra.mxu0 %v1828
        %2044 = vmatprep.subr.mxu0 %v1833
        %2045 = vmatpush1.msra.mxu0 %v1832
        %2046 = vmatprep.subr.mxu0 %v1837
        %2047 = vmatpush1.msra.mxu0 %v1836
        %2048 = vmatprep.subr.mxu0 %v1841
        %2049 = vmatpush1.msra.mxu0 %v1840
        %2050 = vmatprep.subr.mxu0 %v1845
        %2051 = vmatpush1.msra.mxu0 %v1844
        %2052 = vmatprep.subr.mxu0 %v1849
        %2053 = vmatpush1.msra.mxu0 %v1848
        %2054 = vmatprep.subr.mxu0 %v1853
        %2055 = vmatpush1.msra.mxu0 %v1852
        %2056 = vmatprep.subr.mxu0 %v1857
        %2057 = vmatpush1.msra.mxu0 %v1856
        %2058 = vmatprep.subr.mxu0 %v1861
        %2059 = vmatpush1.msra.mxu0 %v1860
        %2060 = vmatprep.subr.mxu0 %v1865
        %2061 = vmatpush1.msra.mxu0 %v1864
        %2062 = vmatprep.subr.mxu0 %v1869
        %2063 = vmatpush1.msra.mxu0 %v1868
        %2064 = vmatprep.mubr.f32.mxu0 %v1396
        %2065 = vmatmul.mubr.f32.gmra.mrb[0].mxu0 %v1395
        %v2066 = vpop.f32.mrb[0].mxu0
        %v2067 = vadd.f32 0.0, %v2066
        %v2068 = vpop.f32.mrb[0].mxu0
        %v2069 = vadd.f32 0.0, %v2068
        %2070 = vdwg.mxu0
        %2071 = vmatprep.subr.mxu0 %v1873
        %2072 = vmatpush1.msra.mxu0 %v1872
        %2073 = vmatprep.subr.mxu0 %v1877
        %2074 = vmatpush1.msra.mxu0 %v1876
        %2075 = vmatprep.subr.mxu0 %v1881
        %2076 = vmatpush1.msra.mxu0 %v1880
        %2077 = vmatprep.subr.mxu0 %v1885
        %2078 = vmatpush1.msra.mxu0 %v1884
        %2079 = vmatprep.subr.mxu0 %v1889
        %2080 = vmatpush1.msra.mxu0 %v1888
        %2081 = vmatprep.subr.mxu0 %v1893
        %2082 = vmatpush1.msra.mxu0 %v1892
        %2083 = vmatprep.subr.mxu0 %v1897
        %2084 = vmatpush1.msra.mxu0 %v1896
        %2085 = vmatprep.subr.mxu0 %v1901
        %2086 = vmatpush1.msra.mxu0 %v1900
        %2087 = vmatprep.subr.mxu0 %v1905
        %2088 = vmatpush1.msra.mxu0 %v1904
        %2089 = vmatprep.subr.mxu0 %v1909
        %2090 = vmatpush1.msra.mxu0 %v1908
        %2091 = vmatprep.subr.mxu0 %v1913
        %2092 = vmatpush1.msra.mxu0 %v1912
        %2093 = vmatprep.subr.mxu0 %v1917
        %2094 = vmatpush1.msra.mxu0 %v1916
        %2095 = vmatprep.subr.mxu0 %v1921
        %2096 = vmatpush1.msra.mxu0 %v1920
        %2097 = vmatprep.subr.mxu0 %v1925
        %2098 = vmatpush1.msra.mxu0 %v1924
        %2099 = vmatprep.subr.mxu0 %v1929
        %2100 = vmatpush1.msra.mxu0 %v1928
        %2101 = vmatprep.subr.mxu0 %v1933
        %2102 = vmatpush1.msra.mxu0 %v1932
        %2103 = vmatprep.subr.mxu0 %v1937
        %2104 = vmatpush1.msra.mxu0 %v1936
        %2105 = vmatprep.subr.mxu0 %v1941
        %2106 = vmatpush1.msra.mxu0 %v1940
        %2107 = vmatprep.subr.mxu0 %v1945
        %2108 = vmatpush1.msra.mxu0 %v1944
        %2109 = vmatprep.subr.mxu0 %v1949
        %2110 = vmatpush1.msra.mxu0 %v1948
        %2111 = vmatprep.subr.mxu0 %v1953
        %2112 = vmatpush1.msra.mxu0 %v1952
        %2113 = vmatprep.subr.mxu0 %v1957
        %2114 = vmatpush1.msra.mxu0 %v1956
        %2115 = vmatprep.subr.mxu0 %v1961
        %2116 = vmatpush1.msra.mxu0 %v1960
        %2117 = vmatprep.subr.mxu0 %v1965
        %2118 = vmatpush1.msra.mxu0 %v1964
        %2119 = vmatprep.subr.mxu0 %v1969
        %2120 = vmatpush1.msra.mxu0 %v1968
        %2121 = vmatprep.subr.mxu0 %v1973
        %2122 = vmatpush1.msra.mxu0 %v1972
        %2123 = vmatprep.subr.mxu0 %v1977
        %2124 = vmatpush1.msra.mxu0 %v1976
        %2125 = vmatprep.subr.mxu0 %v1981
        %2126 = vmatpush1.msra.mxu0 %v1980
        %2127 = vmatprep.subr.mxu0 %v1985
        %2128 = vmatpush1.msra.mxu0 %v1984
        %2129 = vmatprep.subr.mxu0 %v1989
        %2130 = vmatpush1.msra.mxu0 %v1988
        %2131 = vmatprep.subr.mxu0 %v1993
        %2132 = vmatpush1.msra.mxu0 %v1992
        %2133 = vmatprep.subr.mxu0 %v1997
        %2134 = vmatpush1.msra.mxu0 %v1996
        %2135 = vmatprep.mubr.f32.mxu0 %v1398
        %2136 = vmatmul.mubr.f32.gmra.mrb[0].mxu0 %v1397
        %v2137 = vpop.f32.mrb[0].mxu0
        %v2138 = vadd.f32 %v2067, %v2137
        %v2139 = vpop.f32.mrb[0].mxu0
        %v2140 = vadd.f32 %v2069, %v2139
        %2141 = vdwg.mxu0
        %2142 = vmatprep.subr.mxu0 %v1747
        %2143 = vmatpush1.msra.mxu0 %v1746
        %2144 = vmatprep.subr.mxu0 %v1751
        %2145 = vmatpush1.msra.mxu0 %v1750
        %2146 = vmatprep.subr.mxu0 %v1755
        %2147 = vmatpush1.msra.mxu0 %v1754
        %2148 = vmatprep.subr.mxu0 %v1759
        %2149 = vmatpush1.msra.mxu0 %v1758
        %2150 = vmatprep.subr.mxu0 %v1763
        %2151 = vmatpush1.msra.mxu0 %v1762
        %2152 = vmatprep.subr.mxu0 %v1767
        %2153 = vmatpush1.msra.mxu0 %v1766
        %2154 = vmatprep.subr.mxu0 %v1771
        %2155 = vmatpush1.msra.mxu0 %v1770
        %2156 = vmatprep.subr.mxu0 %v1775
        %2157 = vmatpush1.msra.mxu0 %v1774
        %2158 = vmatprep.subr.mxu0 %v1779
        %2159 = vmatpush1.msra.mxu0 %v1778
        %2160 = vmatprep.subr.mxu0 %v1783
        %2161 = vmatpush1.msra.mxu0 %v1782
        %2162 = vmatprep.subr.mxu0 %v1787
        %2163 = vmatpush1.msra.mxu0 %v1786
        %2164 = vmatprep.subr.mxu0 %v1791
        %2165 = vmatpush1.msra.mxu0 %v1790
        %2166 = vmatprep.subr.mxu0 %v1795
        %2167 = vmatpush1.msra.mxu0 %v1794
        %2168 = vmatprep.subr.mxu0 %v1799
        %2169 = vmatpush1.msra.mxu0 %v1798
        %2170 = vmatprep.subr.mxu0 %v1803
        %2171 = vmatpush1.msra.mxu0 %v1802
        %2172 = vmatprep.subr.mxu0 %v1807
        %2173 = vmatpush1.msra.mxu0 %v1806
        %2174 = vmatprep.subr.mxu0 %v1811
        %2175 = vmatpush1.msra.mxu0 %v1810
        %2176 = vmatprep.subr.mxu0 %v1815
        %2177 = vmatpush1.msra.mxu0 %v1814
        %2178 = vmatprep.subr.mxu0 %v1819
        %2179 = vmatpush1.msra.mxu0 %v1818
        %2180 = vmatprep.subr.mxu0 %v1823
        %2181 = vmatpush1.msra.mxu0 %v1822
        %2182 = vmatprep.subr.mxu0 %v1827
        %2183 = vmatpush1.msra.mxu0 %v1826
        %2184 = vmatprep.subr.mxu0 %v1831
        %2185 = vmatpush1.msra.mxu0 %v1830
        %2186 = vmatprep.subr.mxu0 %v1835
        %2187 = vmatpush1.msra.mxu0 %v1834
        %2188 = vmatprep.subr.mxu0 %v1839
        %2189 = vmatpush1.msra.mxu0 %v1838
        %2190 = vmatprep.subr.mxu0 %v1843
        %2191 = vmatpush1.msra.mxu0 %v1842
        %2192 = vmatprep.subr.mxu0 %v1847
        %2193 = vmatpush1.msra.mxu0 %v1846
        %2194 = vmatprep.subr.mxu0 %v1851
        %2195 = vmatpush1.msra.mxu0 %v1850
        %2196 = vmatprep.subr.mxu0 %v1855
        %2197 = vmatpush1.msra.mxu0 %v1854
        %2198 = vmatprep.subr.mxu0 %v1859
        %2199 = vmatpush1.msra.mxu0 %v1858
        %2200 = vmatprep.subr.mxu0 %v1863
        %2201 = vmatpush1.msra.mxu0 %v1862
        %2202 = vmatprep.subr.mxu0 %v1867
        %2203 = vmatpush1.msra.mxu0 %v1866
        %2204 = vmatprep.subr.mxu0 %v1871
        %2205 = vmatpush1.msra.mxu0 %v1870
        %2206 = vmatprep.mubr.f32.mxu0 %v1396
        %2207 = vmatmul.mubr.f32.gmra.mrb[0].mxu0 %v1395
        %v2208 = vpop.f32.mrb[0].mxu0
        %v2209 = vadd.f32 0.0, %v2208
        %v2210 = vpop.f32.mrb[0].mxu0
        %v2211 = vadd.f32 0.0, %v2210
        %2212 = vdwg.mxu0
        %2213 = vmatprep.subr.mxu0 %v1875
        %2214 = vmatpush1.msra.mxu0 %v1874
        %2215 = vmatprep.subr.mxu0 %v1879
        %2216 = vmatpush1.msra.mxu0 %v1878
        %2217 = vmatprep.subr.mxu0 %v1883
        %2218 = vmatpush1.msra.mxu0 %v1882
        %2219 = vmatprep.subr.mxu0 %v1887
        %2220 = vmatpush1.msra.mxu0 %v1886
        %2221 = vmatprep.subr.mxu0 %v1891
        %2222 = vmatpush1.msra.mxu0 %v1890
        %2223 = vmatprep.subr.mxu0 %v1895
        %2224 = vmatpush1.msra.mxu0 %v1894
        %2225 = vmatprep.subr.mxu0 %v1899
        %2226 = vmatpush1.msra.mxu0 %v1898
        %2227 = vmatprep.subr.mxu0 %v1903
        %2228 = vmatpush1.msra.mxu0 %v1902
        %2229 = vmatprep.subr.mxu0 %v1907
        %2230 = vmatpush1.msra.mxu0 %v1906
        %2231 = vmatprep.subr.mxu0 %v1911
        %2232 = vmatpush1.msra.mxu0 %v1910
        %2233 = vmatprep.subr.mxu0 %v1915
        %2234 = vmatpush1.msra.mxu0 %v1914
        %2235 = vmatprep.subr.mxu0 %v1919
        %2236 = vmatpush1.msra.mxu0 %v1918
        %2237 = vmatprep.subr.mxu0 %v1923
        %2238 = vmatpush1.msra.mxu0 %v1922
        %2239 = vmatprep.subr.mxu0 %v1927
        %2240 = vmatpush1.msra.mxu0 %v1926
        %2241 = vmatprep.subr.mxu0 %v1931
        %2242 = vmatpush1.msra.mxu0 %v1930
        %2243 = vmatprep.subr.mxu0 %v1935
        %2244 = vmatpush1.msra.mxu0 %v1934
        %2245 = vmatprep.subr.mxu0 %v1939
        %2246 = vmatpush1.msra.mxu0 %v1938
        %2247 = vmatprep.subr.mxu0 %v1943
        %2248 = vmatpush1.msra.mxu0 %v1942
        %2249 = vmatprep.subr.mxu0 %v1947
        %2250 = vmatpush1.msra.mxu0 %v1946
        %2251 = vmatprep.subr.mxu0 %v1951
        %2252 = vmatpush1.msra.mxu0 %v1950
        %2253 = vmatprep.subr.mxu0 %v1955
        %2254 = vmatpush1.msra.mxu0 %v1954
        %2255 = vmatprep.subr.mxu0 %v1959
        %2256 = vmatpush1.msra.mxu0 %v1958
        %2257 = vmatprep.subr.mxu0 %v1963
        %2258 = vmatpush1.msra.mxu0 %v1962
        %2259 = vmatprep.subr.mxu0 %v1967
        %2260 = vmatpush1.msra.mxu0 %v1966
        %2261 = vmatprep.subr.mxu0 %v1971
        %2262 = vmatpush1.msra.mxu0 %v1970
        %2263 = vmatprep.subr.mxu0 %v1975
        %2264 = vmatpush1.msra.mxu0 %v1974
        %2265 = vmatprep.subr.mxu0 %v1979
        %2266 = vmatpush1.msra.mxu0 %v1978
        %2267 = vmatprep.subr.mxu0 %v1983
        %2268 = vmatpush1.msra.mxu0 %v1982
        %2269 = vmatprep.subr.mxu0 %v1987
        %2270 = vmatpush1.msra.mxu0 %v1986
        %2271 = vmatprep.subr.mxu0 %v1991
        %2272 = vmatpush1.msra.mxu0 %v1990
        %2273 = vmatprep.subr.mxu0 %v1995
        %2274 = vmatpush1.msra.mxu0 %v1994
        %2275 = vmatprep.subr.mxu0 %v1999
        %2276 = vmatpush1.msra.mxu0 %v1998
        %2277 = vmatprep.mubr.f32.mxu0 %v1398
        %2278 = vmatmul.mubr.f32.gmra.mrb[0].mxu0 %v1397
        %v2279 = vpop.f32.mrb[0].mxu0
        %v2280 = vadd.f32 %v2209, %v2279
        %v2281 = vpop.f32.mrb[0].mxu0
        %v2282 = vadd.f32 %v2211, %v2281
        %2283 = vdwg.mxu0
        %2284 = vmatprep.subr.mxu0 %v1488
        %2285 = vmatpush1.msra.mxu0 %v1487
        %2286 = vmatprep.subr.mxu0 %v1492
        %2287 = vmatpush1.msra.mxu0 %v1491
        %2288 = vmatprep.subr.mxu0 %v1496
        %2289 = vmatpush1.msra.mxu0 %v1495
        %2290 = vmatprep.subr.mxu0 %v1500
        %2291 = vmatpush1.msra.mxu0 %v1499
        %2292 = vmatprep.subr.mxu0 %v1504
        %2293 = vmatpush1.msra.mxu0 %v1503
        %2294 = vmatprep.subr.mxu0 %v1508
        %2295 = vmatpush1.msra.mxu0 %v1507
        %2296 = vmatprep.subr.mxu0 %v1512
        %2297 = vmatpush1.msra.mxu0 %v1511
        %2298 = vmatprep.subr.mxu0 %v1516
        %2299 = vmatpush1.msra.mxu0 %v1515
        %2300 = vmatprep.subr.mxu0 %v1520
        %2301 = vmatpush1.msra.mxu0 %v1519
        %2302 = vmatprep.subr.mxu0 %v1524
        %2303 = vmatpush1.msra.mxu0 %v1523
        %2304 = vmatprep.subr.mxu0 %v1528
        %2305 = vmatpush1.msra.mxu0 %v1527
        %2306 = vmatprep.subr.mxu0 %v1532
        %2307 = vmatpush1.msra.mxu0 %v1531
        %2308 = vmatprep.subr.mxu0 %v1536
        %2309 = vmatpush1.msra.mxu0 %v1535
        %2310 = vmatprep.subr.mxu0 %v1540
        %2311 = vmatpush1.msra.mxu0 %v1539
        %2312 = vmatprep.subr.mxu0 %v1544
        %2313 = vmatpush1.msra.mxu0 %v1543
        %2314 = vmatprep.subr.mxu0 %v1548
        %2315 = vmatpush1.msra.mxu0 %v1547
        %2316 = vmatprep.subr.mxu0 %v1552
        %2317 = vmatpush1.msra.mxu0 %v1551
        %2318 = vmatprep.subr.mxu0 %v1556
        %2319 = vmatpush1.msra.mxu0 %v1555
        %2320 = vmatprep.subr.mxu0 %v1560
        %2321 = vmatpush1.msra.mxu0 %v1559
        %2322 = vmatprep.subr.mxu0 %v1564
        %2323 = vmatpush1.msra.mxu0 %v1563
        %2324 = vmatprep.subr.mxu0 %v1568
        %2325 = vmatpush1.msra.mxu0 %v1567
        %2326 = vmatprep.subr.mxu0 %v1572
        %2327 = vmatpush1.msra.mxu0 %v1571
        %2328 = vmatprep.subr.mxu0 %v1576
        %2329 = vmatpush1.msra.mxu0 %v1575
        %2330 = vmatprep.subr.mxu0 %v1580
        %2331 = vmatpush1.msra.mxu0 %v1579
        %2332 = vmatprep.subr.mxu0 %v1584
        %2333 = vmatpush1.msra.mxu0 %v1583
        %2334 = vmatprep.subr.mxu0 %v1588
        %2335 = vmatpush1.msra.mxu0 %v1587
        %2336 = vmatprep.subr.mxu0 %v1592
        %2337 = vmatpush1.msra.mxu0 %v1591
        %2338 = vmatprep.subr.mxu0 %v1596
        %2339 = vmatpush1.msra.mxu0 %v1595
        %2340 = vmatprep.subr.mxu0 %v1600
        %2341 = vmatpush1.msra.mxu0 %v1599
        %2342 = vmatprep.subr.mxu0 %v1604
        %2343 = vmatpush1.msra.mxu0 %v1603
        %2344 = vmatprep.subr.mxu0 %v1608
        %2345 = vmatpush1.msra.mxu0 %v1607
        %2346 = vmatprep.subr.mxu0 %v1612
        %2347 = vmatpush1.msra.mxu0 %v1611
        %2348 = vmatprep.mubr.f32.mxu0 %v1472
        %2349 = vmatmul.mubr.f32.gmra.mrb[0].mxu0 %v1471
        %v2350 = vpop.f32.mrb[0].mxu0
        %v2351 = vadd.f32 %v2138, %v2350
        %v2352 = vpop.f32.mrb[0].mxu0
        %v2353 = vadd.f32 %v2140, %v2352
        %2354 = vdwg.mxu0
        %2355 = vmatprep.subr.mxu0 %v1616
        %2356 = vmatpush1.msra.mxu0 %v1615
        %2357 = vmatprep.subr.mxu0 %v1620
        %2358 = vmatpush1.msra.mxu0 %v1619
        %2359 = vmatprep.subr.mxu0 %v1624
        %2360 = vmatpush1.msra.mxu0 %v1623
        %2361 = vmatprep.subr.mxu0 %v1628
        %2362 = vmatpush1.msra.mxu0 %v1627
        %2363 = vmatprep.subr.mxu0 %v1632
        %2364 = vmatpush1.msra.mxu0 %v1631
        %2365 = vmatprep.subr.mxu0 %v1636
        %2366 = vmatpush1.msra.mxu0 %v1635
        %2367 = vmatprep.subr.mxu0 %v1640
        %2368 = vmatpush1.msra.mxu0 %v1639
        %2369 = vmatprep.subr.mxu0 %v1644
        %2370 = vmatpush1.msra.mxu0 %v1643
        %2371 = vmatprep.subr.mxu0 %v1648
        %2372 = vmatpush1.msra.mxu0 %v1647
        %2373 = vmatprep.subr.mxu0 %v1652
        %2374 = vmatpush1.msra.mxu0 %v1651
        %2375 = vmatprep.subr.mxu0 %v1656
        %2376 = vmatpush1.msra.mxu0 %v1655
        %2377 = vmatprep.subr.mxu0 %v1660
        %2378 = vmatpush1.msra.mxu0 %v1659
        %2379 = vmatprep.subr.mxu0 %v1664
        %2380 = vmatpush1.msra.mxu0 %v1663
        %2381 = vmatprep.subr.mxu0 %v1668
        %2382 = vmatpush1.msra.mxu0 %v1667
        %2383 = vmatprep.subr.mxu0 %v1672
        %2384 = vmatpush1.msra.mxu0 %v1671
        %2385 = vmatprep.subr.mxu0 %v1676
        %2386 = vmatpush1.msra.mxu0 %v1675
        %2387 = vmatprep.subr.mxu0 %v1680
        %2388 = vmatpush1.msra.mxu0 %v1679
        %2389 = vmatprep.subr.mxu0 %v1684
        %2390 = vmatpush1.msra.mxu0 %v1683
        %2391 = vmatprep.subr.mxu0 %v1688
        %2392 = vmatpush1.msra.mxu0 %v1687
        %2393 = vmatprep.subr.mxu0 %v1692
        %2394 = vmatpush1.msra.mxu0 %v1691
        %2395 = vmatprep.subr.mxu0 %v1696
        %2396 = vmatpush1.msra.mxu0 %v1695
        %2397 = vmatprep.subr.mxu0 %v1700
        %2398 = vmatpush1.msra.mxu0 %v1699
        %2399 = vmatprep.subr.mxu0 %v1704
        %2400 = vmatpush1.msra.mxu0 %v1703
        %2401 = vmatprep.subr.mxu0 %v1708
        %2402 = vmatpush1.msra.mxu0 %v1707
        %2403 = vmatprep.subr.mxu0 %v1712
        %2404 = vmatpush1.msra.mxu0 %v1711
        %2405 = vmatprep.subr.mxu0 %v1716
        %2406 = vmatpush1.msra.mxu0 %v1715
        %2407 = vmatprep.subr.mxu0 %v1720
        %2408 = vmatpush1.msra.mxu0 %v1719
        %2409 = vmatprep.subr.mxu0 %v1724
        %2410 = vmatpush1.msra.mxu0 %v1723
        %2411 = vmatprep.subr.mxu0 %v1728
        %2412 = vmatpush1.msra.mxu0 %v1727
        %2413 = vmatprep.subr.mxu0 %v1732
        %2414 = vmatpush1.msra.mxu0 %v1731
        %2415 = vmatprep.subr.mxu0 %v1736
        %2416 = vmatpush1.msra.mxu0 %v1735
        %2417 = vmatprep.subr.mxu0 %v1740
        %2418 = vmatpush1.msra.mxu0 %v1739
        %2419 = vmatprep.mubr.f32.mxu0 %v1474
        %2420 = vmatmul.mubr.f32.gmra.mrb[0].mxu0 %v1473
        %v2421 = vpop.f32.mrb[0].mxu0
        %v2422 = vadd.f32 %v2351, %v2421
        %v2423 = vpop.f32.mrb[0].mxu0
        %v2424 = vadd.f32 %v2353, %v2423
        %2425 = vdwg.mxu0
        %2426 = vmatprep.subr.mxu0 %v1490
        %2427 = vmatpush1.msra.mxu0 %v1489
        %2428 = vmatprep.subr.mxu0 %v1494
        %2429 = vmatpush1.msra.mxu0 %v1493
        %2430 = vmatprep.subr.mxu0 %v1498
        %2431 = vmatpush1.msra.mxu0 %v1497
        %2432 = vmatprep.subr.mxu0 %v1502
        %2433 = vmatpush1.msra.mxu0 %v1501
        %2434 = vmatprep.subr.mxu0 %v1506
        %2435 = vmatpush1.msra.mxu0 %v1505
        %2436 = vmatprep.subr.mxu0 %v1510
        %2437 = vmatpush1.msra.mxu0 %v1509
        %2438 = vmatprep.subr.mxu0 %v1514
        %2439 = vmatpush1.msra.mxu0 %v1513
        %2440 = vmatprep.subr.mxu0 %v1518
        %2441 = vmatpush1.msra.mxu0 %v1517
        %2442 = vmatprep.subr.mxu0 %v1522
        %2443 = vmatpush1.msra.mxu0 %v1521
        %2444 = vmatprep.subr.mxu0 %v1526
        %2445 = vmatpush1.msra.mxu0 %v1525
        %2446 = vmatprep.subr.mxu0 %v1530
        %2447 = vmatpush1.msra.mxu0 %v1529
        %2448 = vmatprep.subr.mxu0 %v1534
        %2449 = vmatpush1.msra.mxu0 %v1533
        %2450 = vmatprep.subr.mxu0 %v1538
        %2451 = vmatpush1.msra.mxu0 %v1537
        %2452 = vmatprep.subr.mxu0 %v1542
        %2453 = vmatpush1.msra.mxu0 %v1541
        %2454 = vmatprep.subr.mxu0 %v1546
        %2455 = vmatpush1.msra.mxu0 %v1545
        %2456 = vmatprep.subr.mxu0 %v1550
        %2457 = vmatpush1.msra.mxu0 %v1549
        %2458 = vmatprep.subr.mxu0 %v1554
        %2459 = vmatpush1.msra.mxu0 %v1553
        %2460 = vmatprep.subr.mxu0 %v1558
        %2461 = vmatpush1.msra.mxu0 %v1557
        %2462 = vmatprep.subr.mxu0 %v1562
        %2463 = vmatpush1.msra.mxu0 %v1561
        %2464 = vmatprep.subr.mxu0 %v1566
        %2465 = vmatpush1.msra.mxu0 %v1565
        %2466 = vmatprep.subr.mxu0 %v1570
        %2467 = vmatpush1.msra.mxu0 %v1569
        %2468 = vmatprep.subr.mxu0 %v1574
        %2469 = vmatpush1.msra.mxu0 %v1573
        %2470 = vmatprep.subr.mxu0 %v1578
        %2471 = vmatpush1.msra.mxu0 %v1577
        %2472 = vmatprep.subr.mxu0 %v1582
        %2473 = vmatpush1.msra.mxu0 %v1581
        %2474 = vmatprep.subr.mxu0 %v1586
        %2475 = vmatpush1.msra.mxu0 %v1585
        %2476 = vmatprep.subr.mxu0 %v1590
        %2477 = vmatpush1.msra.mxu0 %v1589
        %2478 = vmatprep.subr.mxu0 %v1594
        %2479 = vmatpush1.msra.mxu0 %v1593
        %2480 = vmatprep.subr.mxu0 %v1598
        %2481 = vmatpush1.msra.mxu0 %v1597
        %2482 = vmatprep.subr.mxu0 %v1602
        %2483 = vmatpush1.msra.mxu0 %v1601
        %2484 = vmatprep.subr.mxu0 %v1606
        %2485 = vmatpush1.msra.mxu0 %v1605
        %2486 = vmatprep.subr.mxu0 %v1610
        %2487 = vmatpush1.msra.mxu0 %v1609
        %2488 = vmatprep.subr.mxu0 %v1614
        %2489 = vmatpush1.msra.mxu0 %v1613
        %2490 = vmatprep.mubr.f32.mxu0 %v1472
        %2491 = vmatmul.mubr.f32.gmra.mrb[0].mxu0 %v1471
        %v2492 = vpop.f32.mrb[0].mxu0
        %v2493 = vadd.f32 %v2280, %v2492
        %v2494 = vpop.f32.mrb[0].mxu0
        %v2495 = vadd.f32 %v2282, %v2494
        %2496 = vdwg.mxu0
        %2497 = vmatprep.subr.mxu0 %v1618
        %2498 = vmatpush1.msra.mxu0 %v1617
        %2499 = vmatprep.subr.mxu0 %v1622
        %2500 = vmatpush1.msra.mxu0 %v1621
        %2501 = vmatprep.subr.mxu0 %v1626
        %2502 = vmatpush1.msra.mxu0 %v1625
        %2503 = vmatprep.subr.mxu0 %v1630
        %2504 = vmatpush1.msra.mxu0 %v1629
        %2505 = vmatprep.subr.mxu0 %v1634
        %2506 = vmatpush1.msra.mxu0 %v1633
        %2507 = vmatprep.subr.mxu0 %v1638
        %2508 = vmatpush1.msra.mxu0 %v1637
        %2509 = vmatprep.subr.mxu0 %v1642
        %2510 = vmatpush1.msra.mxu0 %v1641
        %2511 = vmatprep.subr.mxu0 %v1646
        %2512 = vmatpush1.msra.mxu0 %v1645
        %2513 = vmatprep.subr.mxu0 %v1650
        %2514 = vmatpush1.msra.mxu0 %v1649
        %2515 = vmatprep.subr.mxu0 %v1654
        %2516 = vmatpush1.msra.mxu0 %v1653
        %2517 = vmatprep.subr.mxu0 %v1658
        %2518 = vmatpush1.msra.mxu0 %v1657
        %2519 = vmatprep.subr.mxu0 %v1662
        %2520 = vmatpush1.msra.mxu0 %v1661
        %2521 = vmatprep.subr.mxu0 %v1666
        %2522 = vmatpush1.msra.mxu0 %v1665
        %2523 = vmatprep.subr.mxu0 %v1670
        %2524 = vmatpush1.msra.mxu0 %v1669
        %2525 = vmatprep.subr.mxu0 %v1674
        %2526 = vmatpush1.msra.mxu0 %v1673
        %2527 = vmatprep.subr.mxu0 %v1678
        %2528 = vmatpush1.msra.mxu0 %v1677
        %2529 = vmatprep.subr.mxu0 %v1682
        %2530 = vmatpush1.msra.mxu0 %v1681
        %2531 = vmatprep.subr.mxu0 %v1686
        %2532 = vmatpush1.msra.mxu0 %v1685
        %2533 = vmatprep.subr.mxu0 %v1690
        %2534 = vmatpush1.msra.mxu0 %v1689
        %2535 = vmatprep.subr.mxu0 %v1694
        %2536 = vmatpush1.msra.mxu0 %v1693
        %2537 = vmatprep.subr.mxu0 %v1698
        %2538 = vmatpush1.msra.mxu0 %v1697
        %2539 = vmatprep.subr.mxu0 %v1702
        %2540 = vmatpush1.msra.mxu0 %v1701
        %2541 = vmatprep.subr.mxu0 %v1706
        %2542 = vmatpush1.msra.mxu0 %v1705
        %2543 = vmatprep.subr.mxu0 %v1710
        %2544 = vmatpush1.msra.mxu0 %v1709
        %2545 = vmatprep.subr.mxu0 %v1714
        %2546 = vmatpush1.msra.mxu0 %v1713
        %2547 = vmatprep.subr.mxu0 %v1718
        %2548 = vmatpush1.msra.mxu0 %v1717
        %2549 = vmatprep.subr.mxu0 %v1722
        %2550 = vmatpush1.msra.mxu0 %v1721
        %2551 = vmatprep.subr.mxu0 %v1726
        %2552 = vmatpush1.msra.mxu0 %v1725
        %2553 = vmatprep.subr.mxu0 %v1730
        %2554 = vmatpush1.msra.mxu0 %v1729
        %2555 = vmatprep.subr.mxu0 %v1734
        %2556 = vmatpush1.msra.mxu0 %v1733
        %2557 = vmatprep.subr.mxu0 %v1738
        %2558 = vmatpush1.msra.mxu0 %v1737
        %2559 = vmatprep.subr.mxu0 %v1742
        %2560 = vmatpush1.msra.mxu0 %v1741
        %2561 = vmatprep.mubr.f32.mxu0 %v1474
        %2562 = vmatmul.mubr.f32.gmra.mrb[0].mxu0 %v1473
        %v2563 = vpop.f32.mrb[0].mxu0
        %v2564 = vadd.f32 %v2493, %v2563
        %v2565 = vpop.f32.mrb[0].mxu0
        %v2566 = vadd.f32 %v2495, %v2565
        %2567 = vdwg.mxu0
        %s2568 = scalar_lea.vmem [#allocation7], 4096
        %v2569 = vld [vmem:[%s2568] sm:$0xff]
        %v2570 = vld [vmem:[%s2568 + $0x8] sm:$0xff]
        %v2571 = vld [vmem:[%s2568 + $0x10] sm:$0xff]
        %v2572 = vld [vmem:[%s2568 + $0x18] sm:$0xff]
        %v2573 = vld [vmem:[%s2568 + $0x20] sm:$0xff]
        %v2574 = vld [vmem:[%s2568 + $0x28] sm:$0xff]
        %v2575 = vld [vmem:[%s2568 + $0x30] sm:$0xff]
        %v2576 = vld [vmem:[%s2568 + $0x38] sm:$0xff]
        %v2577 = vld [vmem:[%s2568 + $0x40] sm:$0xff]
        %v2578 = vld [vmem:[%s2568 + $0x48] sm:$0xff]
        %v2579 = vld [vmem:[%s2568 + $0x50] sm:$0xff]
        %v2580 = vld [vmem:[%s2568 + $0x58] sm:$0xff]
        %v2581 = vld [vmem:[%s2568 + $0x60] sm:$0xff]
        %v2582 = vld [vmem:[%s2568 + $0x68] sm:$0xff]
        %v2583 = vld [vmem:[%s2568 + $0x70] sm:$0xff]
        %v2584 = vld [vmem:[%s2568 + $0x78] sm:$0xff]
        %v2585 = vld [vmem:[%s2568 + $0x80] sm:$0xff]
        %v2586 = vld [vmem:[%s2568 + $0x88] sm:$0xff]
        %v2587 = vld [vmem:[%s2568 + $0x90] sm:$0xff]
        %v2588 = vld [vmem:[%s2568 + $0x98] sm:$0xff]
        %v2589 = vld [vmem:[%s2568 + $0xa0] sm:$0xff]
        %v2590 = vld [vmem:[%s2568 + $0xa8] sm:$0xff]
        %v2591 = vld [vmem:[%s2568 + $0xb0] sm:$0xff]
        %v2592 = vld [vmem:[%s2568 + $0xb8] sm:$0xff]
        %v2593 = vld [vmem:[%s2568 + $0xc0] sm:$0xff]
        %v2594 = vld [vmem:[%s2568 + $0xc8] sm:$0xff]
        %v2595 = vld [vmem:[%s2568 + $0xd0] sm:$0xff]
        %v2596 = vld [vmem:[%s2568 + $0xd8] sm:$0xff]
        %v2597 = vld [vmem:[%s2568 + $0xe0] sm:$0xff]
        %v2598 = vld [vmem:[%s2568 + $0xe8] sm:$0xff]
        %v2599 = vld [vmem:[%s2568 + $0xf0] sm:$0xff]
        %v2600 = vld [vmem:[%s2568 + $0xf8] sm:$0xff]
        %v2601 = vld [vmem:[%s2568 + $0x100] sm:$0xff]
        %v2602 = vld [vmem:[%s2568 + $0x108] sm:$0xff]
        %v2603 = vld [vmem:[%s2568 + $0x110] sm:$0xff]
        %v2604 = vld [vmem:[%s2568 + $0x118] sm:$0xff]
        %v2605 = vld [vmem:[%s2568 + $0x120] sm:$0xff]
        %v2606 = vld [vmem:[%s2568 + $0x128] sm:$0xff]
        %v2607 = vld [vmem:[%s2568 + $0x130] sm:$0xff]
        %v2608 = vld [vmem:[%s2568 + $0x138] sm:$0xff]
        %v2609 = vld [vmem:[%s2568 + $0x140] sm:$0xff]
        %v2610 = vld [vmem:[%s2568 + $0x148] sm:$0xff]
        %v2611 = vld [vmem:[%s2568 + $0x150] sm:$0xff]
        %v2612 = vld [vmem:[%s2568 + $0x158] sm:$0xff]
        %v2613 = vld [vmem:[%s2568 + $0x160] sm:$0xff]
        %v2614 = vld [vmem:[%s2568 + $0x168] sm:$0xff]
        %v2615 = vld [vmem:[%s2568 + $0x170] sm:$0xff]
        %v2616 = vld [vmem:[%s2568 + $0x178] sm:$0xff]
        %v2617 = vld [vmem:[%s2568 + $0x180] sm:$0xff]
        %v2618 = vld [vmem:[%s2568 + $0x188] sm:$0xff]
        %v2619 = vld [vmem:[%s2568 + $0x190] sm:$0xff]
        %v2620 = vld [vmem:[%s2568 + $0x198] sm:$0xff]
        %v2621 = vld [vmem:[%s2568 + $0x1a0] sm:$0xff]
        %v2622 = vld [vmem:[%s2568 + $0x1a8] sm:$0xff]
        %v2623 = vld [vmem:[%s2568 + $0x1b0] sm:$0xff]
        %v2624 = vld [vmem:[%s2568 + $0x1b8] sm:$0xff]
        %v2625 = vld [vmem:[%s2568 + $0x1c0] sm:$0xff]
        %v2626 = vld [vmem:[%s2568 + $0x1c8] sm:$0xff]
        %v2627 = vld [vmem:[%s2568 + $0x1d0] sm:$0xff]
        %v2628 = vld [vmem:[%s2568 + $0x1d8] sm:$0xff]
        %v2629 = vld [vmem:[%s2568 + $0x1e0] sm:$0xff]
        %v2630 = vld [vmem:[%s2568 + $0x1e8] sm:$0xff]
        %v2631 = vld [vmem:[%s2568 + $0x1f0] sm:$0xff]
        %v2632 = vld [vmem:[%s2568 + $0x1f8] sm:$0xff]
        %v2633 = vld [vmem:[%s2568 + $0x200] sm:$0xff]
        %v2634 = vld [vmem:[%s2568 + $0x208] sm:$0xff]
        %v2635 = vld [vmem:[%s2568 + $0x210] sm:$0xff]
        %v2636 = vld [vmem:[%s2568 + $0x218] sm:$0xff]
        %v2637 = vld [vmem:[%s2568 + $0x220] sm:$0xff]
        %v2638 = vld [vmem:[%s2568 + $0x228] sm:$0xff]
        %v2639 = vld [vmem:[%s2568 + $0x230] sm:$0xff]
        %v2640 = vld [vmem:[%s2568 + $0x238] sm:$0xff]
        %v2641 = vld [vmem:[%s2568 + $0x240] sm:$0xff]
        %v2642 = vld [vmem:[%s2568 + $0x248] sm:$0xff]
        %v2643 = vld [vmem:[%s2568 + $0x250] sm:$0xff]
        %v2644 = vld [vmem:[%s2568 + $0x258] sm:$0xff]
        %v2645 = vld [vmem:[%s2568 + $0x260] sm:$0xff]
        %v2646 = vld [vmem:[%s2568 + $0x268] sm:$0xff]
        %v2647 = vld [vmem:[%s2568 + $0x270] sm:$0xff]
        %v2648 = vld [vmem:[%s2568 + $0x278] sm:$0xff]
        %v2649 = vld [vmem:[%s2568 + $0x280] sm:$0xff]
        %v2650 = vld [vmem:[%s2568 + $0x288] sm:$0xff]
        %v2651 = vld [vmem:[%s2568 + $0x290] sm:$0xff]
        %v2652 = vld [vmem:[%s2568 + $0x298] sm:$0xff]
        %v2653 = vld [vmem:[%s2568 + $0x2a0] sm:$0xff]
        %v2654 = vld [vmem:[%s2568 + $0x2a8] sm:$0xff]
        %v2655 = vld [vmem:[%s2568 + $0x2b0] sm:$0xff]
        %v2656 = vld [vmem:[%s2568 + $0x2b8] sm:$0xff]
        %v2657 = vld [vmem:[%s2568 + $0x2c0] sm:$0xff]
        %v2658 = vld [vmem:[%s2568 + $0x2c8] sm:$0xff]
        %v2659 = vld [vmem:[%s2568 + $0x2d0] sm:$0xff]
        %v2660 = vld [vmem:[%s2568 + $0x2d8] sm:$0xff]
        %v2661 = vld [vmem:[%s2568 + $0x2e0] sm:$0xff]
        %v2662 = vld [vmem:[%s2568 + $0x2e8] sm:$0xff]
        %v2663 = vld [vmem:[%s2568 + $0x2f0] sm:$0xff]
        %v2664 = vld [vmem:[%s2568 + $0x2f8] sm:$0xff]
        %v2665 = vld [vmem:[%s2568 + $0x300] sm:$0xff]
        %v2666 = vld [vmem:[%s2568 + $0x308] sm:$0xff]
        %v2667 = vld [vmem:[%s2568 + $0x310] sm:$0xff]
        %v2668 = vld [vmem:[%s2568 + $0x318] sm:$0xff]
        %v2669 = vld [vmem:[%s2568 + $0x320] sm:$0xff]
        %v2670 = vld [vmem:[%s2568 + $0x328] sm:$0xff]
        %v2671 = vld [vmem:[%s2568 + $0x330] sm:$0xff]
        %v2672 = vld [vmem:[%s2568 + $0x338] sm:$0xff]
        %v2673 = vld [vmem:[%s2568 + $0x340] sm:$0xff]
        %v2674 = vld [vmem:[%s2568 + $0x348] sm:$0xff]
        %v2675 = vld [vmem:[%s2568 + $0x350] sm:$0xff]
        %v2676 = vld [vmem:[%s2568 + $0x358] sm:$0xff]
        %v2677 = vld [vmem:[%s2568 + $0x360] sm:$0xff]
        %v2678 = vld [vmem:[%s2568 + $0x368] sm:$0xff]
        %v2679 = vld [vmem:[%s2568 + $0x370] sm:$0xff]
        %v2680 = vld [vmem:[%s2568 + $0x378] sm:$0xff]
        %v2681 = vld [vmem:[%s2568 + $0x380] sm:$0xff]
        %v2682 = vld [vmem:[%s2568 + $0x388] sm:$0xff]
        %v2683 = vld [vmem:[%s2568 + $0x390] sm:$0xff]
        %v2684 = vld [vmem:[%s2568 + $0x398] sm:$0xff]
        %v2685 = vld [vmem:[%s2568 + $0x3a0] sm:$0xff]
        %v2686 = vld [vmem:[%s2568 + $0x3a8] sm:$0xff]
        %v2687 = vld [vmem:[%s2568 + $0x3b0] sm:$0xff]
        %v2688 = vld [vmem:[%s2568 + $0x3b8] sm:$0xff]
        %v2689 = vld [vmem:[%s2568 + $0x3c0] sm:$0xff]
        %v2690 = vld [vmem:[%s2568 + $0x3c8] sm:$0xff]
        %v2691 = vld [vmem:[%s2568 + $0x3d0] sm:$0xff]
        %v2692 = vld [vmem:[%s2568 + $0x3d8] sm:$0xff]
        %v2693 = vld [vmem:[%s2568 + $0x3e0] sm:$0xff]
        %v2694 = vld [vmem:[%s2568 + $0x3e8] sm:$0xff]
        %v2695 = vld [vmem:[%s2568 + $0x3f0] sm:$0xff]
        %v2696 = vld [vmem:[%s2568 + $0x3f8] sm:$0xff]
        %v2697 = vld [vmem:[%s2568 + $0x400] sm:$0xff]
        %v2698 = vld [vmem:[%s2568 + $0x408] sm:$0xff]
        %v2699 = vld [vmem:[%s2568 + $0x410] sm:$0xff]
        %v2700 = vld [vmem:[%s2568 + $0x418] sm:$0xff]
        %v2701 = vld [vmem:[%s2568 + $0x420] sm:$0xff]
        %v2702 = vld [vmem:[%s2568 + $0x428] sm:$0xff]
        %v2703 = vld [vmem:[%s2568 + $0x430] sm:$0xff]
        %v2704 = vld [vmem:[%s2568 + $0x438] sm:$0xff]
        %v2705 = vld [vmem:[%s2568 + $0x440] sm:$0xff]
        %v2706 = vld [vmem:[%s2568 + $0x448] sm:$0xff]
        %v2707 = vld [vmem:[%s2568 + $0x450] sm:$0xff]
        %v2708 = vld [vmem:[%s2568 + $0x458] sm:$0xff]
        %v2709 = vld [vmem:[%s2568 + $0x460] sm:$0xff]
        %v2710 = vld [vmem:[%s2568 + $0x468] sm:$0xff]
        %v2711 = vld [vmem:[%s2568 + $0x470] sm:$0xff]
        %v2712 = vld [vmem:[%s2568 + $0x478] sm:$0xff]
        %v2713 = vld [vmem:[%s2568 + $0x480] sm:$0xff]
        %v2714 = vld [vmem:[%s2568 + $0x488] sm:$0xff]
        %v2715 = vld [vmem:[%s2568 + $0x490] sm:$0xff]
        %v2716 = vld [vmem:[%s2568 + $0x498] sm:$0xff]
        %v2717 = vld [vmem:[%s2568 + $0x4a0] sm:$0xff]
        %v2718 = vld [vmem:[%s2568 + $0x4a8] sm:$0xff]
        %v2719 = vld [vmem:[%s2568 + $0x4b0] sm:$0xff]
        %v2720 = vld [vmem:[%s2568 + $0x4b8] sm:$0xff]
        %v2721 = vld [vmem:[%s2568 + $0x4c0] sm:$0xff]
        %v2722 = vld [vmem:[%s2568 + $0x4c8] sm:$0xff]
        %v2723 = vld [vmem:[%s2568 + $0x4d0] sm:$0xff]
        %v2724 = vld [vmem:[%s2568 + $0x4d8] sm:$0xff]
        %v2725 = vld [vmem:[%s2568 + $0x4e0] sm:$0xff]
        %v2726 = vld [vmem:[%s2568 + $0x4e8] sm:$0xff]
        %v2727 = vld [vmem:[%s2568 + $0x4f0] sm:$0xff]
        %v2728 = vld [vmem:[%s2568 + $0x4f8] sm:$0xff]
        %v2729 = vld [vmem:[%s2568 + $0x500] sm:$0xff]
        %v2730 = vld [vmem:[%s2568 + $0x508] sm:$0xff]
        %v2731 = vld [vmem:[%s2568 + $0x510] sm:$0xff]
        %v2732 = vld [vmem:[%s2568 + $0x518] sm:$0xff]
        %v2733 = vld [vmem:[%s2568 + $0x520] sm:$0xff]
        %v2734 = vld [vmem:[%s2568 + $0x528] sm:$0xff]
        %v2735 = vld [vmem:[%s2568 + $0x530] sm:$0xff]
        %v2736 = vld [vmem:[%s2568 + $0x538] sm:$0xff]
        %v2737 = vld [vmem:[%s2568 + $0x540] sm:$0xff]
        %v2738 = vld [vmem:[%s2568 + $0x548] sm:$0xff]
        %v2739 = vld [vmem:[%s2568 + $0x550] sm:$0xff]
        %v2740 = vld [vmem:[%s2568 + $0x558] sm:$0xff]
        %v2741 = vld [vmem:[%s2568 + $0x560] sm:$0xff]
        %v2742 = vld [vmem:[%s2568 + $0x568] sm:$0xff]
        %v2743 = vld [vmem:[%s2568 + $0x570] sm:$0xff]
        %v2744 = vld [vmem:[%s2568 + $0x578] sm:$0xff]
        %v2745 = vld [vmem:[%s2568 + $0x580] sm:$0xff]
        %v2746 = vld [vmem:[%s2568 + $0x588] sm:$0xff]
        %v2747 = vld [vmem:[%s2568 + $0x590] sm:$0xff]
        %v2748 = vld [vmem:[%s2568 + $0x598] sm:$0xff]
        %v2749 = vld [vmem:[%s2568 + $0x5a0] sm:$0xff]
        %v2750 = vld [vmem:[%s2568 + $0x5a8] sm:$0xff]
        %v2751 = vld [vmem:[%s2568 + $0x5b0] sm:$0xff]
        %v2752 = vld [vmem:[%s2568 + $0x5b8] sm:$0xff]
        %v2753 = vld [vmem:[%s2568 + $0x5c0] sm:$0xff]
        %v2754 = vld [vmem:[%s2568 + $0x5c8] sm:$0xff]
        %v2755 = vld [vmem:[%s2568 + $0x5d0] sm:$0xff]
        %v2756 = vld [vmem:[%s2568 + $0x5d8] sm:$0xff]
        %v2757 = vld [vmem:[%s2568 + $0x5e0] sm:$0xff]
        %v2758 = vld [vmem:[%s2568 + $0x5e8] sm:$0xff]
        %v2759 = vld [vmem:[%s2568 + $0x5f0] sm:$0xff]
        %v2760 = vld [vmem:[%s2568 + $0x5f8] sm:$0xff]
        %v2761 = vld [vmem:[%s2568 + $0x600] sm:$0xff]
        %v2762 = vld [vmem:[%s2568 + $0x608] sm:$0xff]
        %v2763 = vld [vmem:[%s2568 + $0x610] sm:$0xff]
        %v2764 = vld [vmem:[%s2568 + $0x618] sm:$0xff]
        %v2765 = vld [vmem:[%s2568 + $0x620] sm:$0xff]
        %v2766 = vld [vmem:[%s2568 + $0x628] sm:$0xff]
        %v2767 = vld [vmem:[%s2568 + $0x630] sm:$0xff]
        %v2768 = vld [vmem:[%s2568 + $0x638] sm:$0xff]
        %v2769 = vld [vmem:[%s2568 + $0x640] sm:$0xff]
        %v2770 = vld [vmem:[%s2568 + $0x648] sm:$0xff]
        %v2771 = vld [vmem:[%s2568 + $0x650] sm:$0xff]
        %v2772 = vld [vmem:[%s2568 + $0x658] sm:$0xff]
        %v2773 = vld [vmem:[%s2568 + $0x660] sm:$0xff]
        %v2774 = vld [vmem:[%s2568 + $0x668] sm:$0xff]
        %v2775 = vld [vmem:[%s2568 + $0x670] sm:$0xff]
        %v2776 = vld [vmem:[%s2568 + $0x678] sm:$0xff]
        %v2777 = vld [vmem:[%s2568 + $0x680] sm:$0xff]
        %v2778 = vld [vmem:[%s2568 + $0x688] sm:$0xff]
        %v2779 = vld [vmem:[%s2568 + $0x690] sm:$0xff]
        %v2780 = vld [vmem:[%s2568 + $0x698] sm:$0xff]
        %v2781 = vld [vmem:[%s2568 + $0x6a0] sm:$0xff]
        %v2782 = vld [vmem:[%s2568 + $0x6a8] sm:$0xff]
        %v2783 = vld [vmem:[%s2568 + $0x6b0] sm:$0xff]
        %v2784 = vld [vmem:[%s2568 + $0x6b8] sm:$0xff]
        %v2785 = vld [vmem:[%s2568 + $0x6c0] sm:$0xff]
        %v2786 = vld [vmem:[%s2568 + $0x6c8] sm:$0xff]
        %v2787 = vld [vmem:[%s2568 + $0x6d0] sm:$0xff]
        %v2788 = vld [vmem:[%s2568 + $0x6d8] sm:$0xff]
        %v2789 = vld [vmem:[%s2568 + $0x6e0] sm:$0xff]
        %v2790 = vld [vmem:[%s2568 + $0x6e8] sm:$0xff]
        %v2791 = vld [vmem:[%s2568 + $0x6f0] sm:$0xff]
        %v2792 = vld [vmem:[%s2568 + $0x6f8] sm:$0xff]
        %v2793 = vld [vmem:[%s2568 + $0x700] sm:$0xff]
        %v2794 = vld [vmem:[%s2568 + $0x708] sm:$0xff]
        %v2795 = vld [vmem:[%s2568 + $0x710] sm:$0xff]
        %v2796 = vld [vmem:[%s2568 + $0x718] sm:$0xff]
        %v2797 = vld [vmem:[%s2568 + $0x720] sm:$0xff]
        %v2798 = vld [vmem:[%s2568 + $0x728] sm:$0xff]
        %v2799 = vld [vmem:[%s2568 + $0x730] sm:$0xff]
        %v2800 = vld [vmem:[%s2568 + $0x738] sm:$0xff]
        %v2801 = vld [vmem:[%s2568 + $0x740] sm:$0xff]
        %v2802 = vld [vmem:[%s2568 + $0x748] sm:$0xff]
        %v2803 = vld [vmem:[%s2568 + $0x750] sm:$0xff]
        %v2804 = vld [vmem:[%s2568 + $0x758] sm:$0xff]
        %v2805 = vld [vmem:[%s2568 + $0x760] sm:$0xff]
        %v2806 = vld [vmem:[%s2568 + $0x768] sm:$0xff]
        %v2807 = vld [vmem:[%s2568 + $0x770] sm:$0xff]
        %v2808 = vld [vmem:[%s2568 + $0x778] sm:$0xff]
        %v2809 = vld [vmem:[%s2568 + $0x780] sm:$0xff]
        %v2810 = vld [vmem:[%s2568 + $0x788] sm:$0xff]
        %v2811 = vld [vmem:[%s2568 + $0x790] sm:$0xff]
        %v2812 = vld [vmem:[%s2568 + $0x798] sm:$0xff]
        %v2813 = vld [vmem:[%s2568 + $0x7a0] sm:$0xff]
        %v2814 = vld [vmem:[%s2568 + $0x7a8] sm:$0xff]
        %v2815 = vld [vmem:[%s2568 + $0x7b0] sm:$0xff]
        %v2816 = vld [vmem:[%s2568 + $0x7b8] sm:$0xff]
        %v2817 = vld [vmem:[%s2568 + $0x7c0] sm:$0xff]
        %v2818 = vld [vmem:[%s2568 + $0x7c8] sm:$0xff]
        %v2819 = vld [vmem:[%s2568 + $0x7d0] sm:$0xff]
        %v2820 = vld [vmem:[%s2568 + $0x7d8] sm:$0xff]
        %v2821 = vld [vmem:[%s2568 + $0x7e0] sm:$0xff]
        %v2822 = vld [vmem:[%s2568 + $0x7e8] sm:$0xff]
        %v2823 = vld [vmem:[%s2568 + $0x7f0] sm:$0xff]
        %v2824 = vld [vmem:[%s2568 + $0x7f8] sm:$0xff]
        %2825 = vmatprep.subr.mxu0 %v2570
        %2826 = vmatpush1.msra.mxu0 %v2569
        %2827 = vmatprep.subr.mxu0 %v2574
        %2828 = vmatpush1.msra.mxu0 %v2573
        %2829 = vmatprep.subr.mxu0 %v2578
        %2830 = vmatpush1.msra.mxu0 %v2577
        %2831 = vmatprep.subr.mxu0 %v2582
        %2832 = vmatpush1.msra.mxu0 %v2581
        %2833 = vmatprep.subr.mxu0 %v2586
        %2834 = vmatpush1.msra.mxu0 %v2585
        %2835 = vmatprep.subr.mxu0 %v2590
        %2836 = vmatpush1.msra.mxu0 %v2589
        %2837 = vmatprep.subr.mxu0 %v2594
        %2838 = vmatpush1.msra.mxu0 %v2593
        %2839 = vmatprep.subr.mxu0 %v2598
        %2840 = vmatpush1.msra.mxu0 %v2597
        %2841 = vmatprep.subr.mxu0 %v2602
        %2842 = vmatpush1.msra.mxu0 %v2601
        %2843 = vmatprep.subr.mxu0 %v2606
        %2844 = vmatpush1.msra.mxu0 %v2605
        %2845 = vmatprep.subr.mxu0 %v2610
        %2846 = vmatpush1.msra.mxu0 %v2609
        %2847 = vmatprep.subr.mxu0 %v2614
        %2848 = vmatpush1.msra.mxu0 %v2613
        %2849 = vmatprep.subr.mxu0 %v2618
        %2850 = vmatpush1.msra.mxu0 %v2617
        %2851 = vmatprep.subr.mxu0 %v2622
        %2852 = vmatpush1.msra.mxu0 %v2621
        %2853 = vmatprep.subr.mxu0 %v2626
        %2854 = vmatpush1.msra.mxu0 %v2625
        %2855 = vmatprep.subr.mxu0 %v2630
        %2856 = vmatpush1.msra.mxu0 %v2629
        %2857 = vmatprep.subr.mxu0 %v2634
        %2858 = vmatpush1.msra.mxu0 %v2633
        %2859 = vmatprep.subr.mxu0 %v2638
        %2860 = vmatpush1.msra.mxu0 %v2637
        %2861 = vmatprep.subr.mxu0 %v2642
        %2862 = vmatpush1.msra.mxu0 %v2641
        %2863 = vmatprep.subr.mxu0 %v2646
        %2864 = vmatpush1.msra.mxu0 %v2645
        %2865 = vmatprep.subr.mxu0 %v2650
        %2866 = vmatpush1.msra.mxu0 %v2649
        %2867 = vmatprep.subr.mxu0 %v2654
        %2868 = vmatpush1.msra.mxu0 %v2653
        %2869 = vmatprep.subr.mxu0 %v2658
        %2870 = vmatpush1.msra.mxu0 %v2657
        %2871 = vmatprep.subr.mxu0 %v2662
        %2872 = vmatpush1.msra.mxu0 %v2661
        %2873 = vmatprep.subr.mxu0 %v2666
        %2874 = vmatpush1.msra.mxu0 %v2665
        %2875 = vmatprep.subr.mxu0 %v2670
        %2876 = vmatpush1.msra.mxu0 %v2669
        %2877 = vmatprep.subr.mxu0 %v2674
        %2878 = vmatpush1.msra.mxu0 %v2673
        %2879 = vmatprep.subr.mxu0 %v2678
        %2880 = vmatpush1.msra.mxu0 %v2677
        %2881 = vmatprep.subr.mxu0 %v2682
        %2882 = vmatpush1.msra.mxu0 %v2681
        %2883 = vmatprep.subr.mxu0 %v2686
        %2884 = vmatpush1.msra.mxu0 %v2685
        %2885 = vmatprep.subr.mxu0 %v2690
        %2886 = vmatpush1.msra.mxu0 %v2689
        %2887 = vmatprep.subr.mxu0 %v2694
        %2888 = vmatpush1.msra.mxu0 %v2693
        %2889 = vmatprep.mubr.f32.mxu0 %v1484
        %2890 = vmatmul.mubr.f32.gmra.mrb[0].mxu0 %v1483
        %v2891 = vpop.f32.mrb[0].mxu0
        %v2892 = vadd.f32 0.0, %v2891
        %v2893 = vpop.f32.mrb[0].mxu0
        %v2894 = vadd.f32 0.0, %v2893
        %2895 = vdwg.mxu0
        %2896 = vmatprep.subr.mxu0 %v2698
        %2897 = vmatpush1.msra.mxu0 %v2697
        %2898 = vmatprep.subr.mxu0 %v2702
        %2899 = vmatpush1.msra.mxu0 %v2701
        %2900 = vmatprep.subr.mxu0 %v2706
        %2901 = vmatpush1.msra.mxu0 %v2705
        %2902 = vmatprep.subr.mxu0 %v2710
        %2903 = vmatpush1.msra.mxu0 %v2709
        %2904 = vmatprep.subr.mxu0 %v2714
        %2905 = vmatpush1.msra.mxu0 %v2713
        %2906 = vmatprep.subr.mxu0 %v2718
        %2907 = vmatpush1.msra.mxu0 %v2717
        %2908 = vmatprep.subr.mxu0 %v2722
        %2909 = vmatpush1.msra.mxu0 %v2721
        %2910 = vmatprep.subr.mxu0 %v2726
        %2911 = vmatpush1.msra.mxu0 %v2725
        %2912 = vmatprep.subr.mxu0 %v2730
        %2913 = vmatpush1.msra.mxu0 %v2729
        %2914 = vmatprep.subr.mxu0 %v2734
        %2915 = vmatpush1.msra.mxu0 %v2733
        %2916 = vmatprep.subr.mxu0 %v2738
        %2917 = vmatpush1.msra.mxu0 %v2737
        %2918 = vmatprep.subr.mxu0 %v2742
        %2919 = vmatpush1.msra.mxu0 %v2741
        %2920 = vmatprep.subr.mxu0 %v2746
        %2921 = vmatpush1.msra.mxu0 %v2745
        %2922 = vmatprep.subr.mxu0 %v2750
        %2923 = vmatpush1.msra.mxu0 %v2749
        %2924 = vmatprep.subr.mxu0 %v2754
        %2925 = vmatpush1.msra.mxu0 %v2753
        %2926 = vmatprep.subr.mxu0 %v2758
        %2927 = vmatpush1.msra.mxu0 %v2757
        %2928 = vmatprep.subr.mxu0 %v2762
        %2929 = vmatpush1.msra.mxu0 %v2761
        %2930 = vmatprep.subr.mxu0 %v2766
        %2931 = vmatpush1.msra.mxu0 %v2765
        %2932 = vmatprep.subr.mxu0 %v2770
        %2933 = vmatpush1.msra.mxu0 %v2769
        %2934 = vmatprep.subr.mxu0 %v2774
        %2935 = vmatpush1.msra.mxu0 %v2773
        %2936 = vmatprep.subr.mxu0 %v2778
        %2937 = vmatpush1.msra.mxu0 %v2777
        %2938 = vmatprep.subr.mxu0 %v2782
        %2939 = vmatpush1.msra.mxu0 %v2781
        %2940 = vmatprep.subr.mxu0 %v2786
        %2941 = vmatpush1.msra.mxu0 %v2785
        %2942 = vmatprep.subr.mxu0 %v2790
        %2943 = vmatpush1.msra.mxu0 %v2789
        %2944 = vmatprep.subr.mxu0 %v2794
        %2945 = vmatpush1.msra.mxu0 %v2793
        %2946 = vmatprep.subr.mxu0 %v2798
        %2947 = vmatpush1.msra.mxu0 %v2797
        %2948 = vmatprep.subr.mxu0 %v2802
        %2949 = vmatpush1.msra.mxu0 %v2801
        %2950 = vmatprep.subr.mxu0 %v2806
        %2951 = vmatpush1.msra.mxu0 %v2805
        %2952 = vmatprep.subr.mxu0 %v2810
        %2953 = vmatpush1.msra.mxu0 %v2809
        %2954 = vmatprep.subr.mxu0 %v2814
        %2955 = vmatpush1.msra.mxu0 %v2813
        %2956 = vmatprep.subr.mxu0 %v2818
        %2957 = vmatpush1.msra.mxu0 %v2817
        %2958 = vmatprep.subr.mxu0 %v2822
        %2959 = vmatpush1.msra.mxu0 %v2821
        %2960 = vmatprep.mubr.f32.mxu0 %v1486
        %2961 = vmatmul.mubr.f32.gmra.mrb[0].mxu0 %v1485
        %v2962 = vpop.f32.mrb[0].mxu0
        %v2963 = vadd.f32 %v2892, %v2962
        %v2964 = vpop.f32.mrb[0].mxu0
        %v2965 = vadd.f32 %v2894, %v2964
        %2966 = vdwg.mxu0
        %2967 = vmatprep.subr.mxu0 %v2572
        %2968 = vmatpush1.msra.mxu0 %v2571
        %2969 = vmatprep.subr.mxu0 %v2576
        %2970 = vmatpush1.msra.mxu0 %v2575
        %2971 = vmatprep.subr.mxu0 %v2580
        %2972 = vmatpush1.msra.mxu0 %v2579
        %2973 = vmatprep.subr.mxu0 %v2584
        %2974 = vmatpush1.msra.mxu0 %v2583
        %2975 = vmatprep.subr.mxu0 %v2588
        %2976 = vmatpush1.msra.mxu0 %v2587
        %2977 = vmatprep.subr.mxu0 %v2592
        %2978 = vmatpush1.msra.mxu0 %v2591
        %2979 = vmatprep.subr.mxu0 %v2596
        %2980 = vmatpush1.msra.mxu0 %v2595
        %2981 = vmatprep.subr.mxu0 %v2600
        %2982 = vmatpush1.msra.mxu0 %v2599
        %2983 = vmatprep.subr.mxu0 %v2604
        %2984 = vmatpush1.msra.mxu0 %v2603
        %2985 = vmatprep.subr.mxu0 %v2608
        %2986 = vmatpush1.msra.mxu0 %v2607
        %2987 = vmatprep.subr.mxu0 %v2612
        %2988 = vmatpush1.msra.mxu0 %v2611
        %2989 = vmatprep.subr.mxu0 %v2616
        %2990 = vmatpush1.msra.mxu0 %v2615
        %2991 = vmatprep.subr.mxu0 %v2620
        %2992 = vmatpush1.msra.mxu0 %v2619
        %2993 = vmatprep.subr.mxu0 %v2624
        %2994 = vmatpush1.msra.mxu0 %v2623
        %2995 = vmatprep.subr.mxu0 %v2628
        %2996 = vmatpush1.msra.mxu0 %v2627
        %2997 = vmatprep.subr.mxu0 %v2632
        %2998 = vmatpush1.msra.mxu0 %v2631
        %2999 = vmatprep.subr.mxu0 %v2636
        %3000 = vmatpush1.msra.mxu0 %v2635
        %3001 = vmatprep.subr.mxu0 %v2640
        %3002 = vmatpush1.msra.mxu0 %v2639
        %3003 = vmatprep.subr.mxu0 %v2644
        %3004 = vmatpush1.msra.mxu0 %v2643
        %3005 = vmatprep.subr.mxu0 %v2648
        %3006 = vmatpush1.msra.mxu0 %v2647
        %3007 = vmatprep.subr.mxu0 %v2652
        %3008 = vmatpush1.msra.mxu0 %v2651
        %3009 = vmatprep.subr.mxu0 %v2656
        %3010 = vmatpush1.msra.mxu0 %v2655
        %3011 = vmatprep.subr.mxu0 %v2660
        %3012 = vmatpush1.msra.mxu0 %v2659
        %3013 = vmatprep.subr.mxu0 %v2664
        %3014 = vmatpush1.msra.mxu0 %v2663
        %3015 = vmatprep.subr.mxu0 %v2668
        %3016 = vmatpush1.msra.mxu0 %v2667
        %3017 = vmatprep.subr.mxu0 %v2672
        %3018 = vmatpush1.msra.mxu0 %v2671
        %3019 = vmatprep.subr.mxu0 %v2676
        %3020 = vmatpush1.msra.mxu0 %v2675
        %3021 = vmatprep.subr.mxu0 %v2680
        %3022 = vmatpush1.msra.mxu0 %v2679
        %3023 = vmatprep.subr.mxu0 %v2684
        %3024 = vmatpush1.msra.mxu0 %v2683
        %3025 = vmatprep.subr.mxu0 %v2688
        %3026 = vmatpush1.msra.mxu0 %v2687
        %3027 = vmatprep.subr.mxu0 %v2692
        %3028 = vmatpush1.msra.mxu0 %v2691
        %3029 = vmatprep.subr.mxu0 %v2696
        %3030 = vmatpush1.msra.mxu0 %v2695
        %3031 = vmatprep.mubr.f32.mxu0 %v1484
        %3032 = vmatmul.mubr.f32.gmra.mrb[0].mxu0 %v1483
        %v3033 = vpop.f32.mrb[0].mxu0
        %v3034 = vadd.f32 0.0, %v3033
        %v3035 = vpop.f32.mrb[0].mxu0
        %v3036 = vadd.f32 0.0, %v3035
        %3037 = vdwg.mxu0
        %3038 = vmatprep.subr.mxu0 %v2700
        %3039 = vmatpush1.msra.mxu0 %v2699
        %3040 = vmatprep.subr.mxu0 %v2704
        %3041 = vmatpush1.msra.mxu0 %v2703
        %3042 = vmatprep.subr.mxu0 %v2708
        %3043 = vmatpush1.msra.mxu0 %v2707
        %3044 = vmatprep.subr.mxu0 %v2712
        %3045 = vmatpush1.msra.mxu0 %v2711
        %3046 = vmatprep.subr.mxu0 %v2716
        %3047 = vmatpush1.msra.mxu0 %v2715
        %3048 = vmatprep.subr.mxu0 %v2720
        %3049 = vmatpush1.msra.mxu0 %v2719
        %3050 = vmatprep.subr.mxu0 %v2724
        %3051 = vmatpush1.msra.mxu0 %v2723
        %3052 = vmatprep.subr.mxu0 %v2728
        %3053 = vmatpush1.msra.mxu0 %v2727
        %3054 = vmatprep.subr.mxu0 %v2732
        %3055 = vmatpush1.msra.mxu0 %v2731
        %3056 = vmatprep.subr.mxu0 %v2736
        %3057 = vmatpush1.msra.mxu0 %v2735
        %3058 = vmatprep.subr.mxu0 %v2740
        %3059 = vmatpush1.msra.mxu0 %v2739
        %3060 = vmatprep.subr.mxu0 %v2744
        %3061 = vmatpush1.msra.mxu0 %v2743
        %3062 = vmatprep.subr.mxu0 %v2748
        %3063 = vmatpush1.msra.mxu0 %v2747
        %3064 = vmatprep.subr.mxu0 %v2752
        %3065 = vmatpush1.msra.mxu0 %v2751
        %3066 = vmatprep.subr.mxu0 %v2756
        %3067 = vmatpush1.msra.mxu0 %v2755
        %3068 = vmatprep.subr.mxu0 %v2760
        %3069 = vmatpush1.msra.mxu0 %v2759
        %3070 = vmatprep.subr.mxu0 %v2764
        %3071 = vmatpush1.msra.mxu0 %v2763
        %3072 = vmatprep.subr.mxu0 %v2768
        %3073 = vmatpush1.msra.mxu0 %v2767
        %3074 = vmatprep.subr.mxu0 %v2772
        %3075 = vmatpush1.msra.mxu0 %v2771
        %3076 = vmatprep.subr.mxu0 %v2776
        %3077 = vmatpush1.msra.mxu0 %v2775
        %3078 = vmatprep.subr.mxu0 %v2780
        %3079 = vmatpush1.msra.mxu0 %v2779
        %3080 = vmatprep.subr.mxu0 %v2784
        %3081 = vmatpush1.msra.mxu0 %v2783
        %3082 = vmatprep.subr.mxu0 %v2788
        %3083 = vmatpush1.msra.mxu0 %v2787
        %3084 = vmatprep.subr.mxu0 %v2792
        %3085 = vmatpush1.msra.mxu0 %v2791
        %3086 = vmatprep.subr.mxu0 %v2796
        %3087 = vmatpush1.msra.mxu0 %v2795
        %3088 = vmatprep.subr.mxu0 %v2800
        %3089 = vmatpush1.msra.mxu0 %v2799
        %3090 = vmatprep.subr.mxu0 %v2804
        %3091 = vmatpush1.msra.mxu0 %v2803
        %3092 = vmatprep.subr.mxu0 %v2808
        %3093 = vmatpush1.msra.mxu0 %v2807
        %3094 = vmatprep.subr.mxu0 %v2812
        %3095 = vmatpush1.msra.mxu0 %v2811
        %3096 = vmatprep.subr.mxu0 %v2816
        %3097 = vmatpush1.msra.mxu0 %v2815
        %3098 = vmatprep.subr.mxu0 %v2820
        %3099 = vmatpush1.msra.mxu0 %v2819
        %3100 = vmatprep.subr.mxu0 %v2824
        %3101 = vmatpush1.msra.mxu0 %v2823
        %3102 = vmatprep.mubr.f32.mxu0 %v1486
        %3103 = vmatmul.mubr.f32.gmra.mrb[0].mxu0 %v1485
        %v3104 = vpop.f32.mrb[0].mxu0
        %v3105 = vadd.f32 %v3034, %v3104
        %v3106 = vpop.f32.mrb[0].mxu0
        %v3107 = vadd.f32 %v3036, %v3106
        %3108 = vdwg.mxu0
        %v3109 = vadd.f32 %v2422, %v2963
        %v3110 = vadd.f32 %v2424, %v2965
        %v3111 = vadd.f32 %v2564, %v3105
        %v3112 = vadd.f32 %v2566, %v3107
        %v3113 = vld [vmem:[#allocation8] sm:$0xf]
        %v3115 = vlaneseq
        %v3116 = vshrl.u32 %v3115, 7
        %v3117 = vsub.s32 0, %v3116
        %v3118 = vrot.slane %v3113, %v3117
        %v3119 = vlaneseq
        %v3120 = vshrl.u32 %v3119, 7
        %v3121 = vsub.s32 1, %v3120
        %v3122 = vrot.slane %v3113, %v3121
        %v3123 = vlaneseq
        %v3124 = vshrl.u32 %v3123, 7
        %v3125 = vsub.s32 2, %v3124
        %v3126 = vrot.slane %v3113, %v3125
        %v3127 = vlaneseq
        %v3128 = vshrl.u32 %v3127, 7
        %v3129 = vsub.s32 3, %v3128
        %v3130 = vrot.slane %v3113, %v3129
        %v3135 = vadd.f32 %v3109, %v3118
        %v3136 = vadd.f32 %v3110, %v3122
        %v3137 = vadd.f32 %v3111, %v3126
        %v3138 = vadd.f32 %v3112, %v3130
        %v3139 = vmax.f32 %v3135, 0.0
        %v3140 = vmax.f32 %v3136, 0.0
        %v3141 = vmax.f32 %v3137, 0.0
        %v3142 = vmax.f32 %v3138, 0.0
        %v3147 = vrot.slane %v3139, 7
        %v3148 = vrot.slane %v3140, 7
        %v3149 = vrot.slane %v3141, 7
        %v3150 = vrot.slane %v3142, 7
        %vm3155 = vcmp.gt.f32.partialorder %v3139, %v3147
        %vm3156 = vcmp.gt.f32.partialorder %v3140, %v3148
        %vm3157 = vcmp.gt.f32.partialorder %v3141, %v3149
        %vm3158 = vcmp.gt.f32.partialorder %v3142, %v3150
        %v3159 = vsel %vm3155, %v3139, %v3147
        %v3160 = vsel %vm3156, %v3140, %v3148
        %v3161 = vsel %vm3157, %v3141, %v3149
        %v3162 = vsel %vm3158, %v3142, %v3150
        %v3163 = vsel %vm3155, 1, 0
        %v3164 = vsel %vm3156, 1, 0
        %v3165 = vsel %vm3157, 1, 0
        %v3166 = vsel %vm3158, 1, 0
        %v3171 = vrot.slane %v3159, 7
        %v3172 = vrot.slane %v3160, 7
        %v3173 = vrot.slane %v3161, 7
        %v3174 = vrot.slane %v3162, 7
        %vm3179 = vcmp.gt.f32.partialorder %v3139, %v3171
        %vm3180 = vcmp.gt.f32.partialorder %v3140, %v3172
        %vm3181 = vcmp.gt.f32.partialorder %v3141, %v3173
        %vm3182 = vcmp.gt.f32.partialorder %v3142, %v3174
        %v3183 = vsel %vm3179, %v3139, %v3171
        %v3184 = vsel %vm3180, %v3140, %v3172
        %v3185 = vsel %vm3181, %v3141, %v3173
        %v3186 = vsel %vm3182, %v3142, %v3174
        %v3187 = vrot.slane %v3163, 7
        %v3188 = vrot.slane %v3164, 7
        %v3189 = vrot.slane %v3165, 7
        %v3190 = vrot.slane %v3166, 7
        %v3191 = vsel %vm3179, 2, %v3187
        %v3192 = vsel %vm3180, 2, %v3188
        %v3193 = vsel %vm3181, 2, %v3189
        %v3194 = vsel %vm3182, 2, %v3190
        %v3195 = vsel %vm3155, 3, 2
        %v3196 = vsel %vm3156, 3, 2
        %v3197 = vsel %vm3157, 3, 2
        %v3198 = vsel %vm3158, 3, 2
        %v3199 = vrot.slane %v3195, 7
        %v3200 = vrot.slane %v3196, 7
        %v3201 = vrot.slane %v3197, 7
        %v3202 = vrot.slane %v3198, 7
        %v3203 = vsel %vm3179, 4, %v3199
        %v3204 = vsel %vm3180, 4, %v3200
        %v3205 = vsel %vm3181, 4, %v3201
        %v3206 = vsel %vm3182, 4, %v3202
        %v3207 = vsel %vm3155, 5, 4
        %v3208 = vsel %vm3156, 5, 4
        %v3209 = vsel %vm3157, 5, 4
        %v3210 = vsel %vm3158, 5, 4
        %v3211 = vrot.slane %v3207, 7
        %v3212 = vrot.slane %v3208, 7
        %v3213 = vrot.slane %v3209, 7
        %v3214 = vrot.slane %v3210, 7
        %v3215 = vsel %vm3179, 6, %v3211
        %v3216 = vsel %vm3180, 6, %v3212
        %v3217 = vsel %vm3181, 6, %v3213
        %v3218 = vsel %vm3182, 6, %v3214
        %v3219 = vsel %vm3155, 7, 6
        %v3220 = vsel %vm3156, 7, 6
        %v3221 = vsel %vm3157, 7, 6
        %v3222 = vsel %vm3158, 7, 6
        %v3227 = vrot.slane %v3183, 2
        %v3228 = vrot.slane %v3184, 2
        %v3229 = vrot.slane %v3185, 2
        %v3230 = vrot.slane %v3186, 2
        %v3235 = vrot.slane %v3183, 3
        %v3236 = vrot.slane %v3184, 3
        %v3237 = vrot.slane %v3185, 3
        %v3238 = vrot.slane %v3186, 3
        %v3243 = vrot.slane %v3183, 4
        %v3244 = vrot.slane %v3184, 4
        %v3245 = vrot.slane %v3185, 4
        %v3246 = vrot.slane %v3186, 4
        %v3251 = vrot.slane %v3159, 4
        %v3252 = vrot.slane %v3160, 4
        %v3253 = vrot.slane %v3161, 4
        %v3254 = vrot.slane %v3162, 4
        %v3259 = vsel %vm651, %v3227, %v3235
        %v3260 = vsel %vm651, %v3228, %v3236
        %v3261 = vsel %vm651, %v3229, %v3237
        %v3262 = vsel %vm651, %v3230, %v3238
        %v3263 = vsel %vm1371, %v3259, %v3243
        %v3264 = vsel %vm1371, %v3260, %v3244
        %v3265 = vsel %vm1371, %v3261, %v3245
        %v3266 = vsel %vm1371, %v3262, %v3246
        %v3267 = vsel %vm1376, %v3263, %v3251
        %v3268 = vsel %vm1376, %v3264, %v3252
        %v3269 = vsel %vm1376, %v3265, %v3253
        %v3270 = vsel %vm1376, %v3266, %v3254
        %v3271 = vrot.slane %v3191, 2
        %v3272 = vrot.slane %v3192, 2
        %v3273 = vrot.slane %v3193, 2
        %v3274 = vrot.slane %v3194, 2
        %v3275 = vrot.slane %v3203, 3
        %v3276 = vrot.slane %v3204, 3
        %v3277 = vrot.slane %v3205, 3
        %v3278 = vrot.slane %v3206, 3
        %v3279 = vrot.slane %v3215, 4
        %v3280 = vrot.slane %v3216, 4
        %v3281 = vrot.slane %v3217, 4
        %v3282 = vrot.slane %v3218, 4
        %v3283 = vrot.slane %v3219, 4
        %v3284 = vrot.slane %v3220, 4
        %v3285 = vrot.slane %v3221, 4
        %v3286 = vrot.slane %v3222, 4
        %v3287 = vsel %vm651, %v3271, %v3275
        %v3288 = vsel %vm651, %v3272, %v3276
        %v3289 = vsel %vm651, %v3273, %v3277
        %v3290 = vsel %vm651, %v3274, %v3278
        %v3291 = vsel %vm1371, %v3287, %v3279
        %v3292 = vsel %vm1371, %v3288, %v3280
        %v3293 = vsel %vm1371, %v3289, %v3281
        %v3294 = vsel %vm1371, %v3290, %v3282
        %v3295 = vsel %vm1376, %v3291, %v3283
        %v3296 = vsel %vm1376, %v3292, %v3284
        %v3297 = vsel %vm1376, %v3293, %v3285
        %v3298 = vsel %vm1376, %v3294, %v3286
        %v3299 = vcombine.low %v3295, %v3296
        %v3300 = vcombine.low %v3297, %v3298
        %3301 = vst [vmem:[%s628] sm:$0xff] %v3299
        %3302 = vst [vmem:[%s628 + $0x8] sm:$0xff] %v3300
        %v3307 = vrot.slane %v3267, 7
        %v3308 = vrot.slane %v3268, 7
        %v3309 = vrot.slane %v3269, 7
        %v3310 = vrot.slane %v3270, 7
        %v3315 = vsel %vm651, 0.0, %v3307
        %v3316 = vsel %vm651, 0.0, %v3308
        %v3317 = vsel %vm651, 0.0, %v3309
        %v3318 = vsel %vm651, 0.0, %v3310
        %v3319 = vrot.slane %v3267, 1
        %v3320 = vrot.slane %v3268, 1
        %v3321 = vrot.slane %v3269, 1
        %v3322 = vrot.slane %v3270, 1
        %v3327 = vsel %vm1376, %v3319, 0.0
        %v3328 = vsel %vm1376, %v3320, 0.0
        %v3329 = vsel %vm1376, %v3321, 0.0
        %v3330 = vsel %vm1376, %v3322, 0.0
        %v3331 = vld [vmem:[#allocation10] sm:$0xff]
        %v3332 = vld [vmem:[#allocation10 + $0x8] sm:$0xff]
        %v3333 = vld [vmem:[#allocation10 + $0x10] sm:$0xff]
        %v3334 = vld [vmem:[#allocation10 + $0x18] sm:$0xff]
        %v3335 = vld [vmem:[#allocation10 + $0x20] sm:$0xff]
        %v3336 = vld [vmem:[#allocation10 + $0x28] sm:$0xff]
        %v3337 = vld [vmem:[#allocation10 + $0x30] sm:$0xff]
        %v3338 = vld [vmem:[#allocation10 + $0x38] sm:$0xff]
        %v3339 = vld [vmem:[#allocation10 + $0x40] sm:$0xff]
        %v3340 = vld [vmem:[#allocation10 + $0x48] sm:$0xff]
        %v3341 = vld [vmem:[#allocation10 + $0x50] sm:$0xff]
        %v3342 = vld [vmem:[#allocation10 + $0x58] sm:$0xff]
        %v3343 = vld [vmem:[#allocation10 + $0x60] sm:$0xff]
        %v3344 = vld [vmem:[#allocation10 + $0x68] sm:$0xff]
        %v3345 = vld [vmem:[#allocation10 + $0x70] sm:$0xff]
        %v3346 = vld [vmem:[#allocation10 + $0x78] sm:$0xff]
        %v3347 = vld [vmem:[#allocation10 + $0x80] sm:$0xff]
        %v3348 = vld [vmem:[#allocation10 + $0x88] sm:$0xff]
        %v3349 = vld [vmem:[#allocation10 + $0x90] sm:$0xff]
        %v3350 = vld [vmem:[#allocation10 + $0x98] sm:$0xff]
        %v3351 = vld [vmem:[#allocation10 + $0xa0] sm:$0xff]
        %v3352 = vld [vmem:[#allocation10 + $0xa8] sm:$0xff]
        %v3353 = vld [vmem:[#allocation10 + $0xb0] sm:$0xff]
        %v3354 = vld [vmem:[#allocation10 + $0xb8] sm:$0xff]
        %v3355 = vld [vmem:[#allocation10 + $0xc0] sm:$0xff]
        %v3356 = vld [vmem:[#allocation10 + $0xc8] sm:$0xff]
        %v3357 = vld [vmem:[#allocation10 + $0xd0] sm:$0xff]
        %v3358 = vld [vmem:[#allocation10 + $0xd8] sm:$0xff]
        %v3359 = vld [vmem:[#allocation10 + $0xe0] sm:$0xff]
        %v3360 = vld [vmem:[#allocation10 + $0xe8] sm:$0xff]
        %v3361 = vld [vmem:[#allocation10 + $0xf0] sm:$0xff]
        %v3362 = vld [vmem:[#allocation10 + $0xf8] sm:$0xff]
        %v3363 = vld [vmem:[#allocation10 + $0x100] sm:$0xff]
        %v3364 = vld [vmem:[#allocation10 + $0x108] sm:$0xff]
        %v3365 = vld [vmem:[#allocation10 + $0x110] sm:$0xff]
        %v3366 = vld [vmem:[#allocation10 + $0x118] sm:$0xff]
        %v3367 = vld [vmem:[#allocation10 + $0x120] sm:$0xff]
        %v3368 = vld [vmem:[#allocation10 + $0x128] sm:$0xff]
        %v3369 = vld [vmem:[#allocation10 + $0x130] sm:$0xff]
        %v3370 = vld [vmem:[#allocation10 + $0x138] sm:$0xff]
        %v3371 = vld [vmem:[#allocation10 + $0x140] sm:$0xff]
        %v3372 = vld [vmem:[#allocation10 + $0x148] sm:$0xff]
        %v3373 = vld [vmem:[#allocation10 + $0x150] sm:$0xff]
        %v3374 = vld [vmem:[#allocation10 + $0x158] sm:$0xff]
        %v3375 = vld [vmem:[#allocation10 + $0x160] sm:$0xff]
        %v3376 = vld [vmem:[#allocation10 + $0x168] sm:$0xff]
        %v3377 = vld [vmem:[#allocation10 + $0x170] sm:$0xff]
        %v3378 = vld [vmem:[#allocation10 + $0x178] sm:$0xff]
        %v3379 = vld [vmem:[#allocation10 + $0x180] sm:$0xff]
        %v3380 = vld [vmem:[#allocation10 + $0x188] sm:$0xff]
        %v3381 = vld [vmem:[#allocation10 + $0x190] sm:$0xff]
        %v3382 = vld [vmem:[#allocation10 + $0x198] sm:$0xff]
        %v3383 = vld [vmem:[#allocation10 + $0x1a0] sm:$0xff]
        %v3384 = vld [vmem:[#allocation10 + $0x1a8] sm:$0xff]
        %v3385 = vld [vmem:[#allocation10 + $0x1b0] sm:$0xff]
        %v3386 = vld [vmem:[#allocation10 + $0x1b8] sm:$0xff]
        %v3387 = vld [vmem:[#allocation10 + $0x1c0] sm:$0xff]
        %v3388 = vld [vmem:[#allocation10 + $0x1c8] sm:$0xff]
        %v3389 = vld [vmem:[#allocation10 + $0x1d0] sm:$0xff]
        %v3390 = vld [vmem:[#allocation10 + $0x1d8] sm:$0xff]
        %v3391 = vld [vmem:[#allocation10 + $0x1e0] sm:$0xff]
        %v3392 = vld [vmem:[#allocation10 + $0x1e8] sm:$0xff]
        %v3393 = vld [vmem:[#allocation10 + $0x1f0] sm:$0xff]
        %v3394 = vld [vmem:[#allocation10 + $0x1f8] sm:$0xff]
        %s3395 = scalar_lea.vmem [#allocation10], 512
        %v3396 = vld [vmem:[%s3395] sm:$0xff]
        %v3397 = vld [vmem:[%s3395 + $0x8] sm:$0xff]
        %v3398 = vld [vmem:[%s3395 + $0x10] sm:$0xff]
        %v3399 = vld [vmem:[%s3395 + $0x18] sm:$0xff]
        %v3400 = vld [vmem:[%s3395 + $0x20] sm:$0xff]
        %v3401 = vld [vmem:[%s3395 + $0x28] sm:$0xff]
        %v3402 = vld [vmem:[%s3395 + $0x30] sm:$0xff]
        %v3403 = vld [vmem:[%s3395 + $0x38] sm:$0xff]
        %v3404 = vld [vmem:[%s3395 + $0x40] sm:$0xff]
        %v3405 = vld [vmem:[%s3395 + $0x48] sm:$0xff]
        %v3406 = vld [vmem:[%s3395 + $0x50] sm:$0xff]
        %v3407 = vld [vmem:[%s3395 + $0x58] sm:$0xff]
        %v3408 = vld [vmem:[%s3395 + $0x60] sm:$0xff]
        %v3409 = vld [vmem:[%s3395 + $0x68] sm:$0xff]
        %v3410 = vld [vmem:[%s3395 + $0x70] sm:$0xff]
        %v3411 = vld [vmem:[%s3395 + $0x78] sm:$0xff]
        %v3412 = vld [vmem:[%s3395 + $0x80] sm:$0xff]
        %v3413 = vld [vmem:[%s3395 + $0x88] sm:$0xff]
        %v3414 = vld [vmem:[%s3395 + $0x90] sm:$0xff]
        %v3415 = vld [vmem:[%s3395 + $0x98] sm:$0xff]
        %v3416 = vld [vmem:[%s3395 + $0xa0] sm:$0xff]
        %v3417 = vld [vmem:[%s3395 + $0xa8] sm:$0xff]
        %v3418 = vld [vmem:[%s3395 + $0xb0] sm:$0xff]
        %v3419 = vld [vmem:[%s3395 + $0xb8] sm:$0xff]
        %v3420 = vld [vmem:[%s3395 + $0xc0] sm:$0xff]
        %v3421 = vld [vmem:[%s3395 + $0xc8] sm:$0xff]
        %v3422 = vld [vmem:[%s3395 + $0xd0] sm:$0xff]
        %v3423 = vld [vmem:[%s3395 + $0xd8] sm:$0xff]
        %v3424 = vld [vmem:[%s3395 + $0xe0] sm:$0xff]
        %v3425 = vld [vmem:[%s3395 + $0xe8] sm:$0xff]
        %v3426 = vld [vmem:[%s3395 + $0xf0] sm:$0xff]
        %v3427 = vld [vmem:[%s3395 + $0xf8] sm:$0xff]
        %v3428 = vld [vmem:[%s3395 + $0x100] sm:$0xff]
        %v3429 = vld [vmem:[%s3395 + $0x108] sm:$0xff]
        %v3430 = vld [vmem:[%s3395 + $0x110] sm:$0xff]
        %v3431 = vld [vmem:[%s3395 + $0x118] sm:$0xff]
        %v3432 = vld [vmem:[%s3395 + $0x120] sm:$0xff]
        %v3433 = vld [vmem:[%s3395 + $0x128] sm:$0xff]
        %v3434 = vld [vmem:[%s3395 + $0x130] sm:$0xff]
        %v3435 = vld [vmem:[%s3395 + $0x138] sm:$0xff]
        %v3436 = vld [vmem:[%s3395 + $0x140] sm:$0xff]
        %v3437 = vld [vmem:[%s3395 + $0x148] sm:$0xff]
        %v3438 = vld [vmem:[%s3395 + $0x150] sm:$0xff]
        %v3439 = vld [vmem:[%s3395 + $0x158] sm:$0xff]
        %v3440 = vld [vmem:[%s3395 + $0x160] sm:$0xff]
        %v3441 = vld [vmem:[%s3395 + $0x168] sm:$0xff]
        %v3442 = vld [vmem:[%s3395 + $0x170] sm:$0xff]
        %v3443 = vld [vmem:[%s3395 + $0x178] sm:$0xff]
        %v3444 = vld [vmem:[%s3395 + $0x180] sm:$0xff]
        %v3445 = vld [vmem:[%s3395 + $0x188] sm:$0xff]
        %v3446 = vld [vmem:[%s3395 + $0x190] sm:$0xff]
        %v3447 = vld [vmem:[%s3395 + $0x198] sm:$0xff]
        %v3448 = vld [vmem:[%s3395 + $0x1a0] sm:$0xff]
        %v3449 = vld [vmem:[%s3395 + $0x1a8] sm:$0xff]
        %v3450 = vld [vmem:[%s3395 + $0x1b0] sm:$0xff]
        %v3451 = vld [vmem:[%s3395 + $0x1b8] sm:$0xff]
        %v3452 = vld [vmem:[%s3395 + $0x1c0] sm:$0xff]
        %v3453 = vld [vmem:[%s3395 + $0x1c8] sm:$0xff]
        %v3454 = vld [vmem:[%s3395 + $0x1d0] sm:$0xff]
        %v3455 = vld [vmem:[%s3395 + $0x1d8] sm:$0xff]
        %v3456 = vld [vmem:[%s3395 + $0x1e0] sm:$0xff]
        %v3457 = vld [vmem:[%s3395 + $0x1e8] sm:$0xff]
        %v3458 = vld [vmem:[%s3395 + $0x1f0] sm:$0xff]
        %v3459 = vld [vmem:[%s3395 + $0x1f8] sm:$0xff]
        %3460 = vmatprep.subr.mxu0 0.0
        %3461 = vmatpush1.msra.mxu0 %v3396
        %3462 = vmatprep.subr.mxu0 0.0
        %3463 = vmatpush1.msra.mxu0 %v3397
        %3464 = vmatprep.subr.mxu0 0.0
        %3465 = vmatpush1.msra.mxu0 %v3398
        %3466 = vmatprep.subr.mxu0 0.0
        %3467 = vmatpush1.msra.mxu0 %v3399
        %3468 = vmatprep.subr.mxu0 0.0
        %3469 = vmatpush1.msra.mxu0 %v3400
        %3470 = vmatprep.subr.mxu0 0.0
        %3471 = vmatpush1.msra.mxu0 %v3401
        %3472 = vmatprep.subr.mxu0 0.0
        %3473 = vmatpush1.msra.mxu0 %v3402
        %3474 = vmatprep.subr.mxu0 0.0
        %3475 = vmatpush1.msra.mxu0 %v3403
        %3476 = vmatprep.subr.mxu0 0.0
        %3477 = vmatpush1.msra.mxu0 %v3404
        %3478 = vmatprep.subr.mxu0 0.0
        %3479 = vmatpush1.msra.mxu0 %v3405
        %3480 = vmatprep.subr.mxu0 0.0
        %3481 = vmatpush1.msra.mxu0 %v3406
        %3482 = vmatprep.subr.mxu0 0.0
        %3483 = vmatpush1.msra.mxu0 %v3407
        %3484 = vmatprep.subr.mxu0 0.0
        %3485 = vmatpush1.msra.mxu0 %v3408
        %3486 = vmatprep.subr.mxu0 0.0
        %3487 = vmatpush1.msra.mxu0 %v3409
        %3488 = vmatprep.subr.mxu0 0.0
        %3489 = vmatpush1.msra.mxu0 %v3410
        %3490 = vmatprep.subr.mxu0 0.0
        %3491 = vmatpush1.msra.mxu0 %v3411
        %3492 = vmatprep.subr.mxu0 0.0
        %3493 = vmatpush1.msra.mxu0 %v3412
        %3494 = vmatprep.subr.mxu0 0.0
        %3495 = vmatpush1.msra.mxu0 %v3413
        %3496 = vmatprep.subr.mxu0 0.0
        %3497 = vmatpush1.msra.mxu0 %v3414
        %3498 = vmatprep.subr.mxu0 0.0
        %3499 = vmatpush1.msra.mxu0 %v3415
        %3500 = vmatprep.subr.mxu0 0.0
        %3501 = vmatpush1.msra.mxu0 %v3416
        %3502 = vmatprep.subr.mxu0 0.0
        %3503 = vmatpush1.msra.mxu0 %v3417
        %3504 = vmatprep.subr.mxu0 0.0
        %3505 = vmatpush1.msra.mxu0 %v3418
        %3506 = vmatprep.subr.mxu0 0.0
        %3507 = vmatpush1.msra.mxu0 %v3419
        %3508 = vmatprep.subr.mxu0 0.0
        %3509 = vmatpush1.msra.mxu0 %v3420
        %3510 = vmatprep.subr.mxu0 0.0
        %3511 = vmatpush1.msra.mxu0 %v3421
        %3512 = vmatprep.subr.mxu0 0.0
        %3513 = vmatpush1.msra.mxu0 %v3422
        %3514 = vmatprep.subr.mxu0 0.0
        %3515 = vmatpush1.msra.mxu0 %v3423
        %3516 = vmatprep.subr.mxu0 0.0
        %3517 = vmatpush1.msra.mxu0 %v3424
        %3518 = vmatprep.subr.mxu0 0.0
        %3519 = vmatpush1.msra.mxu0 %v3425
        %3520 = vmatprep.subr.mxu0 0.0
        %3521 = vmatpush1.msra.mxu0 %v3426
        %3522 = vmatprep.subr.mxu0 0.0
        %3523 = vmatpush1.msra.mxu0 %v3427
        %3524 = vmatprep.mubr.f32.mxu0 %v3268
        %3525 = vmatmul.mubr.f32.gmra.mrb[0].mxu0 %v3267
        %v3526 = vpop.f32.mrb[0].mxu0
        %v3527 = vadd.f32 0.0, %v3526
        %v3528 = vpop.f32.mrb[0].mxu0
        %3529 = vdwg.mxu0
        %3530 = vmatprep.subr.mxu0 0.0
        %3531 = vmatpush1.msra.mxu0 %v3428
        %3532 = vmatprep.subr.mxu0 0.0
        %3533 = vmatpush1.msra.mxu0 %v3429
        %3534 = vmatprep.subr.mxu0 0.0
        %3535 = vmatpush1.msra.mxu0 %v3430
        %3536 = vmatprep.subr.mxu0 0.0
        %3537 = vmatpush1.msra.mxu0 %v3431
        %3538 = vmatprep.subr.mxu0 0.0
        %3539 = vmatpush1.msra.mxu0 %v3432
        %3540 = vmatprep.subr.mxu0 0.0
        %3541 = vmatpush1.msra.mxu0 %v3433
        %3542 = vmatprep.subr.mxu0 0.0
        %3543 = vmatpush1.msra.mxu0 %v3434
        %3544 = vmatprep.subr.mxu0 0.0
        %3545 = vmatpush1.msra.mxu0 %v3435
        %3546 = vmatprep.subr.mxu0 0.0
        %3547 = vmatpush1.msra.mxu0 %v3436
        %3548 = vmatprep.subr.mxu0 0.0
        %3549 = vmatpush1.msra.mxu0 %v3437
        %3550 = vmatprep.subr.mxu0 0.0
        %3551 = vmatpush1.msra.mxu0 %v3438
        %3552 = vmatprep.subr.mxu0 0.0
        %3553 = vmatpush1.msra.mxu0 %v3439
        %3554 = vmatprep.subr.mxu0 0.0
        %3555 = vmatpush1.msra.mxu0 %v3440
        %3556 = vmatprep.subr.mxu0 0.0
        %3557 = vmatpush1.msra.mxu0 %v3441
        %3558 = vmatprep.subr.mxu0 0.0
        %3559 = vmatpush1.msra.mxu0 %v3442
        %3560 = vmatprep.subr.mxu0 0.0
        %3561 = vmatpush1.msra.mxu0 %v3443
        %3562 = vmatprep.subr.mxu0 0.0
        %3563 = vmatpush1.msra.mxu0 %v3444
        %3564 = vmatprep.subr.mxu0 0.0
        %3565 = vmatpush1.msra.mxu0 %v3445
        %3566 = vmatprep.subr.mxu0 0.0
        %3567 = vmatpush1.msra.mxu0 %v3446
        %3568 = vmatprep.subr.mxu0 0.0
        %3569 = vmatpush1.msra.mxu0 %v3447
        %3570 = vmatprep.subr.mxu0 0.0
        %3571 = vmatpush1.msra.mxu0 %v3448
        %3572 = vmatprep.subr.mxu0 0.0
        %3573 = vmatpush1.msra.mxu0 %v3449
        %3574 = vmatprep.subr.mxu0 0.0
        %3575 = vmatpush1.msra.mxu0 %v3450
        %3576 = vmatprep.subr.mxu0 0.0
        %3577 = vmatpush1.msra.mxu0 %v3451
        %3578 = vmatprep.subr.mxu0 0.0
        %3579 = vmatpush1.msra.mxu0 %v3452
        %3580 = vmatprep.subr.mxu0 0.0
        %3581 = vmatpush1.msra.mxu0 %v3453
        %3582 = vmatprep.subr.mxu0 0.0
        %3583 = vmatpush1.msra.mxu0 %v3454
        %3584 = vmatprep.subr.mxu0 0.0
        %3585 = vmatpush1.msra.mxu0 %v3455
        %3586 = vmatprep.subr.mxu0 0.0
        %3587 = vmatpush1.msra.mxu0 %v3456
        %3588 = vmatprep.subr.mxu0 0.0
        %3589 = vmatpush1.msra.mxu0 %v3457
        %3590 = vmatprep.subr.mxu0 0.0
        %3591 = vmatpush1.msra.mxu0 %v3458
        %3592 = vmatprep.subr.mxu0 0.0
        %3593 = vmatpush1.msra.mxu0 %v3459
        %3594 = vmatprep.mubr.f32.mxu0 %v3270
        %3595 = vmatmul.mubr.f32.gmra.mrb[0].mxu0 %v3269
        %v3596 = vpop.f32.mrb[0].mxu0
        %v3597 = vadd.f32 %v3527, %v3596
        %v3598 = vpop.f32.mrb[0].mxu0
        %3599 = vdwg.mxu0
        %3600 = vmatprep.subr.mxu0 0.0
        %3601 = vmatpush1.msra.mxu0 %v3331
        %3602 = vmatprep.subr.mxu0 0.0
        %3603 = vmatpush1.msra.mxu0 %v3332
        %3604 = vmatprep.subr.mxu0 0.0
        %3605 = vmatpush1.msra.mxu0 %v3333
        %3606 = vmatprep.subr.mxu0 0.0
        %3607 = vmatpush1.msra.mxu0 %v3334
        %3608 = vmatprep.subr.mxu0 0.0
        %3609 = vmatpush1.msra.mxu0 %v3335
        %3610 = vmatprep.subr.mxu0 0.0
        %3611 = vmatpush1.msra.mxu0 %v3336
        %3612 = vmatprep.subr.mxu0 0.0
        %3613 = vmatpush1.msra.mxu0 %v3337
        %3614 = vmatprep.subr.mxu0 0.0
        %3615 = vmatpush1.msra.mxu0 %v3338
        %3616 = vmatprep.subr.mxu0 0.0
        %3617 = vmatpush1.msra.mxu0 %v3339
        %3618 = vmatprep.subr.mxu0 0.0
        %3619 = vmatpush1.msra.mxu0 %v3340
        %3620 = vmatprep.subr.mxu0 0.0
        %3621 = vmatpush1.msra.mxu0 %v3341
        %3622 = vmatprep.subr.mxu0 0.0
        %3623 = vmatpush1.msra.mxu0 %v3342
        %3624 = vmatprep.subr.mxu0 0.0
        %3625 = vmatpush1.msra.mxu0 %v3343
        %3626 = vmatprep.subr.mxu0 0.0
        %3627 = vmatpush1.msra.mxu0 %v3344
        %3628 = vmatprep.subr.mxu0 0.0
        %3629 = vmatpush1.msra.mxu0 %v3345
        %3630 = vmatprep.subr.mxu0 0.0
        %3631 = vmatpush1.msra.mxu0 %v3346
        %3632 = vmatprep.subr.mxu0 0.0
        %3633 = vmatpush1.msra.mxu0 %v3347
        %3634 = vmatprep.subr.mxu0 0.0
        %3635 = vmatpush1.msra.mxu0 %v3348
        %3636 = vmatprep.subr.mxu0 0.0
        %3637 = vmatpush1.msra.mxu0 %v3349
        %3638 = vmatprep.subr.mxu0 0.0
        %3639 = vmatpush1.msra.mxu0 %v3350
        %3640 = vmatprep.subr.mxu0 0.0
        %3641 = vmatpush1.msra.mxu0 %v3351
        %3642 = vmatprep.subr.mxu0 0.0
        %3643 = vmatpush1.msra.mxu0 %v3352
        %3644 = vmatprep.subr.mxu0 0.0
        %3645 = vmatpush1.msra.mxu0 %v3353
        %3646 = vmatprep.subr.mxu0 0.0
        %3647 = vmatpush1.msra.mxu0 %v3354
        %3648 = vmatprep.subr.mxu0 0.0
        %3649 = vmatpush1.msra.mxu0 %v3355
        %3650 = vmatprep.subr.mxu0 0.0
        %3651 = vmatpush1.msra.mxu0 %v3356
        %3652 = vmatprep.subr.mxu0 0.0
        %3653 = vmatpush1.msra.mxu0 %v3357
        %3654 = vmatprep.subr.mxu0 0.0
        %3655 = vmatpush1.msra.mxu0 %v3358
        %3656 = vmatprep.subr.mxu0 0.0
        %3657 = vmatpush1.msra.mxu0 %v3359
        %3658 = vmatprep.subr.mxu0 0.0
        %3659 = vmatpush1.msra.mxu0 %v3360
        %3660 = vmatprep.subr.mxu0 0.0
        %3661 = vmatpush1.msra.mxu0 %v3361
        %3662 = vmatprep.subr.mxu0 0.0
        %3663 = vmatpush1.msra.mxu0 %v3362
        %3664 = vmatprep.mubr.f32.mxu0 %v3316
        %3665 = vmatmul.mubr.f32.gmra.mrb[0].mxu0 %v3315
        %v3666 = vpop.f32.mrb[0].mxu0
        %v3667 = vadd.f32 %v3597, %v3666
        %v3668 = vpop.f32.mrb[0].mxu0
        %3669 = vdwg.mxu0
        %3670 = vmatprep.subr.mxu0 0.0
        %3671 = vmatpush1.msra.mxu0 %v3363
        %3672 = vmatprep.subr.mxu0 0.0
        %3673 = vmatpush1.msra.mxu0 %v3364
        %3674 = vmatprep.subr.mxu0 0.0
        %3675 = vmatpush1.msra.mxu0 %v3365
        %3676 = vmatprep.subr.mxu0 0.0
        %3677 = vmatpush1.msra.mxu0 %v3366
        %3678 = vmatprep.subr.mxu0 0.0
        %3679 = vmatpush1.msra.mxu0 %v3367
        %3680 = vmatprep.subr.mxu0 0.0
        %3681 = vmatpush1.msra.mxu0 %v3368
        %3682 = vmatprep.subr.mxu0 0.0
        %3683 = vmatpush1.msra.mxu0 %v3369
        %3684 = vmatprep.subr.mxu0 0.0
        %3685 = vmatpush1.msra.mxu0 %v3370
        %3686 = vmatprep.subr.mxu0 0.0
        %3687 = vmatpush1.msra.mxu0 %v3371
        %3688 = vmatprep.subr.mxu0 0.0
        %3689 = vmatpush1.msra.mxu0 %v3372
        %3690 = vmatprep.subr.mxu0 0.0
        %3691 = vmatpush1.msra.mxu0 %v3373
        %3692 = vmatprep.subr.mxu0 0.0
        %3693 = vmatpush1.msra.mxu0 %v3374
        %3694 = vmatprep.subr.mxu0 0.0
        %3695 = vmatpush1.msra.mxu0 %v3375
        %3696 = vmatprep.subr.mxu0 0.0
        %3697 = vmatpush1.msra.mxu0 %v3376
        %3698 = vmatprep.subr.mxu0 0.0
        %3699 = vmatpush1.msra.mxu0 %v3377
        %3700 = vmatprep.subr.mxu0 0.0
        %3701 = vmatpush1.msra.mxu0 %v3378
        %3702 = vmatprep.subr.mxu0 0.0
        %3703 = vmatpush1.msra.mxu0 %v3379
        %3704 = vmatprep.subr.mxu0 0.0
        %3705 = vmatpush1.msra.mxu0 %v3380
        %3706 = vmatprep.subr.mxu0 0.0
        %3707 = vmatpush1.msra.mxu0 %v3381
        %3708 = vmatprep.subr.mxu0 0.0
        %3709 = vmatpush1.msra.mxu0 %v3382
        %3710 = vmatprep.subr.mxu0 0.0
        %3711 = vmatpush1.msra.mxu0 %v3383
        %3712 = vmatprep.subr.mxu0 0.0
        %3713 = vmatpush1.msra.mxu0 %v3384
        %3714 = vmatprep.subr.mxu0 0.0
        %3715 = vmatpush1.msra.mxu0 %v3385
        %3716 = vmatprep.subr.mxu0 0.0
        %3717 = vmatpush1.msra.mxu0 %v3386
        %3718 = vmatprep.subr.mxu0 0.0
        %3719 = vmatpush1.msra.mxu0 %v3387
        %3720 = vmatprep.subr.mxu0 0.0
        %3721 = vmatpush1.msra.mxu0 %v3388
        %3722 = vmatprep.subr.mxu0 0.0
        %3723 = vmatpush1.msra.mxu0 %v3389
        %3724 = vmatprep.subr.mxu0 0.0
        %3725 = vmatpush1.msra.mxu0 %v3390
        %3726 = vmatprep.subr.mxu0 0.0
        %3727 = vmatpush1.msra.mxu0 %v3391
        %3728 = vmatprep.subr.mxu0 0.0
        %3729 = vmatpush1.msra.mxu0 %v3392
        %3730 = vmatprep.subr.mxu0 0.0
        %3731 = vmatpush1.msra.mxu0 %v3393
        %3732 = vmatprep.subr.mxu0 0.0
        %3733 = vmatpush1.msra.mxu0 %v3394
        %3734 = vmatprep.mubr.f32.mxu0 %v3318
        %3735 = vmatmul.mubr.f32.gmra.mrb[0].mxu0 %v3317
        %v3736 = vpop.f32.mrb[0].mxu0
        %v3737 = vadd.f32 %v3667, %v3736
        %v3738 = vpop.f32.mrb[0].mxu0
        %3739 = vdwg.mxu0
        %s3740 = scalar_lea.vmem [#allocation10], 1024
        %v3741 = vld [vmem:[%s3740] sm:$0xff]
        %v3742 = vld [vmem:[%s3740 + $0x8] sm:$0xff]
        %v3743 = vld [vmem:[%s3740 + $0x10] sm:$0xff]
        %v3744 = vld [vmem:[%s3740 + $0x18] sm:$0xff]
        %v3745 = vld [vmem:[%s3740 + $0x20] sm:$0xff]
        %v3746 = vld [vmem:[%s3740 + $0x28] sm:$0xff]
        %v3747 = vld [vmem:[%s3740 + $0x30] sm:$0xff]
        %v3748 = vld [vmem:[%s3740 + $0x38] sm:$0xff]
        %v3749 = vld [vmem:[%s3740 + $0x40] sm:$0xff]
        %v3750 = vld [vmem:[%s3740 + $0x48] sm:$0xff]
        %v3751 = vld [vmem:[%s3740 + $0x50] sm:$0xff]
        %v3752 = vld [vmem:[%s3740 + $0x58] sm:$0xff]
        %v3753 = vld [vmem:[%s3740 + $0x60] sm:$0xff]
        %v3754 = vld [vmem:[%s3740 + $0x68] sm:$0xff]
        %v3755 = vld [vmem:[%s3740 + $0x70] sm:$0xff]
        %v3756 = vld [vmem:[%s3740 + $0x78] sm:$0xff]
        %v3757 = vld [vmem:[%s3740 + $0x80] sm:$0xff]
        %v3758 = vld [vmem:[%s3740 + $0x88] sm:$0xff]
        %v3759 = vld [vmem:[%s3740 + $0x90] sm:$0xff]
        %v3760 = vld [vmem:[%s3740 + $0x98] sm:$0xff]
        %v3761 = vld [vmem:[%s3740 + $0xa0] sm:$0xff]
        %v3762 = vld [vmem:[%s3740 + $0xa8] sm:$0xff]
        %v3763 = vld [vmem:[%s3740 + $0xb0] sm:$0xff]
        %v3764 = vld [vmem:[%s3740 + $0xb8] sm:$0xff]
        %v3765 = vld [vmem:[%s3740 + $0xc0] sm:$0xff]
        %v3766 = vld [vmem:[%s3740 + $0xc8] sm:$0xff]
        %v3767 = vld [vmem:[%s3740 + $0xd0] sm:$0xff]
        %v3768 = vld [vmem:[%s3740 + $0xd8] sm:$0xff]
        %v3769 = vld [vmem:[%s3740 + $0xe0] sm:$0xff]
        %v3770 = vld [vmem:[%s3740 + $0xe8] sm:$0xff]
        %v3771 = vld [vmem:[%s3740 + $0xf0] sm:$0xff]
        %v3772 = vld [vmem:[%s3740 + $0xf8] sm:$0xff]
        %v3773 = vld [vmem:[%s3740 + $0x100] sm:$0xff]
        %v3774 = vld [vmem:[%s3740 + $0x108] sm:$0xff]
        %v3775 = vld [vmem:[%s3740 + $0x110] sm:$0xff]
        %v3776 = vld [vmem:[%s3740 + $0x118] sm:$0xff]
        %v3777 = vld [vmem:[%s3740 + $0x120] sm:$0xff]
        %v3778 = vld [vmem:[%s3740 + $0x128] sm:$0xff]
        %v3779 = vld [vmem:[%s3740 + $0x130] sm:$0xff]
        %v3780 = vld [vmem:[%s3740 + $0x138] sm:$0xff]
        %v3781 = vld [vmem:[%s3740 + $0x140] sm:$0xff]
        %v3782 = vld [vmem:[%s3740 + $0x148] sm:$0xff]
        %v3783 = vld [vmem:[%s3740 + $0x150] sm:$0xff]
        %v3784 = vld [vmem:[%s3740 + $0x158] sm:$0xff]
        %v3785 = vld [vmem:[%s3740 + $0x160] sm:$0xff]
        %v3786 = vld [vmem:[%s3740 + $0x168] sm:$0xff]
        %v3787 = vld [vmem:[%s3740 + $0x170] sm:$0xff]
        %v3788 = vld [vmem:[%s3740 + $0x178] sm:$0xff]
        %v3789 = vld [vmem:[%s3740 + $0x180] sm:$0xff]
        %v3790 = vld [vmem:[%s3740 + $0x188] sm:$0xff]
        %v3791 = vld [vmem:[%s3740 + $0x190] sm:$0xff]
        %v3792 = vld [vmem:[%s3740 + $0x198] sm:$0xff]
        %v3793 = vld [vmem:[%s3740 + $0x1a0] sm:$0xff]
        %v3794 = vld [vmem:[%s3740 + $0x1a8] sm:$0xff]
        %v3795 = vld [vmem:[%s3740 + $0x1b0] sm:$0xff]
        %v3796 = vld [vmem:[%s3740 + $0x1b8] sm:$0xff]
        %v3797 = vld [vmem:[%s3740 + $0x1c0] sm:$0xff]
        %v3798 = vld [vmem:[%s3740 + $0x1c8] sm:$0xff]
        %v3799 = vld [vmem:[%s3740 + $0x1d0] sm:$0xff]
        %v3800 = vld [vmem:[%s3740 + $0x1d8] sm:$0xff]
        %v3801 = vld [vmem:[%s3740 + $0x1e0] sm:$0xff]
        %v3802 = vld [vmem:[%s3740 + $0x1e8] sm:$0xff]
        %v3803 = vld [vmem:[%s3740 + $0x1f0] sm:$0xff]
        %v3804 = vld [vmem:[%s3740 + $0x1f8] sm:$0xff]
        %3805 = vmatprep.subr.mxu0 0.0
        %3806 = vmatpush1.msra.mxu0 %v3741
        %3807 = vmatprep.subr.mxu0 0.0
        %3808 = vmatpush1.msra.mxu0 %v3742
        %3809 = vmatprep.subr.mxu0 0.0
        %3810 = vmatpush1.msra.mxu0 %v3743
        %3811 = vmatprep.subr.mxu0 0.0
        %3812 = vmatpush1.msra.mxu0 %v3744
        %3813 = vmatprep.subr.mxu0 0.0
        %3814 = vmatpush1.msra.mxu0 %v3745
        %3815 = vmatprep.subr.mxu0 0.0
        %3816 = vmatpush1.msra.mxu0 %v3746
        %3817 = vmatprep.subr.mxu0 0.0
        %3818 = vmatpush1.msra.mxu0 %v3747
        %3819 = vmatprep.subr.mxu0 0.0
        %3820 = vmatpush1.msra.mxu0 %v3748
        %3821 = vmatprep.subr.mxu0 0.0
        %3822 = vmatpush1.msra.mxu0 %v3749
        %3823 = vmatprep.subr.mxu0 0.0
        %3824 = vmatpush1.msra.mxu0 %v3750
        %3825 = vmatprep.subr.mxu0 0.0
        %3826 = vmatpush1.msra.mxu0 %v3751
        %3827 = vmatprep.subr.mxu0 0.0
        %3828 = vmatpush1.msra.mxu0 %v3752
        %3829 = vmatprep.subr.mxu0 0.0
        %3830 = vmatpush1.msra.mxu0 %v3753
        %3831 = vmatprep.subr.mxu0 0.0
        %3832 = vmatpush1.msra.mxu0 %v3754
        %3833 = vmatprep.subr.mxu0 0.0
        %3834 = vmatpush1.msra.mxu0 %v3755
        %3835 = vmatprep.subr.mxu0 0.0
        %3836 = vmatpush1.msra.mxu0 %v3756
        %3837 = vmatprep.subr.mxu0 0.0
        %3838 = vmatpush1.msra.mxu0 %v3757
        %3839 = vmatprep.subr.mxu0 0.0
        %3840 = vmatpush1.msra.mxu0 %v3758
        %3841 = vmatprep.subr.mxu0 0.0
        %3842 = vmatpush1.msra.mxu0 %v3759
        %3843 = vmatprep.subr.mxu0 0.0
        %3844 = vmatpush1.msra.mxu0 %v3760
        %3845 = vmatprep.subr.mxu0 0.0
        %3846 = vmatpush1.msra.mxu0 %v3761
        %3847 = vmatprep.subr.mxu0 0.0
        %3848 = vmatpush1.msra.mxu0 %v3762
        %3849 = vmatprep.subr.mxu0 0.0
        %3850 = vmatpush1.msra.mxu0 %v3763
        %3851 = vmatprep.subr.mxu0 0.0
        %3852 = vmatpush1.msra.mxu0 %v3764
        %3853 = vmatprep.subr.mxu0 0.0
        %3854 = vmatpush1.msra.mxu0 %v3765
        %3855 = vmatprep.subr.mxu0 0.0
        %3856 = vmatpush1.msra.mxu0 %v3766
        %3857 = vmatprep.subr.mxu0 0.0
        %3858 = vmatpush1.msra.mxu0 %v3767
        %3859 = vmatprep.subr.mxu0 0.0
        %3860 = vmatpush1.msra.mxu0 %v3768
        %3861 = vmatprep.subr.mxu0 0.0
        %3862 = vmatpush1.msra.mxu0 %v3769
        %3863 = vmatprep.subr.mxu0 0.0
        %3864 = vmatpush1.msra.mxu0 %v3770
        %3865 = vmatprep.subr.mxu0 0.0
        %3866 = vmatpush1.msra.mxu0 %v3771
        %3867 = vmatprep.subr.mxu0 0.0
        %3868 = vmatpush1.msra.mxu0 %v3772
        %3869 = vmatprep.mubr.f32.mxu0 %v3328
        %3870 = vmatmul.mubr.f32.gmra.mrb[0].mxu0 %v3327
        %v3871 = vpop.f32.mrb[0].mxu0
        %v3872 = vadd.f32 0.0, %v3871
        %v3873 = vpop.f32.mrb[0].mxu0
        %3874 = vdwg.mxu0
        %3875 = vmatprep.subr.mxu0 0.0
        %3876 = vmatpush1.msra.mxu0 %v3773
        %3877 = vmatprep.subr.mxu0 0.0
        %3878 = vmatpush1.msra.mxu0 %v3774
        %3879 = vmatprep.subr.mxu0 0.0
        %3880 = vmatpush1.msra.mxu0 %v3775
        %3881 = vmatprep.subr.mxu0 0.0
        %3882 = vmatpush1.msra.mxu0 %v3776
        %3883 = vmatprep.subr.mxu0 0.0
        %3884 = vmatpush1.msra.mxu0 %v3777
        %3885 = vmatprep.subr.mxu0 0.0
        %3886 = vmatpush1.msra.mxu0 %v3778
        %3887 = vmatprep.subr.mxu0 0.0
        %3888 = vmatpush1.msra.mxu0 %v3779
        %3889 = vmatprep.subr.mxu0 0.0
        %3890 = vmatpush1.msra.mxu0 %v3780
        %3891 = vmatprep.subr.mxu0 0.0
        %3892 = vmatpush1.msra.mxu0 %v3781
        %3893 = vmatprep.subr.mxu0 0.0
        %3894 = vmatpush1.msra.mxu0 %v3782
        %3895 = vmatprep.subr.mxu0 0.0
        %3896 = vmatpush1.msra.mxu0 %v3783
        %3897 = vmatprep.subr.mxu0 0.0
        %3898 = vmatpush1.msra.mxu0 %v3784
        %3899 = vmatprep.subr.mxu0 0.0
        %3900 = vmatpush1.msra.mxu0 %v3785
        %3901 = vmatprep.subr.mxu0 0.0
        %3902 = vmatpush1.msra.mxu0 %v3786
        %3903 = vmatprep.subr.mxu0 0.0
        %3904 = vmatpush1.msra.mxu0 %v3787
        %3905 = vmatprep.subr.mxu0 0.0
        %3906 = vmatpush1.msra.mxu0 %v3788
        %3907 = vmatprep.subr.mxu0 0.0
        %3908 = vmatpush1.msra.mxu0 %v3789
        %3909 = vmatprep.subr.mxu0 0.0
        %3910 = vmatpush1.msra.mxu0 %v3790
        %3911 = vmatprep.subr.mxu0 0.0
        %3912 = vmatpush1.msra.mxu0 %v3791
        %3913 = vmatprep.subr.mxu0 0.0
        %3914 = vmatpush1.msra.mxu0 %v3792
        %3915 = vmatprep.subr.mxu0 0.0
        %3916 = vmatpush1.msra.mxu0 %v3793
        %3917 = vmatprep.subr.mxu0 0.0
        %3918 = vmatpush1.msra.mxu0 %v3794
        %3919 = vmatprep.subr.mxu0 0.0
        %3920 = vmatpush1.msra.mxu0 %v3795
        %3921 = vmatprep.subr.mxu0 0.0
        %3922 = vmatpush1.msra.mxu0 %v3796
        %3923 = vmatprep.subr.mxu0 0.0
        %3924 = vmatpush1.msra.mxu0 %v3797
        %3925 = vmatprep.subr.mxu0 0.0
        %3926 = vmatpush1.msra.mxu0 %v3798
        %3927 = vmatprep.subr.mxu0 0.0
        %3928 = vmatpush1.msra.mxu0 %v3799
        %3929 = vmatprep.subr.mxu0 0.0
        %3930 = vmatpush1.msra.mxu0 %v3800
        %3931 = vmatprep.subr.mxu0 0.0
        %3932 = vmatpush1.msra.mxu0 %v3801
        %3933 = vmatprep.subr.mxu0 0.0
        %3934 = vmatpush1.msra.mxu0 %v3802
        %3935 = vmatprep.subr.mxu0 0.0
        %3936 = vmatpush1.msra.mxu0 %v3803
        %3937 = vmatprep.subr.mxu0 0.0
        %3938 = vmatpush1.msra.mxu0 %v3804
        %3939 = vmatprep.mubr.f32.mxu0 %v3330
        %3940 = vmatmul.mubr.f32.gmra.mrb[0].mxu0 %v3329
        %v3941 = vpop.f32.mrb[0].mxu0
        %v3942 = vadd.f32 %v3872, %v3941
        %v3943 = vpop.f32.mrb[0].mxu0
        %3944 = vdwg.mxu0
        %v3945 = vadd.f32 %v3737, %v3942
        %v3946 = vld [vmem:[#allocation11] sm:$0x1]
        %v3948 = vlaneseq
        %v3949 = vshrl.u32 %v3948, 7
        %v3950 = vsub.s32 0, %v3949
        %v3951 = vrot.slane %v3946, %v3950
        %v3953 = vadd.f32 %v3945, %v3951
        %v3954 = vmax.f32 %v3953, 0.0
        %v3956 = vrot.slane %v3954, 7
        %vm3958 = vcmp.gt.f32.partialorder %v3954, %v3956
        %v3959 = vsel %vm3958, %v3954, %v3956
        %v3960 = vsel %vm3958, 1, 0
        %v3961 = vsel %vm3958, 3, 2
        %v3963 = vrot.slane %v3959, 1
        %v3965 = vrot.slane %v3959, 2
        %v3967 = vsel %vm651, %v3963, %v3965
        %v3968 = vrot.slane %v3960, 1
        %v3969 = vrot.slane %v3961, 2
        %v3970 = vsel %vm651, %v3968, %v3969
        %3971 = vst [vmem:[%s635] sm:$0x3] %v3970
        %v3973 = vrot.slane %v3967, 7
        %v3975 = vsel %vm651, 0.0, %v3973
        %v3976 = vrot.slane %v3967, 1
        %v3978 = vsel %vm651, %v3976, 0.0
        %v3979 = vld [vmem:[#allocation13] sm:$0xff]
        %v3980 = vld [vmem:[#allocation13 + $0x8] sm:$0xff]
        %v3981 = vld [vmem:[#allocation13 + $0x10] sm:$0xff]
        %v3982 = vld [vmem:[#allocation13 + $0x18] sm:$0xff]
        %v3983 = vld [vmem:[#allocation13 + $0x20] sm:$0xff]
        %v3984 = vld [vmem:[#allocation13 + $0x28] sm:$0xff]
        %v3985 = vld [vmem:[#allocation13 + $0x30] sm:$0xff]
        %v3986 = vld [vmem:[#allocation13 + $0x38] sm:$0xff]
        %v3987 = vld [vmem:[#allocation13 + $0x40] sm:$0xff]
        %v3988 = vld [vmem:[#allocation13 + $0x48] sm:$0xff]
        %v3989 = vld [vmem:[#allocation13 + $0x50] sm:$0xff]
        %v3990 = vld [vmem:[#allocation13 + $0x58] sm:$0xff]
        %v3991 = vld [vmem:[#allocation13 + $0x60] sm:$0xff]
        %v3992 = vld [vmem:[#allocation13 + $0x68] sm:$0xff]
        %v3993 = vld [vmem:[#allocation13 + $0x70] sm:$0xff]
        %v3994 = vld [vmem:[#allocation13 + $0x78] sm:$0xff]
        %s3995 = scalar_lea.vmem [#allocation13], 128
        %v3996 = vld [vmem:[%s3995] sm:$0xff]
        %v3997 = vld [vmem:[%s3995 + $0x8] sm:$0xff]
        %v3998 = vld [vmem:[%s3995 + $0x10] sm:$0xff]
        %v3999 = vld [vmem:[%s3995 + $0x18] sm:$0xff]
        %v4000 = vld [vmem:[%s3995 + $0x20] sm:$0xff]
        %v4001 = vld [vmem:[%s3995 + $0x28] sm:$0xff]
        %v4002 = vld [vmem:[%s3995 + $0x30] sm:$0xff]
        %v4003 = vld [vmem:[%s3995 + $0x38] sm:$0xff]
        %v4004 = vld [vmem:[%s3995 + $0x40] sm:$0xff]
        %v4005 = vld [vmem:[%s3995 + $0x48] sm:$0xff]
        %v4006 = vld [vmem:[%s3995 + $0x50] sm:$0xff]
        %v4007 = vld [vmem:[%s3995 + $0x58] sm:$0xff]
        %v4008 = vld [vmem:[%s3995 + $0x60] sm:$0xff]
        %v4009 = vld [vmem:[%s3995 + $0x68] sm:$0xff]
        %v4010 = vld [vmem:[%s3995 + $0x70] sm:$0xff]
        %v4011 = vld [vmem:[%s3995 + $0x78] sm:$0xff]
        %4012 = vmatprep.subr.mxu0 0.0
        %4013 = vmatpush1.msra.mxu0 %v3996
        %4014 = vmatprep.subr.mxu0 0.0
        %4015 = vmatpush1.msra.mxu0 %v3997
        %4016 = vmatprep.subr.mxu0 0.0
        %4017 = vmatpush1.msra.mxu0 %v3998
        %4018 = vmatprep.subr.mxu0 0.0
        %4019 = vmatpush1.msra.mxu0 %v3999
        %4020 = vmatprep.subr.mxu0 0.0
        %4021 = vmatpush1.msra.mxu0 %v4000
        %4022 = vmatprep.subr.mxu0 0.0
        %4023 = vmatpush1.msra.mxu0 %v4001
        %4024 = vmatprep.subr.mxu0 0.0
        %4025 = vmatpush1.msra.mxu0 %v4002
        %4026 = vmatprep.subr.mxu0 0.0
        %4027 = vmatpush1.msra.mxu0 %v4003
        %4028 = vmatprep.subr.mxu0 0.0
        %4029 = vmatpush1.msra.mxu0 %v4004
        %4030 = vmatprep.subr.mxu0 0.0
        %4031 = vmatpush1.msra.mxu0 %v4005
        %4032 = vmatprep.subr.mxu0 0.0
        %4033 = vmatpush1.msra.mxu0 %v4006
        %4034 = vmatprep.subr.mxu0 0.0
        %4035 = vmatpush1.msra.mxu0 %v4007
        %4036 = vmatprep.subr.mxu0 0.0
        %4037 = vmatpush1.msra.mxu0 %v4008
        %4038 = vmatprep.subr.mxu0 0.0
        %4039 = vmatpush1.msra.mxu0 %v4009
        %4040 = vmatprep.subr.mxu0 0.0
        %4041 = vmatpush1.msra.mxu0 %v4010
        %4042 = vmatprep.subr.mxu0 0.0
        %4043 = vmatpush1.msra.mxu0 %v4011
        %4044 = vmatprep.subr.mxu0 0.0
        %4045 = vmatpush1.msra.mxu0 0.0
        %4046 = vmatprep.subr.mxu0 0.0
        %4047 = vmatpush1.msra.mxu0 0.0
        %4048 = vmatprep.subr.mxu0 0.0
        %4049 = vmatpush1.msra.mxu0 0.0
        %4050 = vmatprep.subr.mxu0 0.0
        %4051 = vmatpush1.msra.mxu0 0.0
        %4052 = vmatprep.subr.mxu0 0.0
        %4053 = vmatpush1.msra.mxu0 0.0
        %4054 = vmatprep.subr.mxu0 0.0
        %4055 = vmatpush1.msra.mxu0 0.0
        %4056 = vmatprep.subr.mxu0 0.0
        %4057 = vmatpush1.msra.mxu0 0.0
        %4058 = vmatprep.subr.mxu0 0.0
        %4059 = vmatpush1.msra.mxu0 0.0
        %4060 = vmatprep.subr.mxu0 0.0
        %4061 = vmatpush1.msra.mxu0 0.0
        %4062 = vmatprep.subr.mxu0 0.0
        %4063 = vmatpush1.msra.mxu0 0.0
        %4064 = vmatprep.subr.mxu0 0.0
        %4065 = vmatpush1.msra.mxu0 0.0
        %4066 = vmatprep.subr.mxu0 0.0
        %4067 = vmatpush1.msra.mxu0 0.0
        %4068 = vmatprep.subr.mxu0 0.0
        %4069 = vmatpush1.msra.mxu0 0.0
        %4070 = vmatprep.subr.mxu0 0.0
        %4071 = vmatpush1.msra.mxu0 0.0
        %4072 = vmatprep.subr.mxu0 0.0
        %4073 = vmatpush1.msra.mxu0 0.0
        %4074 = vmatprep.subr.mxu0 0.0
        %4075 = vmatpush1.msra.mxu0 0.0
        %4076 = vmatprep.mubr.f32.mxu0 0.0
        %4077 = vmatmul.mubr.f32.gmra.mrb[0].mxu0 %v3967
        %v4078 = vpop.f32.mrb[0].mxu0
        %v4079 = vadd.f32 0.0, %v4078
        %v4080 = vpop.f32.mrb[0].mxu0
        %4081 = vdwg.mxu0
        %4082 = vmatprep.subr.mxu0 0.0
        %4083 = vmatpush1.msra.mxu0 %v3979
        %4084 = vmatprep.subr.mxu0 0.0
        %4085 = vmatpush1.msra.mxu0 %v3980
        %4086 = vmatprep.subr.mxu0 0.0
        %4087 = vmatpush1.msra.mxu0 %v3981
        %4088 = vmatprep.subr.mxu0 0.0
        %4089 = vmatpush1.msra.mxu0 %v3982
        %4090 = vmatprep.subr.mxu0 0.0
        %4091 = vmatpush1.msra.mxu0 %v3983
        %4092 = vmatprep.subr.mxu0 0.0
        %4093 = vmatpush1.msra.mxu0 %v3984
        %4094 = vmatprep.subr.mxu0 0.0
        %4095 = vmatpush1.msra.mxu0 %v3985
        %4096 = vmatprep.subr.mxu0 0.0
        %4097 = vmatpush1.msra.mxu0 %v3986
        %4098 = vmatprep.subr.mxu0 0.0
        %4099 = vmatpush1.msra.mxu0 %v3987
        %4100 = vmatprep.subr.mxu0 0.0
        %4101 = vmatpush1.msra.mxu0 %v3988
        %4102 = vmatprep.subr.mxu0 0.0
        %4103 = vmatpush1.msra.mxu0 %v3989
        %4104 = vmatprep.subr.mxu0 0.0
        %4105 = vmatpush1.msra.mxu0 %v3990
        %4106 = vmatprep.subr.mxu0 0.0
        %4107 = vmatpush1.msra.mxu0 %v3991
        %4108 = vmatprep.subr.mxu0 0.0
        %4109 = vmatpush1.msra.mxu0 %v3992
        %4110 = vmatprep.subr.mxu0 0.0
        %4111 = vmatpush1.msra.mxu0 %v3993
        %4112 = vmatprep.subr.mxu0 0.0
        %4113 = vmatpush1.msra.mxu0 %v3994
        %4114 = vmatprep.subr.mxu0 0.0
        %4115 = vmatpush1.msra.mxu0 0.0
        %4116 = vmatprep.subr.mxu0 0.0
        %4117 = vmatpush1.msra.mxu0 0.0
        %4118 = vmatprep.subr.mxu0 0.0
        %4119 = vmatpush1.msra.mxu0 0.0
        %4120 = vmatprep.subr.mxu0 0.0
        %4121 = vmatpush1.msra.mxu0 0.0
        %4122 = vmatprep.subr.mxu0 0.0
        %4123 = vmatpush1.msra.mxu0 0.0
        %4124 = vmatprep.subr.mxu0 0.0
        %4125 = vmatpush1.msra.mxu0 0.0
        %4126 = vmatprep.subr.mxu0 0.0
        %4127 = vmatpush1.msra.mxu0 0.0
        %4128 = vmatprep.subr.mxu0 0.0
        %4129 = vmatpush1.msra.mxu0 0.0
        %4130 = vmatprep.subr.mxu0 0.0
        %4131 = vmatpush1.msra.mxu0 0.0
        %4132 = vmatprep.subr.mxu0 0.0
        %4133 = vmatpush1.msra.mxu0 0.0
        %4134 = vmatprep.subr.mxu0 0.0
        %4135 = vmatpush1.msra.mxu0 0.0
        %4136 = vmatprep.subr.mxu0 0.0
        %4137 = vmatpush1.msra.mxu0 0.0
        %4138 = vmatprep.subr.mxu0 0.0
        %4139 = vmatpush1.msra.mxu0 0.0
        %4140 = vmatprep.subr.mxu0 0.0
        %4141 = vmatpush1.msra.mxu0 0.0
        %4142 = vmatprep.subr.mxu0 0.0
        %4143 = vmatpush1.msra.mxu0 0.0
        %4144 = vmatprep.subr.mxu0 0.0
        %4145 = vmatpush1.msra.mxu0 0.0
        %4146 = vmatprep.mubr.f32.mxu0 0.0
        %4147 = vmatmul.mubr.f32.gmra.mrb[0].mxu0 %v3975
        %v4148 = vpop.f32.mrb[0].mxu0
        %v4149 = vadd.f32 %v4079, %v4148
        %v4150 = vpop.f32.mrb[0].mxu0
        %4151 = vdwg.mxu0
        %s4152 = scalar_lea.vmem [#allocation13], 256
        %v4153 = vld [vmem:[%s4152] sm:$0xff]
        %v4154 = vld [vmem:[%s4152 + $0x8] sm:$0xff]
        %v4155 = vld [vmem:[%s4152 + $0x10] sm:$0xff]
        %v4156 = vld [vmem:[%s4152 + $0x18] sm:$0xff]
        %v4157 = vld [vmem:[%s4152 + $0x20] sm:$0xff]
        %v4158 = vld [vmem:[%s4152 + $0x28] sm:$0xff]
        %v4159 = vld [vmem:[%s4152 + $0x30] sm:$0xff]
        %v4160 = vld [vmem:[%s4152 + $0x38] sm:$0xff]
        %v4161 = vld [vmem:[%s4152 + $0x40] sm:$0xff]
        %v4162 = vld [vmem:[%s4152 + $0x48] sm:$0xff]
        %v4163 = vld [vmem:[%s4152 + $0x50] sm:$0xff]
        %v4164 = vld [vmem:[%s4152 + $0x58] sm:$0xff]
        %v4165 = vld [vmem:[%s4152 + $0x60] sm:$0xff]
        %v4166 = vld [vmem:[%s4152 + $0x68] sm:$0xff]
        %v4167 = vld [vmem:[%s4152 + $0x70] sm:$0xff]
        %v4168 = vld [vmem:[%s4152 + $0x78] sm:$0xff]
        %4169 = vmatprep.subr.mxu0 0.0
        %4170 = vmatpush1.msra.mxu0 %v4153
        %4171 = vmatprep.subr.mxu0 0.0
        %4172 = vmatpush1.msra.mxu0 %v4154
        %4173 = vmatprep.subr.mxu0 0.0
        %4174 = vmatpush1.msra.mxu0 %v4155
        %4175 = vmatprep.subr.mxu0 0.0
        %4176 = vmatpush1.msra.mxu0 %v4156
        %4177 = vmatprep.subr.mxu0 0.0
        %4178 = vmatpush1.msra.mxu0 %v4157
        %4179 = vmatprep.subr.mxu0 0.0
        %4180 = vmatpush1.msra.mxu0 %v4158
        %4181 = vmatprep.subr.mxu0 0.0
        %4182 = vmatpush1.msra.mxu0 %v4159
        %4183 = vmatprep.subr.mxu0 0.0
        %4184 = vmatpush1.msra.mxu0 %v4160
        %4185 = vmatprep.subr.mxu0 0.0
        %4186 = vmatpush1.msra.mxu0 %v4161
        %4187 = vmatprep.subr.mxu0 0.0
        %4188 = vmatpush1.msra.mxu0 %v4162
        %4189 = vmatprep.subr.mxu0 0.0
        %4190 = vmatpush1.msra.mxu0 %v4163
        %4191 = vmatprep.subr.mxu0 0.0
        %4192 = vmatpush1.msra.mxu0 %v4164
        %4193 = vmatprep.subr.mxu0 0.0
        %4194 = vmatpush1.msra.mxu0 %v4165
        %4195 = vmatprep.subr.mxu0 0.0
        %4196 = vmatpush1.msra.mxu0 %v4166
        %4197 = vmatprep.subr.mxu0 0.0
        %4198 = vmatpush1.msra.mxu0 %v4167
        %4199 = vmatprep.subr.mxu0 0.0
        %4200 = vmatpush1.msra.mxu0 %v4168
        %4201 = vmatprep.subr.mxu0 0.0
        %4202 = vmatpush1.msra.mxu0 0.0
        %4203 = vmatprep.subr.mxu0 0.0
        %4204 = vmatpush1.msra.mxu0 0.0
        %4205 = vmatprep.subr.mxu0 0.0
        %4206 = vmatpush1.msra.mxu0 0.0
        %4207 = vmatprep.subr.mxu0 0.0
        %4208 = vmatpush1.msra.mxu0 0.0
        %4209 = vmatprep.subr.mxu0 0.0
        %4210 = vmatpush1.msra.mxu0 0.0
        %4211 = vmatprep.subr.mxu0 0.0
        %4212 = vmatpush1.msra.mxu0 0.0
        %4213 = vmatprep.subr.mxu0 0.0
        %4214 = vmatpush1.msra.mxu0 0.0
        %4215 = vmatprep.subr.mxu0 0.0
        %4216 = vmatpush1.msra.mxu0 0.0
        %4217 = vmatprep.subr.mxu0 0.0
        %4218 = vmatpush1.msra.mxu0 0.0
        %4219 = vmatprep.subr.mxu0 0.0
        %4220 = vmatpush1.msra.mxu0 0.0
        %4221 = vmatprep.subr.mxu0 0.0
        %4222 = vmatpush1.msra.mxu0 0.0
        %4223 = vmatprep.subr.mxu0 0.0
        %4224 = vmatpush1.msra.mxu0 0.0
        %4225 = vmatprep.subr.mxu0 0.0
        %4226 = vmatpush1.msra.mxu0 0.0
        %4227 = vmatprep.subr.mxu0 0.0
        %4228 = vmatpush1.msra.mxu0 0.0
        %4229 = vmatprep.subr.mxu0 0.0
        %4230 = vmatpush1.msra.mxu0 0.0
        %4231 = vmatprep.subr.mxu0 0.0
        %4232 = vmatpush1.msra.mxu0 0.0
        %4233 = vmatprep.mubr.f32.mxu0 0.0
        %4234 = vmatmul.mubr.f32.gmra.mrb[0].mxu0 %v3978
        %v4235 = vpop.f32.mrb[0].mxu0
        %v4236 = vadd.f32 0.0, %v4235
        %v4237 = vpop.f32.mrb[0].mxu0
        %4238 = vdwg.mxu0
        %v4239 = vadd.f32 %v4149, %v4236
        %v4240 = vld [vmem:[#allocation14] sm:$0x1]
        %v4242 = vlaneseq
        %v4243 = vshrl.u32 %v4242, 7
        %v4244 = vsub.s32 0, %v4243
        %v4245 = vrot.slane %v4240, %v4244
        %v4247 = vadd.f32 %v4239, %v4245
        %v4248 = vmax.f32 %v4247, 0.0
        %v4250 = vrot.slane %v4248, 7
        %vm4252 = vcmp.gt.f32.partialorder %v4248, %v4250
        %v4253 = vsel %vm4252, %v4248, %v4250
        %v4254 = vsel %vm4252, 1, 0
        %4255 = vst [vmem:[%s641 - $0x1] sm:$0x2] %v4254
        %v4256 = vld [vmem:[%s9] sm:$0xff]
        %v4257 = vld [vmem:[%s9 + $0x8] sm:$0xff]
        %v4258 = vld [vmem:[%s9 + $0x10] sm:$0xff]
        %v4259 = vld [vmem:[%s9 + $0x18] sm:$0xff]
        %v4260 = vld [vmem:[%s9 + $0x20] sm:$0xff]
        %v4261 = vld [vmem:[%s9 + $0x28] sm:$0xff]
        %v4262 = vld [vmem:[%s9 + $0x30] sm:$0xff]
        %v4263 = vld [vmem:[%s9 + $0x38] sm:$0xff]
        %v4264 = vld [vmem:[%s9 + $0x40] sm:$0xff]
        %v4265 = vld [vmem:[%s9 + $0x48] sm:$0xff]
        %v4266 = vld [vmem:[%s9 + $0x50] sm:$0xff]
        %v4267 = vld [vmem:[%s9 + $0x58] sm:$0xff]
        %v4268 = vld [vmem:[%s9 + $0x60] sm:$0xff]
        %v4269 = vld [vmem:[%s9 + $0x68] sm:$0xff]
        %v4270 = vld [vmem:[%s9 + $0x70] sm:$0xff]
        %v4271 = vld [vmem:[%s9 + $0x78] sm:$0xff]
        %v4272 = vld [vmem:[#allocation16] sm:$0x1]
        %v4274 = vrot.slane %v4253, 1
        %4276 = vmatprep.subr.mxu0 0.0
        %4277 = vmatpush1.msra.mxu0 %v4256
        %4278 = vmatprep.subr.mxu0 0.0
        %4279 = vmatpush1.msra.mxu0 %v4257
        %4280 = vmatprep.subr.mxu0 0.0
        %4281 = vmatpush1.msra.mxu0 %v4258
        %4282 = vmatprep.subr.mxu0 0.0
        %4283 = vmatpush1.msra.mxu0 %v4259
        %4284 = vmatprep.subr.mxu0 0.0
        %4285 = vmatpush1.msra.mxu0 %v4260
        %4286 = vmatprep.subr.mxu0 0.0
        %4287 = vmatpush1.msra.mxu0 %v4261
        %4288 = vmatprep.subr.mxu0 0.0
        %4289 = vmatpush1.msra.mxu0 %v4262
        %4290 = vmatprep.subr.mxu0 0.0
        %4291 = vmatpush1.msra.mxu0 %v4263
        %4292 = vmatprep.subr.mxu0 0.0
        %4293 = vmatpush1.msra.mxu0 %v4264
        %4294 = vmatprep.subr.mxu0 0.0
        %4295 = vmatpush1.msra.mxu0 %v4265
        %4296 = vmatprep.subr.mxu0 0.0
        %4297 = vmatpush1.msra.mxu0 %v4266
        %4298 = vmatprep.subr.mxu0 0.0
        %4299 = vmatpush1.msra.mxu0 %v4267
        %4300 = vmatprep.subr.mxu0 0.0
        %4301 = vmatpush1.msra.mxu0 %v4268
        %4302 = vmatprep.subr.mxu0 0.0
        %4303 = vmatpush1.msra.mxu0 %v4269
        %4304 = vmatprep.subr.mxu0 0.0
        %4305 = vmatpush1.msra.mxu0 %v4270
        %4306 = vmatprep.subr.mxu0 0.0
        %4307 = vmatpush1.msra.mxu0 %v4271
        %4308 = vmatprep.subr.mxu0 0.0
        %4309 = vmatpush1.msra.mxu0 0.0
        %4310 = vmatprep.subr.mxu0 0.0
        %4311 = vmatpush1.msra.mxu0 0.0
        %4312 = vmatprep.subr.mxu0 0.0
        %4313 = vmatpush1.msra.mxu0 0.0
        %4314 = vmatprep.subr.mxu0 0.0
        %4315 = vmatpush1.msra.mxu0 0.0
        %4316 = vmatprep.subr.mxu0 0.0
        %4317 = vmatpush1.msra.mxu0 0.0
        %4318 = vmatprep.subr.mxu0 0.0
        %4319 = vmatpush1.msra.mxu0 0.0
        %4320 = vmatprep.subr.mxu0 0.0
        %4321 = vmatpush1.msra.mxu0 0.0
        %4322 = vmatprep.subr.mxu0 0.0
        %4323 = vmatpush1.msra.mxu0 0.0
        %4324 = vmatprep.subr.mxu0 0.0
        %4325 = vmatpush1.msra.mxu0 0.0
        %4326 = vmatprep.subr.mxu0 0.0
        %4327 = vmatpush1.msra.mxu0 0.0
        %4328 = vmatprep.subr.mxu0 0.0
        %4329 = vmatpush1.msra.mxu0 0.0
        %4330 = vmatprep.subr.mxu0 0.0
        %4331 = vmatpush1.msra.mxu0 0.0
        %4332 = vmatprep.subr.mxu0 0.0
        %4333 = vmatpush1.msra.mxu0 0.0
        %4334 = vmatprep.subr.mxu0 0.0
        %4335 = vmatpush1.msra.mxu0 0.0
        %4336 = vmatprep.subr.mxu0 0.0
        %4337 = vmatpush1.msra.mxu0 0.0
        %4338 = vmatprep.subr.mxu0 0.0
        %4339 = vmatpush1.msra.mxu0 0.0
        %4340 = vmatprep.mubr.f32.mxu0 0.0
        %4341 = vmatmul.mubr.f32.gmra.mrb[0].mxu0 %v4274
        %v4342 = vpop.f32.mrb[0].mxu0
        %v4343 = vadd.f32 %v4272, %v4342
        %v4344 = vpop.f32.mrb[0].mxu0
        %4345 = vdwg.mxu0
        %v4346 = vlaneseq
        %v4347 = vand.u32 %v4346, 127
        %v4348 = vmax.f32 %v4343, 0.0
        %v4349 = vand.u32 2147483647, %v4343
        %v4350 = vsub.f32 0.0, %v4349
        %v4351 = vmul.f32 %v4350, 1.442695
        %v4352 = vpow.pop %v4351
        %v4353 = vadd.f32 %v4352, 1.0
        %v4354 = vlog2.pop %v4353
        %v4355 = vmul.f32 %v4354, 0.6931472
        %v4356 = vmul.f32 -0.5, %v4352
        %v4357 = vadd.f32 %v4356, 1.0
        %v4358 = vmul.f32 %v4357, %v4352
        %v4359 = vand.u32 2147483647, %v4352
        %vm4360 = vcmp.lt.f32.partialorder %v4359, 0.0004427343
        %v4361 = vsel %vm4360, %v4358, %v4355
        %v4362 = vadd.f32 %v4348, %v4361
        %v4363 = vadd.f32 %v4362, 1e-07
        %vm4364 = vcmp.lt.s32.totalorder %v4347, 32
        %v4365 = vsel %vm4364, %v4343, %v4363
        %vm4366 = vcmask 516096
        %4367 = vst.msk [vmem:[%s614] sm:$0x1] %vm4366, %v4365
        %s4368 = sand.u32 %s285, 1
        %s4369 = scalar_lea.sflag [#allocation4], %s4368
        %s4370 = sand.u32 %s285, 1
        %s4371 = scalar_lea.vmem [#allocation17], %s4370
        %s4372 = sand.u32 %s41, 1
        %s4373 = scalar_lea.sflag [#allocation19], %s4372
        %s4374 = sand.u32 %s311, 1
        %s4375 = smul.addr %s4374, 32
        %s4376 = scalar_lea.vmem [#allocation18], %s4375
        %s4377 = sand.u32 %s41, 1
        %s4378 = scalar_lea.sflag [#allocation19], %s4377
        %s4379 = sand.u32 %s337, 1
        %s4380 = smul.addr %s4379, 16
        %s4381 = scalar_lea.vmem [#allocation20], %s4380
        %s4382 = sand.u32 %s41, 1
        %s4383 = scalar_lea.sflag [#allocation22], %s4382
        %s4384 = sand.u32 %s363, 1
        %s4385 = smul.addr %s4384, 2
        %s4386 = scalar_lea.vmem [#allocation21], %s4385
        %s4387 = sand.u32 %s41, 1
        %s4388 = scalar_lea.sflag [#allocation22], %s4387
        %s4389 = sand.u32 %s389, 1
        %s4390 = scalar_lea.vmem [#allocation23], %s4389
        // Predicated region
        $region101: #{tpu_custom_call.1} parent=63 // pred_check
          %p4391 = pneg %p295
        $region102: #{tpu_custom_call.1} parent=63 // pred_check_branch
          %4393 = sbr.rel (%p4391) target = $region104
        $region103: #{tpu_custom_call.1} parent=63 // pred_region
          %s4395 = ssub.s32 16, 16
          %4396 = vsyncadd %s4369, %s4395
          %s4397 = smul.addr %s41, 16
          %s4398 = scalar_lea.hbm %s11, %s4397
          %s4400 = sshll.u32 %s4371, 4
          %s4401 = int_to_ptr.vmem [resolvable:$true] %s4400
          %4403 = dma.vmem_to_hbm [thread:$0]  %s4401, 16, %s4398, %s4369
        $region104: #{tpu_custom_call.1} parent=63 // pred_fallthru
          _
        // Predicated region
        $region105: #{tpu_custom_call.1} parent=63 // pred_check
          %p4404 = pneg %p321
        $region106: #{tpu_custom_call.1} parent=63 // pred_check_branch
          %4406 = sbr.rel (%p4404) target = $region108
        $region107: #{tpu_custom_call.1} parent=63 // pred_region
          %s4408 = ssub.s32 512, 512
          %4409 = vsyncadd %s4373, %s4408
          %s4410 = smul.addr %s41, 4
          %s4411 = smul.addr %s4410, 128
          %s4412 = scalar_lea.hbm %s12, %s4411
          %s4414 = sshll.u32 %s4376, 4
          %s4415 = int_to_ptr.vmem [resolvable:$true] %s4414
          %4417 = dma.vmem_to_hbm [thread:$0]  %s4415, 512, %s4412, %s4373
        $region108: #{tpu_custom_call.1} parent=63 // pred_fallthru
          _
        // Predicated region
        $region109: #{tpu_custom_call.1} parent=63 // pred_check
          %p4418 = pneg %p347
        $region110: #{tpu_custom_call.1} parent=63 // pred_check_branch
          %4420 = sbr.rel (%p4418) target = $region112
        $region111: #{tpu_custom_call.1} parent=63 // pred_region
          %s4422 = ssub.s32 256, 256
          %4423 = vsyncadd %s4378, %s4422
          %s4424 = smul.addr %s41, 4
          %s4425 = smul.addr %s4424, 64
          %s4426 = scalar_lea.hbm %s13, %s4425
          %s4428 = sshll.u32 %s4381, 4
          %s4429 = int_to_ptr.vmem [resolvable:$true] %s4428
          %4431 = dma.vmem_to_hbm [thread:$0]  %s4429, 256, %s4426, %s4378
        $region112: #{tpu_custom_call.1} parent=63 // pred_fallthru
          _
        // Predicated region
        $region113: #{tpu_custom_call.1} parent=63 // pred_check
          %p4432 = pneg %p373
        $region114: #{tpu_custom_call.1} parent=63 // pred_check_branch
          %4434 = sbr.rel (%p4432) target = $region116
        $region115: #{tpu_custom_call.1} parent=63 // pred_region
          %s4436 = ssub.s32 32, 32
          %4437 = vsyncadd %s4383, %s4436
          %s4438 = smul.addr %s41, 32
          %s4439 = scalar_lea.hbm %s14, %s4438
          %s4441 = sshll.u32 %s4386, 4
          %s4442 = int_to_ptr.vmem [resolvable:$true] %s4441
          %4444 = dma.vmem_to_hbm [thread:$0]  %s4442, 32, %s4439, %s4383
        $region116: #{tpu_custom_call.1} parent=63 // pred_fallthru
          _
        // Predicated region
        $region117: #{tpu_custom_call.1} parent=63 // pred_check
          %p4445 = pneg %p399
        $region118: #{tpu_custom_call.1} parent=63 // pred_check_branch
          %4447 = sbr.rel (%p4445) target = $region120
        $region119: #{tpu_custom_call.1} parent=63 // pred_region
          %s4449 = ssub.s32 16, 16
          %4450 = vsyncadd %s4388, %s4449
          %s4451 = smul.addr %s41, 16
          %s4452 = scalar_lea.hbm %s15, %s4451
          %s4454 = sshll.u32 %s4390, 4
          %s4455 = int_to_ptr.vmem [resolvable:$true] %s4454
          %4457 = dma.vmem_to_hbm [thread:$0]  %s4455, 16, %s4452, %s4388
        $region120: #{tpu_custom_call.1} parent=63 // pred_fallthru
          _
      $region64: #{tpu_custom_call.1} parent=5 // pred_fallthru
        _
      %p4458 = scmp.le.s32.totalorder 2, %s36
      // Predicated region
      $region121: #{tpu_custom_call.1} parent=5 // pred_check
        %p4459 = pneg %p4458
      $region122: #{tpu_custom_call.1} parent=5 // pred_check_branch
        %4461 = sbr.rel (%p4459) target = $region124
      $region123: #{tpu_custom_call.1} parent=5 // pred_region
        %s4462 = ssub.s32 %s36, 2
        // Predicated region
        $region125: #{tpu_custom_call.1} parent=123 // pred_check
          %p4463 = pneg %p301
        $region126: #{tpu_custom_call.1} parent=123 // pred_check_branch
          %4465 = sbr.rel (%p4463) target = $region128
        $region127: #{tpu_custom_call.1} parent=123 // pred_region
          %s4466 = sand.u32 %s286, 1
          %s4467 = scalar_lea.sflag [#allocation4], %s4466
          %s4468 = sand.u32 %s286, 1
          %s4469 = scalar_lea.vmem [#allocation17], %s4468
          %4470 = dma.done %s4467, 16
        $region128: #{tpu_custom_call.1} parent=123 // pred_fallthru
          _
        // Predicated region
        $region129: #{tpu_custom_call.1} parent=123 // pred_check
          %p4471 = pneg %p327
        $region130: #{tpu_custom_call.1} parent=123 // pred_check_branch
          %4473 = sbr.rel (%p4471) target = $region132
        $region131: #{tpu_custom_call.1} parent=123 // pred_region
          %s4474 = sand.u32 %s42, 1
          %s4475 = scalar_lea.sflag [#allocation19], %s4474
          %s4476 = sand.u32 %s312, 1
          %s4477 = smul.addr %s4476, 32
          %s4478 = scalar_lea.vmem [#allocation18], %s4477
          %4479 = dma.done %s4475, 512
        $region132: #{tpu_custom_call.1} parent=123 // pred_fallthru
          _
        // Predicated region
        $region133: #{tpu_custom_call.1} parent=123 // pred_check
          %p4480 = pneg %p353
        $region134: #{tpu_custom_call.1} parent=123 // pred_check_branch
          %4482 = sbr.rel (%p4480) target = $region136
        $region135: #{tpu_custom_call.1} parent=123 // pred_region
          %s4483 = sand.u32 %s42, 1
          %s4484 = scalar_lea.sflag [#allocation19], %s4483
          %s4485 = sand.u32 %s338, 1
          %s4486 = smul.addr %s4485, 16
          %s4487 = scalar_lea.vmem [#allocation20], %s4486
          %4488 = dma.done %s4484, 256
        $region136: #{tpu_custom_call.1} parent=123 // pred_fallthru
          _
        // Predicated region
        $region137: #{tpu_custom_call.1} parent=123 // pred_check
          %p4489 = pneg %p379
        $region138: #{tpu_custom_call.1} parent=123 // pred_check_branch
          %4491 = sbr.rel (%p4489) target = $region140
        $region139: #{tpu_custom_call.1} parent=123 // pred_region
          %s4492 = sand.u32 %s42, 1
          %s4493 = scalar_lea.sflag [#allocation22], %s4492
          %s4494 = sand.u32 %s364, 1
          %s4495 = smul.addr %s4494, 2
          %s4496 = scalar_lea.vmem [#allocation21], %s4495
          %4497 = dma.done %s4493, 32
        $region140: #{tpu_custom_call.1} parent=123 // pred_fallthru
          _
        // Predicated region
        $region141: #{tpu_custom_call.1} parent=123 // pred_check
          %p4498 = pneg %p405
        $region142: #{tpu_custom_call.1} parent=123 // pred_check_branch
          %4500 = sbr.rel (%p4498) target = $region144
        $region143: #{tpu_custom_call.1} parent=123 // pred_region
          %s4501 = sand.u32 %s42, 1
          %s4502 = scalar_lea.sflag [#allocation22], %s4501
          %s4503 = sand.u32 %s390, 1
          %s4504 = scalar_lea.vmem [#allocation23], %s4503
          %4505 = dma.done %s4502, 16
        $region144: #{tpu_custom_call.1} parent=123 // pred_fallthru
          _
      $region124: #{tpu_custom_call.1} parent=5 // pred_fallthru
        _
    $region6: #{tpu_custom_call.1} parent=1 // loop_footer
      %s40 = sadd.s32 1, %s36
    $region7: #{tpu_custom_call.1} parent=1 // loop_footer_branch
      %35 = sbr.rel target = $region3
    $region8: #{tpu_custom_call.1} parent=1 // loop_exit
      _
    %4506 = vsyncpa [#allocation3], 1
    %s4507 = scalar_lea.sflag [#allocation3], 1
    %4508 = vsyncpa %s4507, 1
    %4509 = vsyncpa [#allocation6], 1
    %4510 = vsyncpa [#allocation9], 1
    %4511 = vsyncpa [#allocation12], 1
    %4512 = vsyncpa [#allocation15], 1
    %4513 = vsyncpa [#allocation4], 1
    %s4514 = scalar_lea.sflag [#allocation4], 1
    %4515 = vsyncpa %s4514, 1
    %4516 = vsyncpa [#allocation19], 1
    %s4517 = scalar_lea.sflag [#allocation19], 1
    %4518 = vsyncpa %s4517, 1
    %4519 = vsyncpa [#allocation22], 1
    %s4520 = scalar_lea.sflag [#allocation22], 1
    %4521 = vsyncpa %s4520, 1

</llo_original>
